<compile_context>
chip_gen: v7x
topology: tpu7x:2x2x1
jax: 0.10.0
libtpu: 0.0.40
codegen_flags: <defaults>
</compile_context>

<pallas_src>
import functools
import math

import jax
import jax.numpy as jnp
from jax.experimental import pallas as pl
from jax.experimental.pallas import tpu as pltpu

_LOG_2PI = math.log(2.0 * math.pi)


def _logprob_kernel(xp_ref, out_ref, *, d, pack):
    """Standard-MVN log-prob for one tile of packed rows.

    xp_ref:  (TILE_P, pack*d) native-dtype VMEM tile (pack original rows per packed row)
    out_ref: (pack, TILE_P)   float32 VMEM tile; out[j, p] = log p(x[p*pack + j])
    """
    xp = xp_ref[...].astype(jnp.float32)   # upcast in-register; HBM streams native dtype
    x2 = xp * xp                           # VPU

    w = pack * d
    # 0/1 block-diagonal segment selector built from iota (no dense constants).
    lane = jax.lax.broadcasted_iota(jnp.int32, (pack, w), 1)
    seg = jax.lax.broadcasted_iota(jnp.int32, (pack, w), 0)
    sel = ((lane >= seg * d) & (lane < (seg + 1) * d)).astype(jnp.float32)

    # (pack, w) · (TILE_P, w) contracted on lanes -> (pack, TILE_P) on the otherwise
    # idle MXU; lane-dense along the tile axis => unmasked full-width vector stores.
    ssq = jax.lax.dot_general(
        sel, x2,
        dimension_numbers=(((1,), (1,)), ((), ())),
        preferred_element_type=jnp.float32,
        precision=jax.lax.Precision.HIGHEST,
    )
    out_ref[...] = -0.5 * ssq - (0.5 * d * _LOG_2PI)


def _logprob_ref(x: jax.Array) -> jax.Array:
    """Plain-JAX reference / small-input fast path."""
    xf = x.astype(jnp.float32)
    return -0.5 * jnp.sum(xf * xf, axis=-1) - 0.5 * x.shape[-1] * _LOG_2PI


def base_dist_log_prob(x: jax.Array, *, tile_rows: int = 1024,
                       min_pallas_elems: int = 8192) -> jax.Array:
    """log_prob of MultivariateNormal(zeros(D), eye(D)) at x: [N, D] -> [N] (f32)."""
    n, d = x.shape
    if n == 0:
        return jnp.zeros((0,), jnp.float32)

    # Small-input fast path: Pallas launch + per-step overhead dwarfs the work.
    if n * d < min_pallas_elems:
        return _logprob_ref(x)

    # Lane packing: D=32 -> PACK=4 original rows per 128-lane packed row.
    pack = (128 // d) if (d <= 128 and 128 % d == 0) else 1
    n_main = (n // pack) * pack          # rows handled by the kernel
    n_p = n_main // pack                 # packed rows
    w = pack * d                         # packed lane width (128 when packing)

    # Tile size: multiple of 128 so the lane-dense output block stays unmasked and
    # the input block's sublane dim is a multiple of 8; small enough for v7x VMEM.
    tile_rows = max(128, (tile_rows // 128) * 128)
    tile_p = n_p if n_p <= tile_rows else tile_rows
    grid = (pl.cdiv(n_p, tile_p),)

    xp = (x if n_main == n else x[:n_main]).reshape(n_p, w)   # free contiguous view

    kernel = functools.partial(_logprob_kernel, d=d, pack=pack)
    out = pl.pallas_call(
        kernel,
        out_shape=jax.ShapeDtypeStruct((pack, n_p), jnp.float32),
        grid_spec=pl.GridSpec(
            grid=grid,
            in_specs=[pl.BlockSpec((tile_p, w), lambda i: (i, 0))],
            out_specs=pl.BlockSpec((pack, tile_p), lambda i: (0, i)),
        ),
        compiler_params=pltpu.CompilerParams(
            dimension_semantics=("parallel",),   # v7x: shard rows across both TCs
        ),
        cost_estimate=pl.CostEstimate(
            flops=3 * n_main * d,
            transcendentals=0,
            bytes_accessed=n_main * d * x.dtype.itemsize + n_main * 4,
        ),
    )(xp)

    # out[j, p] = log p(x[p*pack + j]); undo the packed layout (tiny transpose).
    logp_main = out.T.reshape(n_main)

    if n_main < n:  # remainder rows (N not a multiple of PACK): < PACK rows, do in jnp
        logp_tail = _logprob_ref(x[n_main:])
        return jnp.concatenate([logp_main, logp_tail], axis=0)
    return logp_main


class MarginalEstimatorJAX:
    """JAX mirror of the PyTorch base class. Parameters: none (base class)."""

    def __init__(self, param_shape=(32,)):
        self.param_shape = tuple(param_shape)

    def forward(self, *args):
        raise NotImplementedError  # faithful to the reference base class

    def base_dist_log_prob(self, x: jax.Array) -> jax.Array:
        return base_dist_log_prob(x)


if __name__ == "__main__":
    key = jax.random.PRNGKey(0)
    D = 32
    est = MarginalEstimatorJAX(param_shape=(D,))

    # Main case: big enough to take the tiled Pallas path, sized to exercise a
    # multi-step grid, a partial last tile, and a non-multiple-of-PACK remainder.
    N = 4102
    kx, kb = jax.random.split(key)
    x = jax.random.normal(kx, (N, D), dtype=jnp.float32)
    logp = jax.block_until_ready(est.base_dist_log_prob(x))
    ref = _logprob_ref(x)
    assert logp.shape == (N,)
    assert jnp.allclose(logp, ref, rtol=2e-3, atol=2e-2), float(jnp.max(jnp.abs(logp - ref)))

    # Native-bf16 path: no wrapper upcast; cast happens in-register in the kernel.
    xb = jax.random.normal(kb, (2048, D), dtype=jnp.bfloat16)
    logp_b = jax.block_until_ready(est.base_dist_log_prob(xb))
    ref_b = _logprob_ref(xb)
    assert jnp.allclose(logp_b, ref_b, rtol=2e-3, atol=2e-2)

    # Tiny-input fast path (skips Pallas; launch overhead dominates at this size).
    xs = jax.random.normal(key, (8, D), dtype=jnp.float32)
    logp_s = jax.block_until_ready(est.base_dist_log_prob(xs))
    assert jnp.allclose(logp_s, _logprob_ref(xs), rtol=1e-4, atol=1e-4)

    print("KERNEL_OK")
</pallas_src>

<mosaic_0001>
module attributes {stable_mosaic.version = 11 : i64} {
  func.func @_logprob_kernel(%arg0: i32, %arg1: memref<1024x128xf32, #tpu.memory_space<vmem>>, %arg2: memref<4x1024xf32, #tpu.memory_space<vmem>>) attributes {dimension_semantics = [#tpu.dimension_semantics<parallel>], iteration_bounds = array<i64: 2>, scalar_prefetch = 0 : i64, scratch_operands = 0 : i64, tpu.core_type = #tpu.core_type<tc>, window_params = [{transform_indices = @transform_0, window_bounds = array<i64: 1024, 128>}, {transform_indices = @transform_1, window_bounds = array<i64: 4, 1024>}]} {
    %c0 = arith.constant 0 : index
    %c0_0 = arith.constant 0 : index
    %0 = vector.load %arg1[%c0, %c0_0] : memref<1024x128xf32, #tpu.memory_space<vmem>>, vector<1024x128xf32>
    %1 = arith.mulf %0, %0 : vector<1024x128xf32>
    %2 = tpu.iota {dimensions = array<i32: 1>} : vector<4x128xi32>
    %3 = tpu.iota {dimensions = array<i32: 0>} : vector<4x128xi32>
    %c32_i32 = arith.constant 32 : i32
    %4 = vector.broadcast %c32_i32 : i32 to vector<4x128xi32>
    %5 = arith.muli %3, %4 : vector<4x128xi32>
    %6 = arith.cmpi sge, %2, %5 : vector<4x128xi32>
    %c1_i32 = arith.constant 1 : i32
    %7 = vector.broadcast %c1_i32 : i32 to vector<4x128xi32>
    %8 = arith.addi %3, %7 : vector<4x128xi32>
    %c32_i32_1 = arith.constant 32 : i32
    %9 = vector.broadcast %c32_i32_1 : i32 to vector<4x128xi32>
    %10 = arith.muli %8, %9 : vector<4x128xi32>
    %11 = arith.cmpi slt, %2, %10 : vector<4x128xi32>
    %12 = arith.andi %6, %11 : vector<4x128xi1>
    %13 = arith.extui %12 : vector<4x128xi1> to vector<4x128xi32>
    %14 = arith.sitofp %13 : vector<4x128xi32> to vector<4x128xf32>
    %cst = arith.constant dense<0.000000e+00> : vector<4x1024xf32>
    %15 = tpu.matmul %14, %1, %cst {dimension_numbers = #tpu.dot_dimension_numbers<[1], [1], [0], [0], [0, 0, 1, 0], [], []>, precision = #tpu.contract_precision<fp32>} : vector<4x128xf32>, vector<1024x128xf32>, vector<4x1024xf32> -> vector<4x1024xf32>
    %cst_2 = arith.constant -5.000000e-01 : f32
    %16 = vector.broadcast %cst_2 : f32 to vector<4x1024xf32>
    %17 = arith.mulf %16, %15 : vector<4x1024xf32>
    %cst_3 = arith.constant 29.4060326 : f32
    %18 = vector.broadcast %cst_3 : f32 to vector<4x1024xf32>
    %19 = arith.subf %17, %18 : vector<4x1024xf32>
    %c0_4 = arith.constant 0 : index
    %c0_5 = arith.constant 0 : index
    %20 = vector.load %arg2[%c0_4, %c0_5] : memref<4x1024xf32, #tpu.memory_space<vmem>>, vector<4x1024xf32>
    tpu.vector_store %arg2[%c0_4, %c0_5], %19 {strides = array<i32>} : memref<4x1024xf32, #tpu.memory_space<vmem>>, vector<4x1024xf32>,
    return
  }
  func.func @transform_0(%arg0: i32) -> (i32, i32) {
    %c0_i32 = arith.constant 0 : i32
    %c0_i32_0 = arith.constant 0 : i32
    return %arg0, %c0_i32 : i32, i32
  }
  func.func @transform_1(%arg0: i32) -> (i32, i32) {
    %c0_i32 = arith.constant 0 : i32
    %c0_i32_0 = arith.constant 0 : i32
    return %c0_i32, %arg0 : i32, i32
  }
}

</mosaic_0001>

<llo_original>
// kernel: tpu_custom_call.1
$region0: #{tpu_custom_call.1}
  #allocation0 [shape = 'u32[]', space=smem, size = 0x4, offset = 0x4, fixed_abs, tag = 'smem constant byte address 0x4 - core index']
  #allocation1 [shape = 'u32[144,128]{1,0:T(1,128)}', space=vmem, size = 0x12000, scoped, tag = 'internal scratch']
  %s0 = inlined_call_operand.hbm [shape: f32[1025,128], index: 0, kind: input, shape index: {}]
  %s1 = inlined_call_operand.hbm [shape: f32[4,1025], index: 1, kind: output, shape index: {}]
  %s2 = sld [smem:[#allocation0]]
  $region41: #{tpu_custom_call.1} parent=0
    _
  %s4 = ssub.s32 1, %s2
  %s5 = scalar_select 0, %s4, %s2
  $region1: #{tpu_custom_call.1} parent=0
    #allocation2 [shape = 'u8[1048576]{0}', space=vmem, size = 0x100000, scoped, tag = 'input window, operand 0']
    #allocation3 [shape = 's32[2]{0}', space=sflag, size = 0x8, scoped, tag = 'scoped memory for tpu_custom_call.1']
    #allocation4 [shape = 's32[2]{0}', space=sflag, size = 0x8, scoped, tag = 'scoped memory for tpu_custom_call.1']
    #allocation5 [shape = 'u8[32768]{0}', space=vmem, size = 0x8000, scoped, tag = 'output window, operand 0']
    %6 = vsyncpa [#allocation3], 0
    %s7 = scalar_lea.sflag [#allocation3], 1
    %8 = vsyncpa %s7, 0
    %9 = vsyncpa [#allocation4], 0
    %s10 = scalar_lea.sflag [#allocation4], 1
    %11 = vsyncpa %s10, 0
    loop: start=0, step=1, limit=4
    $region2: #{tpu_custom_call.1} parent=1 // loop_pre_header
      _
    $region3: #{tpu_custom_call.1} parent=1 // loop_header
      %s13 = sphi 0, %s17
      %p14 = scmp.ge.s32.totalorder %s13, 4
      %s23 = sphi 0, %s25
      %s26 = sphi 0, %s23
      %s27 = sphi 0, %s26
      %s43 = sphi 0, %s27
      %s49 = sphi 0, %s51
      %s52 = sphi 0, %s49
      %s53 = sphi 0, %s52
      %s69 = sphi 0, %s53
    $region4: #{tpu_custom_call.1} parent=1 // loop_header_branch
      %16 = sbr.rel (%p14) target = $region8
    $region5: #{tpu_custom_call.1} parent=1 // loop_body
      %s18 = ssub.s32 %s13, 1
      %s19 = ssub.s32 %s13, 2
      %s20 = sadd.s32 %s13, 1
      %s21 = ssub.s32 %s13, %s20
      %p22 = scmp.eq.s32.totalorder %s21, 0
      %s24 = sadd.s32 %s23, 1
      %s25 = scalar_select %p22, %s23, %s24
      %p28 = pneg %p22
      %p29 = scmp.eq.s32.totalorder %s13, 1
      %p30 = por %p28, %p29
      %p31 = scmp.ne.s32.totalorder %s23, %s26
      %p32 = scmp.eq.s32.totalorder %s13, 0
      %p33 = por %p31, %p32
      %p34 = scmp.ne.s32.totalorder %s23, %s26
      %p35 = scmp.eq.s32.totalorder %s18, 1
      %p36 = por %p34, %p35
      %p37 = scmp.ne.s32.totalorder %s26, %s27
      %p38 = scmp.eq.s32.totalorder %s18, 0
      %p39 = por %p37, %p38
      %p40 = scmp.ne.s32.totalorder %s26, %s27
      %p41 = scmp.eq.s32.totalorder %s19, 1
      %p42 = por %p40, %p41
      %p44 = scmp.ne.s32.totalorder %s27, %s43
      %p45 = scmp.eq.s32.totalorder %s19, 0
      %p46 = por %p44, %p45
      %s47 = ssub.s32 %s13, %s20
      %p48 = scmp.eq.s32.totalorder %s47, 0
      %s50 = sadd.s32 %s49, 1
      %s51 = scalar_select %p48, %s49, %s50
      %p54 = pneg %p48
      %p55 = scmp.eq.s32.totalorder %s13, 1
      %p56 = por %p54, %p55
      %p57 = scmp.ne.s32.totalorder %s49, %s52
      %p58 = scmp.eq.s32.totalorder %s13, 0
      %p59 = por %p57, %p58
      %p60 = scmp.ne.s32.totalorder %s49, %s52
      %p61 = scmp.eq.s32.totalorder %s18, 1
      %p62 = por %p60, %p61
      %p63 = scmp.ne.s32.totalorder %s52, %s53
      %p64 = scmp.eq.s32.totalorder %s18, 0
      %p65 = por %p63, %p64
      %p66 = scmp.ne.s32.totalorder %s52, %s53
      %p67 = scmp.eq.s32.totalorder %s19, 1
      %p68 = por %p66, %p67
      %p70 = scmp.ne.s32.totalorder %s53, %s69
      %p71 = scmp.eq.s32.totalorder %s19, 0
      %p72 = por %p70, %p71
      %p73 = scmp.le.s32.totalorder 1, %s13
      %p74 = scmp.lt.s32.totalorder %s13, 3
      %p75 = pnand %p73, %p74
      %p76 = pneg %p75
      // Predicated region
      $region9: #{tpu_custom_call.1} parent=5 // pred_check
        _
      $region10: #{tpu_custom_call.1} parent=5 // pred_check_branch
        %78 = sbr.rel (%p75) target = $region12
      $region11: #{tpu_custom_call.1} parent=5 // pred_region
        %s79 = ssub.s32 %s13, 1
      $region12: #{tpu_custom_call.1} parent=5 // pred_fallthru
        _
      %p80 = scmp.lt.s32.totalorder %s13, 2
      // Predicated region
      $region13: #{tpu_custom_call.1} parent=5 // pred_check
        %p81 = pneg %p80
      $region14: #{tpu_custom_call.1} parent=5 // pred_check_branch
        %83 = sbr.rel (%p81) target = $region16
      $region15: #{tpu_custom_call.1} parent=5 // pred_region
        // Predicated region
        $region17: #{tpu_custom_call.1} parent=15 // pred_check
          %p84 = pneg %p33
        $region18: #{tpu_custom_call.1} parent=15 // pred_check_branch
          %86 = sbr.rel (%p84) target = $region20
        $region19: #{tpu_custom_call.1} parent=15 // pred_region
          %s87 = sand.u32 %s23, 1
          %s88 = scalar_lea.sflag [#allocation3], %s87
          %s89 = sand.u32 %s23, 1
          %s90 = smul.addr %s89, 1024
          %s91 = scalar_lea.vmem [#allocation2], %s90
          %s92 = smul.u32 128, %s13
          %s93 = ssub.s32 129, %s92
          %p94 = scmp.lt.s32.totalorder %s93, 128
          %s95 = scalar_select %p94, %s93, 128
          %s96 = smul.u32 128, %s95
          %s98 = ssub.s32 16384, %s96
          %99 = vsyncadd %s88, %s98
          %p100 = scmp.ne.s32.totalorder 0, %s96
          %s101 = smul.addr %s92, 128
          %s102 = scalar_lea.hbm %s0, %s101
          %s103 = smul.u32 8, %s95
          %s104 = sshll.u32 %s91, 4
          %s105 = int_to_ptr.vmem [resolvable:$true] %s104
          %s106 = sshll.u32 %s103, 4
          %110 = dma.hbm_to_vmem [thread:$0]  (%p100), %s102, %s106, %s105, %s88, 128, 128, 8
        $region20: #{tpu_custom_call.1} parent=15 // pred_fallthru
          _
      $region16: #{tpu_custom_call.1} parent=5 // pred_fallthru
        _
      %p111 = scmp.le.s32.totalorder 1, %s13
      %p112 = scmp.lt.s32.totalorder %s13, 3
      %p113 = pnand %p111, %p112
      %p114 = pneg %p113
      // Predicated region
      $region21: #{tpu_custom_call.1} parent=5 // pred_check
        _
      $region22: #{tpu_custom_call.1} parent=5 // pred_check_branch
        %116 = sbr.rel (%p113) target = $region24
      $region23: #{tpu_custom_call.1} parent=5 // pred_region
        %s117 = ssub.s32 %s13, 1
        %s118 = sand.u32 %s26, 1
        %s119 = scalar_lea.sflag [#allocation3], %s118
        %s120 = sand.u32 %s26, 1
        %s121 = smul.addr %s120, 1024
        %s122 = scalar_lea.vmem [#allocation2], %s121
        // Predicated region
        $region25: #{tpu_custom_call.1} parent=23 // pred_check
          %p123 = pneg %p39
        $region26: #{tpu_custom_call.1} parent=23 // pred_check_branch
          %125 = sbr.rel (%p123) target = $region28
        $region27: #{tpu_custom_call.1} parent=23 // pred_region
          %126 = dma.done %s119, 16384
        $region28: #{tpu_custom_call.1} parent=23 // pred_fallthru
          _
        %s127 = sand.u32 %s26, 1
        %s128 = scalar_lea.sflag [#allocation3], %s127
        %s129 = sand.u32 %s26, 1
        %s130 = smul.addr %s129, 1024
        %s131 = scalar_lea.vmem [#allocation2], %s130
        %p132 = pneg %p39
        %p133 = pneg %p36
        %p134 = pneg %p65
        %p135 = pneg %p62
        %s136 = sand.u32 %s52, 1
        %s137 = scalar_lea.sflag [#allocation4], %s136
        %s138 = sand.u32 %s52, 1
        %s139 = smul.addr %s138, 32
        %s140 = scalar_lea.vmem [#allocation5], %s139
        %s141 = smul.u32 128, %s18
        %s142 = ssub.s32 129, %s141
        %p143 = scmp.lt.s32.totalorder %s142, 128
        %s144 = scalar_select %p143, %s142, 128
        %s145 = smul.u32 128, %s144
        %s146 = smul.u32 8, %s18
        %s147 = ssub.s32 9, %s146
        %p148 = scmp.lt.s32.totalorder %s147, 8
        %s149 = scalar_select %p148, %s147, 8
        %s150 = smul.u32 64, %s149
        %v151 = vld [vmem:[%s122] sm:$0xff]
        %v152 = vld [vmem:[%s122 + $0x8] sm:$0xff]
        %v153 = vld [vmem:[%s122 + $0x10] sm:$0xff]
        %v154 = vld [vmem:[%s122 + $0x18] sm:$0xff]
        %v155 = vld [vmem:[%s122 + $0x20] sm:$0xff]
        %v156 = vld [vmem:[%s122 + $0x28] sm:$0xff]
        %v157 = vld [vmem:[%s122 + $0x30] sm:$0xff]
        %v158 = vld [vmem:[%s122 + $0x38] sm:$0xff]
        %v159 = vld [vmem:[%s122 + $0x40] sm:$0xff]
        %v160 = vld [vmem:[%s122 + $0x48] sm:$0xff]
        %v161 = vld [vmem:[%s122 + $0x50] sm:$0xff]
        %v162 = vld [vmem:[%s122 + $0x58] sm:$0xff]
        %v163 = vld [vmem:[%s122 + $0x60] sm:$0xff]
        %v164 = vld [vmem:[%s122 + $0x68] sm:$0xff]
        %v165 = vld [vmem:[%s122 + $0x70] sm:$0xff]
        %v166 = vld [vmem:[%s122 + $0x78] sm:$0xff]
        %v167 = vld [vmem:[%s122 + $0x80] sm:$0xff]
        %v168 = vld [vmem:[%s122 + $0x88] sm:$0xff]
        %v169 = vld [vmem:[%s122 + $0x90] sm:$0xff]
        %v170 = vld [vmem:[%s122 + $0x98] sm:$0xff]
        %v171 = vld [vmem:[%s122 + $0xa0] sm:$0xff]
        %v172 = vld [vmem:[%s122 + $0xa8] sm:$0xff]
        %v173 = vld [vmem:[%s122 + $0xb0] sm:$0xff]
        %v174 = vld [vmem:[%s122 + $0xb8] sm:$0xff]
        %v175 = vld [vmem:[%s122 + $0xc0] sm:$0xff]
        %v176 = vld [vmem:[%s122 + $0xc8] sm:$0xff]
        %v177 = vld [vmem:[%s122 + $0xd0] sm:$0xff]
        %v178 = vld [vmem:[%s122 + $0xd8] sm:$0xff]
        %v179 = vld [vmem:[%s122 + $0xe0] sm:$0xff]
        %v180 = vld [vmem:[%s122 + $0xe8] sm:$0xff]
        %v181 = vld [vmem:[%s122 + $0xf0] sm:$0xff]
        %v182 = vld [vmem:[%s122 + $0xf8] sm:$0xff]
        %v183 = vld [vmem:[%s122 + $0x100] sm:$0xff]
        %v184 = vld [vmem:[%s122 + $0x108] sm:$0xff]
        %v185 = vld [vmem:[%s122 + $0x110] sm:$0xff]
        %v186 = vld [vmem:[%s122 + $0x118] sm:$0xff]
        %v187 = vld [vmem:[%s122 + $0x120] sm:$0xff]
        %v188 = vld [vmem:[%s122 + $0x128] sm:$0xff]
        %v189 = vld [vmem:[%s122 + $0x130] sm:$0xff]
        %v190 = vld [vmem:[%s122 + $0x138] sm:$0xff]
        %v191 = vld [vmem:[%s122 + $0x140] sm:$0xff]
        %v192 = vld [vmem:[%s122 + $0x148] sm:$0xff]
        %v193 = vld [vmem:[%s122 + $0x150] sm:$0xff]
        %v194 = vld [vmem:[%s122 + $0x158] sm:$0xff]
        %v195 = vld [vmem:[%s122 + $0x160] sm:$0xff]
        %v196 = vld [vmem:[%s122 + $0x168] sm:$0xff]
        %v197 = vld [vmem:[%s122 + $0x170] sm:$0xff]
        %v198 = vld [vmem:[%s122 + $0x178] sm:$0xff]
        %v199 = vld [vmem:[%s122 + $0x180] sm:$0xff]
        %v200 = vld [vmem:[%s122 + $0x188] sm:$0xff]
        %v201 = vld [vmem:[%s122 + $0x190] sm:$0xff]
        %v202 = vld [vmem:[%s122 + $0x198] sm:$0xff]
        %v203 = vld [vmem:[%s122 + $0x1a0] sm:$0xff]
        %v204 = vld [vmem:[%s122 + $0x1a8] sm:$0xff]
        %v205 = vld [vmem:[%s122 + $0x1b0] sm:$0xff]
        %v206 = vld [vmem:[%s122 + $0x1b8] sm:$0xff]
        %v207 = vld [vmem:[%s122 + $0x1c0] sm:$0xff]
        %v208 = vld [vmem:[%s122 + $0x1c8] sm:$0xff]
        %v209 = vld [vmem:[%s122 + $0x1d0] sm:$0xff]
        %v210 = vld [vmem:[%s122 + $0x1d8] sm:$0xff]
        %v211 = vld [vmem:[%s122 + $0x1e0] sm:$0xff]
        %v212 = vld [vmem:[%s122 + $0x1e8] sm:$0xff]
        %v213 = vld [vmem:[%s122 + $0x1f0] sm:$0xff]
        %v214 = vld [vmem:[%s122 + $0x1f8] sm:$0xff]
        %v215 = vld [vmem:[%s122 + $0x200] sm:$0xff]
        %v216 = vld [vmem:[%s122 + $0x208] sm:$0xff]
        %v217 = vld [vmem:[%s122 + $0x210] sm:$0xff]
        %v218 = vld [vmem:[%s122 + $0x218] sm:$0xff]
        %v219 = vld [vmem:[%s122 + $0x220] sm:$0xff]
        %v220 = vld [vmem:[%s122 + $0x228] sm:$0xff]
        %v221 = vld [vmem:[%s122 + $0x230] sm:$0xff]
        %v222 = vld [vmem:[%s122 + $0x238] sm:$0xff]
        %v223 = vld [vmem:[%s122 + $0x240] sm:$0xff]
        %v224 = vld [vmem:[%s122 + $0x248] sm:$0xff]
        %v225 = vld [vmem:[%s122 + $0x250] sm:$0xff]
        %v226 = vld [vmem:[%s122 + $0x258] sm:$0xff]
        %v227 = vld [vmem:[%s122 + $0x260] sm:$0xff]
        %v228 = vld [vmem:[%s122 + $0x268] sm:$0xff]
        %v229 = vld [vmem:[%s122 + $0x270] sm:$0xff]
        %v230 = vld [vmem:[%s122 + $0x278] sm:$0xff]
        %v231 = vld [vmem:[%s122 + $0x280] sm:$0xff]
        %v232 = vld [vmem:[%s122 + $0x288] sm:$0xff]
        %v233 = vld [vmem:[%s122 + $0x290] sm:$0xff]
        %v234 = vld [vmem:[%s122 + $0x298] sm:$0xff]
        %v235 = vld [vmem:[%s122 + $0x2a0] sm:$0xff]
        %v236 = vld [vmem:[%s122 + $0x2a8] sm:$0xff]
        %v237 = vld [vmem:[%s122 + $0x2b0] sm:$0xff]
        %v238 = vld [vmem:[%s122 + $0x2b8] sm:$0xff]
        %v239 = vld [vmem:[%s122 + $0x2c0] sm:$0xff]
        %v240 = vld [vmem:[%s122 + $0x2c8] sm:$0xff]
        %v241 = vld [vmem:[%s122 + $0x2d0] sm:$0xff]
        %v242 = vld [vmem:[%s122 + $0x2d8] sm:$0xff]
        %v243 = vld [vmem:[%s122 + $0x2e0] sm:$0xff]
        %v244 = vld [vmem:[%s122 + $0x2e8] sm:$0xff]
        %v245 = vld [vmem:[%s122 + $0x2f0] sm:$0xff]
        %v246 = vld [vmem:[%s122 + $0x2f8] sm:$0xff]
        %v247 = vld [vmem:[%s122 + $0x300] sm:$0xff]
        %v248 = vld [vmem:[%s122 + $0x308] sm:$0xff]
        %v249 = vld [vmem:[%s122 + $0x310] sm:$0xff]
        %v250 = vld [vmem:[%s122 + $0x318] sm:$0xff]
        %v251 = vld [vmem:[%s122 + $0x320] sm:$0xff]
        %v252 = vld [vmem:[%s122 + $0x328] sm:$0xff]
        %v253 = vld [vmem:[%s122 + $0x330] sm:$0xff]
        %v254 = vld [vmem:[%s122 + $0x338] sm:$0xff]
        %v255 = vld [vmem:[%s122 + $0x340] sm:$0xff]
        %v256 = vld [vmem:[%s122 + $0x348] sm:$0xff]
        %v257 = vld [vmem:[%s122 + $0x350] sm:$0xff]
        %v258 = vld [vmem:[%s122 + $0x358] sm:$0xff]
        %v259 = vld [vmem:[%s122 + $0x360] sm:$0xff]
        %v260 = vld [vmem:[%s122 + $0x368] sm:$0xff]
        %v261 = vld [vmem:[%s122 + $0x370] sm:$0xff]
        %v262 = vld [vmem:[%s122 + $0x378] sm:$0xff]
        %v263 = vld [vmem:[%s122 + $0x380] sm:$0xff]
        %v264 = vld [vmem:[%s122 + $0x388] sm:$0xff]
        %v265 = vld [vmem:[%s122 + $0x390] sm:$0xff]
        %v266 = vld [vmem:[%s122 + $0x398] sm:$0xff]
        %v267 = vld [vmem:[%s122 + $0x3a0] sm:$0xff]
        %v268 = vld [vmem:[%s122 + $0x3a8] sm:$0xff]
        %v269 = vld [vmem:[%s122 + $0x3b0] sm:$0xff]
        %v270 = vld [vmem:[%s122 + $0x3b8] sm:$0xff]
        %v271 = vld [vmem:[%s122 + $0x3c0] sm:$0xff]
        %v272 = vld [vmem:[%s122 + $0x3c8] sm:$0xff]
        %v273 = vld [vmem:[%s122 + $0x3d0] sm:$0xff]
        %v274 = vld [vmem:[%s122 + $0x3d8] sm:$0xff]
        %v275 = vld [vmem:[%s122 + $0x3e0] sm:$0xff]
        %v276 = vld [vmem:[%s122 + $0x3e8] sm:$0xff]
        %v277 = vld [vmem:[%s122 + $0x3f0] sm:$0xff]
        %v278 = vld [vmem:[%s122 + $0x3f8] sm:$0xff]
        %v279 = vmul.f32 %v151, %v151
        %v280 = vmul.f32 %v152, %v152
        %v281 = vmul.f32 %v153, %v153
        %v282 = vmul.f32 %v154, %v154
        %v283 = vmul.f32 %v155, %v155
        %v284 = vmul.f32 %v156, %v156
        %v285 = vmul.f32 %v157, %v157
        %v286 = vmul.f32 %v158, %v158
        %v287 = vmul.f32 %v159, %v159
        %v288 = vmul.f32 %v160, %v160
        %v289 = vmul.f32 %v161, %v161
        %v290 = vmul.f32 %v162, %v162
        %v291 = vmul.f32 %v163, %v163
        %v292 = vmul.f32 %v164, %v164
        %v293 = vmul.f32 %v165, %v165
        %v294 = vmul.f32 %v166, %v166
        %v295 = vmul.f32 %v167, %v167
        %v296 = vmul.f32 %v168, %v168
        %v297 = vmul.f32 %v169, %v169
        %v298 = vmul.f32 %v170, %v170
        %v299 = vmul.f32 %v171, %v171
        %v300 = vmul.f32 %v172, %v172
        %v301 = vmul.f32 %v173, %v173
        %v302 = vmul.f32 %v174, %v174
        %v303 = vmul.f32 %v175, %v175
        %v304 = vmul.f32 %v176, %v176
        %v305 = vmul.f32 %v177, %v177
        %v306 = vmul.f32 %v178, %v178
        %v307 = vmul.f32 %v179, %v179
        %v308 = vmul.f32 %v180, %v180
        %v309 = vmul.f32 %v181, %v181
        %v310 = vmul.f32 %v182, %v182
        %v311 = vmul.f32 %v183, %v183
        %v312 = vmul.f32 %v184, %v184
        %v313 = vmul.f32 %v185, %v185
        %v314 = vmul.f32 %v186, %v186
        %v315 = vmul.f32 %v187, %v187
        %v316 = vmul.f32 %v188, %v188
        %v317 = vmul.f32 %v189, %v189
        %v318 = vmul.f32 %v190, %v190
        %v319 = vmul.f32 %v191, %v191
        %v320 = vmul.f32 %v192, %v192
        %v321 = vmul.f32 %v193, %v193
        %v322 = vmul.f32 %v194, %v194
        %v323 = vmul.f32 %v195, %v195
        %v324 = vmul.f32 %v196, %v196
        %v325 = vmul.f32 %v197, %v197
        %v326 = vmul.f32 %v198, %v198
        %v327 = vmul.f32 %v199, %v199
        %v328 = vmul.f32 %v200, %v200
        %v329 = vmul.f32 %v201, %v201
        %v330 = vmul.f32 %v202, %v202
        %v331 = vmul.f32 %v203, %v203
        %v332 = vmul.f32 %v204, %v204
        %v333 = vmul.f32 %v205, %v205
        %v334 = vmul.f32 %v206, %v206
        %v335 = vmul.f32 %v207, %v207
        %v336 = vmul.f32 %v208, %v208
        %v337 = vmul.f32 %v209, %v209
        %v338 = vmul.f32 %v210, %v210
        %v339 = vmul.f32 %v211, %v211
        %v340 = vmul.f32 %v212, %v212
        %v341 = vmul.f32 %v213, %v213
        %v342 = vmul.f32 %v214, %v214
        %v343 = vmul.f32 %v215, %v215
        %v344 = vmul.f32 %v216, %v216
        %v345 = vmul.f32 %v217, %v217
        %v346 = vmul.f32 %v218, %v218
        %v347 = vmul.f32 %v219, %v219
        %v348 = vmul.f32 %v220, %v220
        %v349 = vmul.f32 %v221, %v221
        %v350 = vmul.f32 %v222, %v222
        %v351 = vmul.f32 %v223, %v223
        %v352 = vmul.f32 %v224, %v224
        %v353 = vmul.f32 %v225, %v225
        %v354 = vmul.f32 %v226, %v226
        %v355 = vmul.f32 %v227, %v227
        %v356 = vmul.f32 %v228, %v228
        %v357 = vmul.f32 %v229, %v229
        %v358 = vmul.f32 %v230, %v230
        %v359 = vmul.f32 %v231, %v231
        %v360 = vmul.f32 %v232, %v232
        %v361 = vmul.f32 %v233, %v233
        %v362 = vmul.f32 %v234, %v234
        %v363 = vmul.f32 %v235, %v235
        %v364 = vmul.f32 %v236, %v236
        %v365 = vmul.f32 %v237, %v237
        %v366 = vmul.f32 %v238, %v238
        %v367 = vmul.f32 %v239, %v239
        %v368 = vmul.f32 %v240, %v240
        %v369 = vmul.f32 %v241, %v241
        %v370 = vmul.f32 %v242, %v242
        %v371 = vmul.f32 %v243, %v243
        %v372 = vmul.f32 %v244, %v244
        %v373 = vmul.f32 %v245, %v245
        %v374 = vmul.f32 %v246, %v246
        %v375 = vmul.f32 %v247, %v247
        %v376 = vmul.f32 %v248, %v248
        %v377 = vmul.f32 %v249, %v249
        %v378 = vmul.f32 %v250, %v250
        %v379 = vmul.f32 %v251, %v251
        %v380 = vmul.f32 %v252, %v252
        %v381 = vmul.f32 %v253, %v253
        %v382 = vmul.f32 %v254, %v254
        %v383 = vmul.f32 %v255, %v255
        %v384 = vmul.f32 %v256, %v256
        %v385 = vmul.f32 %v257, %v257
        %v386 = vmul.f32 %v258, %v258
        %v387 = vmul.f32 %v259, %v259
        %v388 = vmul.f32 %v260, %v260
        %v389 = vmul.f32 %v261, %v261
        %v390 = vmul.f32 %v262, %v262
        %v391 = vmul.f32 %v263, %v263
        %v392 = vmul.f32 %v264, %v264
        %v393 = vmul.f32 %v265, %v265
        %v394 = vmul.f32 %v266, %v266
        %v395 = vmul.f32 %v267, %v267
        %v396 = vmul.f32 %v268, %v268
        %v397 = vmul.f32 %v269, %v269
        %v398 = vmul.f32 %v270, %v270
        %v399 = vmul.f32 %v271, %v271
        %v400 = vmul.f32 %v272, %v272
        %v401 = vmul.f32 %v273, %v273
        %v402 = vmul.f32 %v274, %v274
        %v403 = vmul.f32 %v275, %v275
        %v404 = vmul.f32 %v276, %v276
        %v405 = vmul.f32 %v277, %v277
        %v406 = vmul.f32 %v278, %v278
        %v407 = vlaneseq
        %v408 = vand.u32 %v407, 127
        %v409 = vlaneseq
        %v410 = vshrl.u32 %v409, 7
        %v411 = vmul.u32 %v410, 32
        %vm412 = vcmp.ge.s32.totalorder %v408, %v411
        %v413 = vadd.s32 %v410, 1
        %v414 = vmul.u32 %v413, 32
        %vm415 = vcmp.lt.s32.totalorder %v408, %v414
        %vm416 = vmand %vm412, %vm415
        %v417 = vsel %vm416, 1, 0
        %v418 = vcvt.s32.f32 %v417
        %419 = vmatprep.subr.mxu0 0.0
        %v420 = vand.u32 %v279, 4294901760
        %421 = vmatpush1.xpose.msra.mxu0 %v420
        %422 = vmatprep.subr.mxu0 0.0
        %v423 = vand.u32 %v280, 4294901760
        %424 = vmatpush1.xpose.msra.mxu0 %v423
        %425 = vmatprep.subr.mxu0 0.0
        %v426 = vand.u32 %v281, 4294901760
        %427 = vmatpush1.xpose.msra.mxu0 %v426
        %428 = vmatprep.subr.mxu0 0.0
        %v429 = vand.u32 %v282, 4294901760
        %430 = vmatpush1.xpose.msra.mxu0 %v429
        %431 = vmatprep.subr.mxu0 0.0
        %v432 = vand.u32 %v283, 4294901760
        %433 = vmatpush1.xpose.msra.mxu0 %v432
        %434 = vmatprep.subr.mxu0 0.0
        %v435 = vand.u32 %v284, 4294901760
        %436 = vmatpush1.xpose.msra.mxu0 %v435
        %437 = vmatprep.subr.mxu0 0.0
        %v438 = vand.u32 %v285, 4294901760
        %439 = vmatpush1.xpose.msra.mxu0 %v438
        %440 = vmatprep.subr.mxu0 0.0
        %v441 = vand.u32 %v286, 4294901760
        %442 = vmatpush1.xpose.msra.mxu0 %v441
        %443 = vmatprep.subr.mxu0 0.0
        %v444 = vand.u32 %v287, 4294901760
        %445 = vmatpush1.xpose.msra.mxu0 %v444
        %446 = vmatprep.subr.mxu0 0.0
        %v447 = vand.u32 %v288, 4294901760
        %448 = vmatpush1.xpose.msra.mxu0 %v447
        %449 = vmatprep.subr.mxu0 0.0
        %v450 = vand.u32 %v289, 4294901760
        %451 = vmatpush1.xpose.msra.mxu0 %v450
        %452 = vmatprep.subr.mxu0 0.0
        %v453 = vand.u32 %v290, 4294901760
        %454 = vmatpush1.xpose.msra.mxu0 %v453
        %455 = vmatprep.subr.mxu0 0.0
        %v456 = vand.u32 %v291, 4294901760
        %457 = vmatpush1.xpose.msra.mxu0 %v456
        %458 = vmatprep.subr.mxu0 0.0
        %v459 = vand.u32 %v292, 4294901760
        %460 = vmatpush1.xpose.msra.mxu0 %v459
        %461 = vmatprep.subr.mxu0 0.0
        %v462 = vand.u32 %v293, 4294901760
        %463 = vmatpush1.xpose.msra.mxu0 %v462
        %464 = vmatprep.subr.mxu0 0.0
        %v465 = vand.u32 %v294, 4294901760
        %466 = vmatpush1.xpose.msra.mxu0 %v465
        %467 = vmatprep.subr.mxu0 0.0
        %v468 = vand.u32 %v295, 4294901760
        %469 = vmatpush1.xpose.msra.mxu0 %v468
        %470 = vmatprep.subr.mxu0 0.0
        %v471 = vand.u32 %v296, 4294901760
        %472 = vmatpush1.xpose.msra.mxu0 %v471
        %473 = vmatprep.subr.mxu0 0.0
        %v474 = vand.u32 %v297, 4294901760
        %475 = vmatpush1.xpose.msra.mxu0 %v474
        %476 = vmatprep.subr.mxu0 0.0
        %v477 = vand.u32 %v298, 4294901760
        %478 = vmatpush1.xpose.msra.mxu0 %v477
        %479 = vmatprep.subr.mxu0 0.0
        %v480 = vand.u32 %v299, 4294901760
        %481 = vmatpush1.xpose.msra.mxu0 %v480
        %482 = vmatprep.subr.mxu0 0.0
        %v483 = vand.u32 %v300, 4294901760
        %484 = vmatpush1.xpose.msra.mxu0 %v483
        %485 = vmatprep.subr.mxu0 0.0
        %v486 = vand.u32 %v301, 4294901760
        %487 = vmatpush1.xpose.msra.mxu0 %v486
        %488 = vmatprep.subr.mxu0 0.0
        %v489 = vand.u32 %v302, 4294901760
        %490 = vmatpush1.xpose.msra.mxu0 %v489
        %491 = vmatprep.subr.mxu0 0.0
        %v492 = vand.u32 %v303, 4294901760
        %493 = vmatpush1.xpose.msra.mxu0 %v492
        %494 = vmatprep.subr.mxu0 0.0
        %v495 = vand.u32 %v304, 4294901760
        %496 = vmatpush1.xpose.msra.mxu0 %v495
        %497 = vmatprep.subr.mxu0 0.0
        %v498 = vand.u32 %v305, 4294901760
        %499 = vmatpush1.xpose.msra.mxu0 %v498
        %500 = vmatprep.subr.mxu0 0.0
        %v501 = vand.u32 %v306, 4294901760
        %502 = vmatpush1.xpose.msra.mxu0 %v501
        %503 = vmatprep.subr.mxu0 0.0
        %v504 = vand.u32 %v307, 4294901760
        %505 = vmatpush1.xpose.msra.mxu0 %v504
        %506 = vmatprep.subr.mxu0 0.0
        %v507 = vand.u32 %v308, 4294901760
        %508 = vmatpush1.xpose.msra.mxu0 %v507
        %509 = vmatprep.subr.mxu0 0.0
        %v510 = vand.u32 %v309, 4294901760
        %511 = vmatpush1.xpose.msra.mxu0 %v510
        %512 = vmatprep.subr.mxu0 0.0
        %v513 = vand.u32 %v310, 4294901760
        %514 = vmatpush1.xpose.msra.mxu0 %v513
        %515 = vmatprep.mubr.f32.mxu0 0.0
        %v516 = vand.u32 %v418, 4294901760
        %v517 = vsub.f32 %v418, %v516
        %v518 = vand.u32 %v517, 4294901760
        %v519 = vsub.f32 %v517, %v518
        %v520 = vand.u32 %v519, 4294901760
        %521 = vmatmul.mubr.f32.gmra.mrb[0].mxu0 %v520
        %v522 = vpop.f32.mrb[0].mxu0
        %v523 = vadd.f32 0.0, %v522
        %v524 = vpop.f32.mrb[0].mxu0
        %v525 = vadd.f32 0.0, %v524
        %526 = vdwg.mxu0
        %527 = vmatprep.subr.mxu0 0.0
        %v528 = vand.u32 %v279, 4294901760
        %v529 = vsub.f32 %v279, %v528
        %v530 = vand.u32 %v529, 4294901760
        %v531 = vsub.f32 %v529, %v530
        %v532 = vand.u32 %v531, 4294901760
        %533 = vmatpush1.xpose.msra.mxu0 %v532
        %534 = vmatprep.subr.mxu0 0.0
        %v535 = vand.u32 %v280, 4294901760
        %v536 = vsub.f32 %v280, %v535
        %v537 = vand.u32 %v536, 4294901760
        %v538 = vsub.f32 %v536, %v537
        %v539 = vand.u32 %v538, 4294901760
        %540 = vmatpush1.xpose.msra.mxu0 %v539
        %541 = vmatprep.subr.mxu0 0.0
        %v542 = vand.u32 %v281, 4294901760
        %v543 = vsub.f32 %v281, %v542
        %v544 = vand.u32 %v543, 4294901760
        %v545 = vsub.f32 %v543, %v544
        %v546 = vand.u32 %v545, 4294901760
        %547 = vmatpush1.xpose.msra.mxu0 %v546
        %548 = vmatprep.subr.mxu0 0.0
        %v549 = vand.u32 %v282, 4294901760
        %v550 = vsub.f32 %v282, %v549
        %v551 = vand.u32 %v550, 4294901760
        %v552 = vsub.f32 %v550, %v551
        %v553 = vand.u32 %v552, 4294901760
        %554 = vmatpush1.xpose.msra.mxu0 %v553
        %555 = vmatprep.subr.mxu0 0.0
        %v556 = vand.u32 %v283, 4294901760
        %v557 = vsub.f32 %v283, %v556
        %v558 = vand.u32 %v557, 4294901760
        %v559 = vsub.f32 %v557, %v558
        %v560 = vand.u32 %v559, 4294901760
        %561 = vmatpush1.xpose.msra.mxu0 %v560
        %562 = vmatprep.subr.mxu0 0.0
        %v563 = vand.u32 %v284, 4294901760
        %v564 = vsub.f32 %v284, %v563
        %v565 = vand.u32 %v564, 4294901760
        %v566 = vsub.f32 %v564, %v565
        %v567 = vand.u32 %v566, 4294901760
        %568 = vmatpush1.xpose.msra.mxu0 %v567
        %569 = vmatprep.subr.mxu0 0.0
        %v570 = vand.u32 %v285, 4294901760
        %v571 = vsub.f32 %v285, %v570
        %v572 = vand.u32 %v571, 4294901760
        %v573 = vsub.f32 %v571, %v572
        %v574 = vand.u32 %v573, 4294901760
        %575 = vmatpush1.xpose.msra.mxu0 %v574
        %576 = vmatprep.subr.mxu0 0.0
        %v577 = vand.u32 %v286, 4294901760
        %v578 = vsub.f32 %v286, %v577
        %v579 = vand.u32 %v578, 4294901760
        %v580 = vsub.f32 %v578, %v579
        %v581 = vand.u32 %v580, 4294901760
        %582 = vmatpush1.xpose.msra.mxu0 %v581
        %583 = vmatprep.subr.mxu0 0.0
        %v584 = vand.u32 %v287, 4294901760
        %v585 = vsub.f32 %v287, %v584
        %v586 = vand.u32 %v585, 4294901760
        %v587 = vsub.f32 %v585, %v586
        %v588 = vand.u32 %v587, 4294901760
        %589 = vmatpush1.xpose.msra.mxu0 %v588
        %590 = vmatprep.subr.mxu0 0.0
        %v591 = vand.u32 %v288, 4294901760
        %v592 = vsub.f32 %v288, %v591
        %v593 = vand.u32 %v592, 4294901760
        %v594 = vsub.f32 %v592, %v593
        %v595 = vand.u32 %v594, 4294901760
        %596 = vmatpush1.xpose.msra.mxu0 %v595
        %597 = vmatprep.subr.mxu0 0.0
        %v598 = vand.u32 %v289, 4294901760
        %v599 = vsub.f32 %v289, %v598
        %v600 = vand.u32 %v599, 4294901760
        %v601 = vsub.f32 %v599, %v600
        %v602 = vand.u32 %v601, 4294901760
        %603 = vmatpush1.xpose.msra.mxu0 %v602
        %604 = vmatprep.subr.mxu0 0.0
        %v605 = vand.u32 %v290, 4294901760
        %v606 = vsub.f32 %v290, %v605
        %v607 = vand.u32 %v606, 4294901760
        %v608 = vsub.f32 %v606, %v607
        %v609 = vand.u32 %v608, 4294901760
        %610 = vmatpush1.xpose.msra.mxu0 %v609
        %611 = vmatprep.subr.mxu0 0.0
        %v612 = vand.u32 %v291, 4294901760
        %v613 = vsub.f32 %v291, %v612
        %v614 = vand.u32 %v613, 4294901760
        %v615 = vsub.f32 %v613, %v614
        %v616 = vand.u32 %v615, 4294901760
        %617 = vmatpush1.xpose.msra.mxu0 %v616
        %618 = vmatprep.subr.mxu0 0.0
        %v619 = vand.u32 %v292, 4294901760
        %v620 = vsub.f32 %v292, %v619
        %v621 = vand.u32 %v620, 4294901760
        %v622 = vsub.f32 %v620, %v621
        %v623 = vand.u32 %v622, 4294901760
        %624 = vmatpush1.xpose.msra.mxu0 %v623
        %625 = vmatprep.subr.mxu0 0.0
        %v626 = vand.u32 %v293, 4294901760
        %v627 = vsub.f32 %v293, %v626
        %v628 = vand.u32 %v627, 4294901760
        %v629 = vsub.f32 %v627, %v628
        %v630 = vand.u32 %v629, 4294901760
        %631 = vmatpush1.xpose.msra.mxu0 %v630
        %632 = vmatprep.subr.mxu0 0.0
        %v633 = vand.u32 %v294, 4294901760
        %v634 = vsub.f32 %v294, %v633
        %v635 = vand.u32 %v634, 4294901760
        %v636 = vsub.f32 %v634, %v635
        %v637 = vand.u32 %v636, 4294901760
        %638 = vmatpush1.xpose.msra.mxu0 %v637
        %639 = vmatprep.subr.mxu0 0.0
        %v640 = vand.u32 %v295, 4294901760
        %v641 = vsub.f32 %v295, %v640
        %v642 = vand.u32 %v641, 4294901760
        %v643 = vsub.f32 %v641, %v642
        %v644 = vand.u32 %v643, 4294901760
        %645 = vmatpush1.xpose.msra.mxu0 %v644
        %646 = vmatprep.subr.mxu0 0.0
        %v647 = vand.u32 %v296, 4294901760
        %v648 = vsub.f32 %v296, %v647
        %v649 = vand.u32 %v648, 4294901760
        %v650 = vsub.f32 %v648, %v649
        %v651 = vand.u32 %v650, 4294901760
        %652 = vmatpush1.xpose.msra.mxu0 %v651
        %653 = vmatprep.subr.mxu0 0.0
        %v654 = vand.u32 %v297, 4294901760
        %v655 = vsub.f32 %v297, %v654
        %v656 = vand.u32 %v655, 4294901760
        %v657 = vsub.f32 %v655, %v656
        %v658 = vand.u32 %v657, 4294901760
        %659 = vmatpush1.xpose.msra.mxu0 %v658
        %660 = vmatprep.subr.mxu0 0.0
        %v661 = vand.u32 %v298, 4294901760
        %v662 = vsub.f32 %v298, %v661
        %v663 = vand.u32 %v662, 4294901760
        %v664 = vsub.f32 %v662, %v663
        %v665 = vand.u32 %v664, 4294901760
        %666 = vmatpush1.xpose.msra.mxu0 %v665
        %667 = vmatprep.subr.mxu0 0.0
        %v668 = vand.u32 %v299, 4294901760
        %v669 = vsub.f32 %v299, %v668
        %v670 = vand.u32 %v669, 4294901760
        %v671 = vsub.f32 %v669, %v670
        %v672 = vand.u32 %v671, 4294901760
        %673 = vmatpush1.xpose.msra.mxu0 %v672
        %674 = vmatprep.subr.mxu0 0.0
        %v675 = vand.u32 %v300, 4294901760
        %v676 = vsub.f32 %v300, %v675
        %v677 = vand.u32 %v676, 4294901760
        %v678 = vsub.f32 %v676, %v677
        %v679 = vand.u32 %v678, 4294901760
        %680 = vmatpush1.xpose.msra.mxu0 %v679
        %681 = vmatprep.subr.mxu0 0.0
        %v682 = vand.u32 %v301, 4294901760
        %v683 = vsub.f32 %v301, %v682
        %v684 = vand.u32 %v683, 4294901760
        %v685 = vsub.f32 %v683, %v684
        %v686 = vand.u32 %v685, 4294901760
        %687 = vmatpush1.xpose.msra.mxu0 %v686
        %688 = vmatprep.subr.mxu0 0.0
        %v689 = vand.u32 %v302, 4294901760
        %v690 = vsub.f32 %v302, %v689
        %v691 = vand.u32 %v690, 4294901760
        %v692 = vsub.f32 %v690, %v691
        %v693 = vand.u32 %v692, 4294901760
        %694 = vmatpush1.xpose.msra.mxu0 %v693
        %695 = vmatprep.subr.mxu0 0.0
        %v696 = vand.u32 %v303, 4294901760
        %v697 = vsub.f32 %v303, %v696
        %v698 = vand.u32 %v697, 4294901760
        %v699 = vsub.f32 %v697, %v698
        %v700 = vand.u32 %v699, 4294901760
        %701 = vmatpush1.xpose.msra.mxu0 %v700
        %702 = vmatprep.subr.mxu0 0.0
        %v703 = vand.u32 %v304, 4294901760
        %v704 = vsub.f32 %v304, %v703
        %v705 = vand.u32 %v704, 4294901760
        %v706 = vsub.f32 %v704, %v705
        %v707 = vand.u32 %v706, 4294901760
        %708 = vmatpush1.xpose.msra.mxu0 %v707
        %709 = vmatprep.subr.mxu0 0.0
        %v710 = vand.u32 %v305, 4294901760
        %v711 = vsub.f32 %v305, %v710
        %v712 = vand.u32 %v711, 4294901760
        %v713 = vsub.f32 %v711, %v712
        %v714 = vand.u32 %v713, 4294901760
        %715 = vmatpush1.xpose.msra.mxu0 %v714
        %716 = vmatprep.subr.mxu0 0.0
        %v717 = vand.u32 %v306, 4294901760
        %v718 = vsub.f32 %v306, %v717
        %v719 = vand.u32 %v718, 4294901760
        %v720 = vsub.f32 %v718, %v719
        %v721 = vand.u32 %v720, 4294901760
        %722 = vmatpush1.xpose.msra.mxu0 %v721
        %723 = vmatprep.subr.mxu0 0.0
        %v724 = vand.u32 %v307, 4294901760
        %v725 = vsub.f32 %v307, %v724
        %v726 = vand.u32 %v725, 4294901760
        %v727 = vsub.f32 %v725, %v726
        %v728 = vand.u32 %v727, 4294901760
        %729 = vmatpush1.xpose.msra.mxu0 %v728
        %730 = vmatprep.subr.mxu0 0.0
        %v731 = vand.u32 %v308, 4294901760
        %v732 = vsub.f32 %v308, %v731
        %v733 = vand.u32 %v732, 4294901760
        %v734 = vsub.f32 %v732, %v733
        %v735 = vand.u32 %v734, 4294901760
        %736 = vmatpush1.xpose.msra.mxu0 %v735
        %737 = vmatprep.subr.mxu0 0.0
        %v738 = vand.u32 %v309, 4294901760
        %v739 = vsub.f32 %v309, %v738
        %v740 = vand.u32 %v739, 4294901760
        %v741 = vsub.f32 %v739, %v740
        %v742 = vand.u32 %v741, 4294901760
        %743 = vmatpush1.xpose.msra.mxu0 %v742
        %744 = vmatprep.subr.mxu0 0.0
        %v745 = vand.u32 %v310, 4294901760
        %v746 = vsub.f32 %v310, %v745
        %v747 = vand.u32 %v746, 4294901760
        %v748 = vsub.f32 %v746, %v747
        %v749 = vand.u32 %v748, 4294901760
        %750 = vmatpush1.xpose.msra.mxu0 %v749
        %751 = vmatprep.mubr.f32.mxu0 0.0
        %v752 = vand.u32 %v418, 4294901760
        %753 = vmatmul.mubr.f32.gmra.mrb[0].mxu0 %v752
        %v754 = vpop.f32.mrb[0].mxu0
        %v755 = vadd.f32 %v523, %v754
        %v756 = vpop.f32.mrb[0].mxu0
        %v757 = vadd.f32 %v525, %v756
        %758 = vdwg.mxu0
        %759 = vmatprep.subr.mxu0 0.0
        %v760 = vand.u32 %v279, 4294901760
        %v761 = vsub.f32 %v279, %v760
        %762 = vmatpush1.xpose.msra.mxu0 %v761
        %763 = vmatprep.subr.mxu0 0.0
        %v764 = vand.u32 %v280, 4294901760
        %v765 = vsub.f32 %v280, %v764
        %766 = vmatpush1.xpose.msra.mxu0 %v765
        %767 = vmatprep.subr.mxu0 0.0
        %v768 = vand.u32 %v281, 4294901760
        %v769 = vsub.f32 %v281, %v768
        %770 = vmatpush1.xpose.msra.mxu0 %v769
        %771 = vmatprep.subr.mxu0 0.0
        %v772 = vand.u32 %v282, 4294901760
        %v773 = vsub.f32 %v282, %v772
        %774 = vmatpush1.xpose.msra.mxu0 %v773
        %775 = vmatprep.subr.mxu0 0.0
        %v776 = vand.u32 %v283, 4294901760
        %v777 = vsub.f32 %v283, %v776
        %778 = vmatpush1.xpose.msra.mxu0 %v777
        %779 = vmatprep.subr.mxu0 0.0
        %v780 = vand.u32 %v284, 4294901760
        %v781 = vsub.f32 %v284, %v780
        %782 = vmatpush1.xpose.msra.mxu0 %v781
        %783 = vmatprep.subr.mxu0 0.0
        %v784 = vand.u32 %v285, 4294901760
        %v785 = vsub.f32 %v285, %v784
        %786 = vmatpush1.xpose.msra.mxu0 %v785
        %787 = vmatprep.subr.mxu0 0.0
        %v788 = vand.u32 %v286, 4294901760
        %v789 = vsub.f32 %v286, %v788
        %790 = vmatpush1.xpose.msra.mxu0 %v789
        %791 = vmatprep.subr.mxu0 0.0
        %v792 = vand.u32 %v287, 4294901760
        %v793 = vsub.f32 %v287, %v792
        %794 = vmatpush1.xpose.msra.mxu0 %v793
        %795 = vmatprep.subr.mxu0 0.0
        %v796 = vand.u32 %v288, 4294901760
        %v797 = vsub.f32 %v288, %v796
        %798 = vmatpush1.xpose.msra.mxu0 %v797
        %799 = vmatprep.subr.mxu0 0.0
        %v800 = vand.u32 %v289, 4294901760
        %v801 = vsub.f32 %v289, %v800
        %802 = vmatpush1.xpose.msra.mxu0 %v801
        %803 = vmatprep.subr.mxu0 0.0
        %v804 = vand.u32 %v290, 4294901760
        %v805 = vsub.f32 %v290, %v804
        %806 = vmatpush1.xpose.msra.mxu0 %v805
        %807 = vmatprep.subr.mxu0 0.0
        %v808 = vand.u32 %v291, 4294901760
        %v809 = vsub.f32 %v291, %v808
        %810 = vmatpush1.xpose.msra.mxu0 %v809
        %811 = vmatprep.subr.mxu0 0.0
        %v812 = vand.u32 %v292, 4294901760
        %v813 = vsub.f32 %v292, %v812
        %814 = vmatpush1.xpose.msra.mxu0 %v813
        %815 = vmatprep.subr.mxu0 0.0
        %v816 = vand.u32 %v293, 4294901760
        %v817 = vsub.f32 %v293, %v816
        %818 = vmatpush1.xpose.msra.mxu0 %v817
        %819 = vmatprep.subr.mxu0 0.0
        %v820 = vand.u32 %v294, 4294901760
        %v821 = vsub.f32 %v294, %v820
        %822 = vmatpush1.xpose.msra.mxu0 %v821
        %823 = vmatprep.subr.mxu0 0.0
        %v824 = vand.u32 %v295, 4294901760
        %v825 = vsub.f32 %v295, %v824
        %826 = vmatpush1.xpose.msra.mxu0 %v825
        %827 = vmatprep.subr.mxu0 0.0
        %v828 = vand.u32 %v296, 4294901760
        %v829 = vsub.f32 %v296, %v828
        %830 = vmatpush1.xpose.msra.mxu0 %v829
        %831 = vmatprep.subr.mxu0 0.0
        %v832 = vand.u32 %v297, 4294901760
        %v833 = vsub.f32 %v297, %v832
        %834 = vmatpush1.xpose.msra.mxu0 %v833
        %835 = vmatprep.subr.mxu0 0.0
        %v836 = vand.u32 %v298, 4294901760
        %v837 = vsub.f32 %v298, %v836
        %838 = vmatpush1.xpose.msra.mxu0 %v837
        %839 = vmatprep.subr.mxu0 0.0
        %v840 = vand.u32 %v299, 4294901760
        %v841 = vsub.f32 %v299, %v840
        %842 = vmatpush1.xpose.msra.mxu0 %v841
        %843 = vmatprep.subr.mxu0 0.0
        %v844 = vand.u32 %v300, 4294901760
        %v845 = vsub.f32 %v300, %v844
        %846 = vmatpush1.xpose.msra.mxu0 %v845
        %847 = vmatprep.subr.mxu0 0.0
        %v848 = vand.u32 %v301, 4294901760
        %v849 = vsub.f32 %v301, %v848
        %850 = vmatpush1.xpose.msra.mxu0 %v849
        %851 = vmatprep.subr.mxu0 0.0
        %v852 = vand.u32 %v302, 4294901760
        %v853 = vsub.f32 %v302, %v852
        %854 = vmatpush1.xpose.msra.mxu0 %v853
        %855 = vmatprep.subr.mxu0 0.0
        %v856 = vand.u32 %v303, 4294901760
        %v857 = vsub.f32 %v303, %v856
        %858 = vmatpush1.xpose.msra.mxu0 %v857
        %859 = vmatprep.subr.mxu0 0.0
        %v860 = vand.u32 %v304, 4294901760
        %v861 = vsub.f32 %v304, %v860
        %862 = vmatpush1.xpose.msra.mxu0 %v861
        %863 = vmatprep.subr.mxu0 0.0
        %v864 = vand.u32 %v305, 4294901760
        %v865 = vsub.f32 %v305, %v864
        %866 = vmatpush1.xpose.msra.mxu0 %v865
        %867 = vmatprep.subr.mxu0 0.0
        %v868 = vand.u32 %v306, 4294901760
        %v869 = vsub.f32 %v306, %v868
        %870 = vmatpush1.xpose.msra.mxu0 %v869
        %871 = vmatprep.subr.mxu0 0.0
        %v872 = vand.u32 %v307, 4294901760
        %v873 = vsub.f32 %v307, %v872
        %874 = vmatpush1.xpose.msra.mxu0 %v873
        %875 = vmatprep.subr.mxu0 0.0
        %v876 = vand.u32 %v308, 4294901760
        %v877 = vsub.f32 %v308, %v876
        %878 = vmatpush1.xpose.msra.mxu0 %v877
        %879 = vmatprep.subr.mxu0 0.0
        %v880 = vand.u32 %v309, 4294901760
        %v881 = vsub.f32 %v309, %v880
        %882 = vmatpush1.xpose.msra.mxu0 %v881
        %883 = vmatprep.subr.mxu0 0.0
        %v884 = vand.u32 %v310, 4294901760
        %v885 = vsub.f32 %v310, %v884
        %886 = vmatpush1.xpose.msra.mxu0 %v885
        %887 = vmatprep.mubr.f32.mxu0 0.0
        %v888 = vand.u32 %v418, 4294901760
        %v889 = vsub.f32 %v418, %v888
        %890 = vmatmul.mubr.f32.gmra.mrb[0].mxu0 %v889
        %v891 = vpop.f32.mrb[0].mxu0
        %v892 = vadd.f32 %v755, %v891
        %v893 = vpop.f32.mrb[0].mxu0
        %v894 = vadd.f32 %v757, %v893
        %895 = vdwg.mxu0
        %896 = vmatprep.subr.mxu0 0.0
        %v897 = vand.u32 %v279, 4294901760
        %898 = vmatpush1.xpose.msra.mxu0 %v897
        %899 = vmatprep.subr.mxu0 0.0
        %v900 = vand.u32 %v280, 4294901760
        %901 = vmatpush1.xpose.msra.mxu0 %v900
        %902 = vmatprep.subr.mxu0 0.0
        %v903 = vand.u32 %v281, 4294901760
        %904 = vmatpush1.xpose.msra.mxu0 %v903
        %905 = vmatprep.subr.mxu0 0.0
        %v906 = vand.u32 %v282, 4294901760
        %907 = vmatpush1.xpose.msra.mxu0 %v906
        %908 = vmatprep.subr.mxu0 0.0
        %v909 = vand.u32 %v283, 4294901760
        %910 = vmatpush1.xpose.msra.mxu0 %v909
        %911 = vmatprep.subr.mxu0 0.0
        %v912 = vand.u32 %v284, 4294901760
        %913 = vmatpush1.xpose.msra.mxu0 %v912
        %914 = vmatprep.subr.mxu0 0.0
        %v915 = vand.u32 %v285, 4294901760
        %916 = vmatpush1.xpose.msra.mxu0 %v915
        %917 = vmatprep.subr.mxu0 0.0
        %v918 = vand.u32 %v286, 4294901760
        %919 = vmatpush1.xpose.msra.mxu0 %v918
        %920 = vmatprep.subr.mxu0 0.0
        %v921 = vand.u32 %v287, 4294901760
        %922 = vmatpush1.xpose.msra.mxu0 %v921
        %923 = vmatprep.subr.mxu0 0.0
        %v924 = vand.u32 %v288, 4294901760
        %925 = vmatpush1.xpose.msra.mxu0 %v924
        %926 = vmatprep.subr.mxu0 0.0
        %v927 = vand.u32 %v289, 4294901760
        %928 = vmatpush1.xpose.msra.mxu0 %v927
        %929 = vmatprep.subr.mxu0 0.0
        %v930 = vand.u32 %v290, 4294901760
        %931 = vmatpush1.xpose.msra.mxu0 %v930
        %932 = vmatprep.subr.mxu0 0.0
        %v933 = vand.u32 %v291, 4294901760
        %934 = vmatpush1.xpose.msra.mxu0 %v933
        %935 = vmatprep.subr.mxu0 0.0
        %v936 = vand.u32 %v292, 4294901760
        %937 = vmatpush1.xpose.msra.mxu0 %v936
        %938 = vmatprep.subr.mxu0 0.0
        %v939 = vand.u32 %v293, 4294901760
        %940 = vmatpush1.xpose.msra.mxu0 %v939
        %941 = vmatprep.subr.mxu0 0.0
        %v942 = vand.u32 %v294, 4294901760
        %943 = vmatpush1.xpose.msra.mxu0 %v942
        %944 = vmatprep.subr.mxu0 0.0
        %v945 = vand.u32 %v295, 4294901760
        %946 = vmatpush1.xpose.msra.mxu0 %v945
        %947 = vmatprep.subr.mxu0 0.0
        %v948 = vand.u32 %v296, 4294901760
        %949 = vmatpush1.xpose.msra.mxu0 %v948
        %950 = vmatprep.subr.mxu0 0.0
        %v951 = vand.u32 %v297, 4294901760
        %952 = vmatpush1.xpose.msra.mxu0 %v951
        %953 = vmatprep.subr.mxu0 0.0
        %v954 = vand.u32 %v298, 4294901760
        %955 = vmatpush1.xpose.msra.mxu0 %v954
        %956 = vmatprep.subr.mxu0 0.0
        %v957 = vand.u32 %v299, 4294901760
        %958 = vmatpush1.xpose.msra.mxu0 %v957
        %959 = vmatprep.subr.mxu0 0.0
        %v960 = vand.u32 %v300, 4294901760
        %961 = vmatpush1.xpose.msra.mxu0 %v960
        %962 = vmatprep.subr.mxu0 0.0
        %v963 = vand.u32 %v301, 4294901760
        %964 = vmatpush1.xpose.msra.mxu0 %v963
        %965 = vmatprep.subr.mxu0 0.0
        %v966 = vand.u32 %v302, 4294901760
        %967 = vmatpush1.xpose.msra.mxu0 %v966
        %968 = vmatprep.subr.mxu0 0.0
        %v969 = vand.u32 %v303, 4294901760
        %970 = vmatpush1.xpose.msra.mxu0 %v969
        %971 = vmatprep.subr.mxu0 0.0
        %v972 = vand.u32 %v304, 4294901760
        %973 = vmatpush1.xpose.msra.mxu0 %v972
        %974 = vmatprep.subr.mxu0 0.0
        %v975 = vand.u32 %v305, 4294901760
        %976 = vmatpush1.xpose.msra.mxu0 %v975
        %977 = vmatprep.subr.mxu0 0.0
        %v978 = vand.u32 %v306, 4294901760
        %979 = vmatpush1.xpose.msra.mxu0 %v978
        %980 = vmatprep.subr.mxu0 0.0
        %v981 = vand.u32 %v307, 4294901760
        %982 = vmatpush1.xpose.msra.mxu0 %v981
        %983 = vmatprep.subr.mxu0 0.0
        %v984 = vand.u32 %v308, 4294901760
        %985 = vmatpush1.xpose.msra.mxu0 %v984
        %986 = vmatprep.subr.mxu0 0.0
        %v987 = vand.u32 %v309, 4294901760
        %988 = vmatpush1.xpose.msra.mxu0 %v987
        %989 = vmatprep.subr.mxu0 0.0
        %v990 = vand.u32 %v310, 4294901760
        %991 = vmatpush1.xpose.msra.mxu0 %v990
        %992 = vmatprep.mubr.f32.mxu0 0.0
        %v993 = vand.u32 %v418, 4294901760
        %v994 = vsub.f32 %v418, %v993
        %v995 = vand.u32 %v994, 4294901760
        %996 = vmatmul.mubr.f32.gmra.mrb[0].mxu0 %v995
        %v997 = vpop.f32.mrb[0].mxu0
        %v998 = vadd.f32 %v892, %v997
        %v999 = vpop.f32.mrb[0].mxu0
        %v1000 = vadd.f32 %v894, %v999
        %1001 = vdwg.mxu0
        %1002 = vmatprep.subr.mxu0 0.0
        %v1003 = vand.u32 %v279, 4294901760
        %v1004 = vsub.f32 %v279, %v1003
        %v1005 = vand.u32 %v1004, 4294901760
        %1006 = vmatpush1.xpose.msra.mxu0 %v1005
        %1007 = vmatprep.subr.mxu0 0.0
        %v1008 = vand.u32 %v280, 4294901760
        %v1009 = vsub.f32 %v280, %v1008
        %v1010 = vand.u32 %v1009, 4294901760
        %1011 = vmatpush1.xpose.msra.mxu0 %v1010
        %1012 = vmatprep.subr.mxu0 0.0
        %v1013 = vand.u32 %v281, 4294901760
        %v1014 = vsub.f32 %v281, %v1013
        %v1015 = vand.u32 %v1014, 4294901760
        %1016 = vmatpush1.xpose.msra.mxu0 %v1015
        %1017 = vmatprep.subr.mxu0 0.0
        %v1018 = vand.u32 %v282, 4294901760
        %v1019 = vsub.f32 %v282, %v1018
        %v1020 = vand.u32 %v1019, 4294901760
        %1021 = vmatpush1.xpose.msra.mxu0 %v1020
        %1022 = vmatprep.subr.mxu0 0.0
        %v1023 = vand.u32 %v283, 4294901760
        %v1024 = vsub.f32 %v283, %v1023
        %v1025 = vand.u32 %v1024, 4294901760
        %1026 = vmatpush1.xpose.msra.mxu0 %v1025
        %1027 = vmatprep.subr.mxu0 0.0
        %v1028 = vand.u32 %v284, 4294901760
        %v1029 = vsub.f32 %v284, %v1028
        %v1030 = vand.u32 %v1029, 4294901760
        %1031 = vmatpush1.xpose.msra.mxu0 %v1030
        %1032 = vmatprep.subr.mxu0 0.0
        %v1033 = vand.u32 %v285, 4294901760
        %v1034 = vsub.f32 %v285, %v1033
        %v1035 = vand.u32 %v1034, 4294901760
        %1036 = vmatpush1.xpose.msra.mxu0 %v1035
        %1037 = vmatprep.subr.mxu0 0.0
        %v1038 = vand.u32 %v286, 4294901760
        %v1039 = vsub.f32 %v286, %v1038
        %v1040 = vand.u32 %v1039, 4294901760
        %1041 = vmatpush1.xpose.msra.mxu0 %v1040
        %1042 = vmatprep.subr.mxu0 0.0
        %v1043 = vand.u32 %v287, 4294901760
        %v1044 = vsub.f32 %v287, %v1043
        %v1045 = vand.u32 %v1044, 4294901760
        %1046 = vmatpush1.xpose.msra.mxu0 %v1045
        %1047 = vmatprep.subr.mxu0 0.0
        %v1048 = vand.u32 %v288, 4294901760
        %v1049 = vsub.f32 %v288, %v1048
        %v1050 = vand.u32 %v1049, 4294901760
        %1051 = vmatpush1.xpose.msra.mxu0 %v1050
        %1052 = vmatprep.subr.mxu0 0.0
        %v1053 = vand.u32 %v289, 4294901760
        %v1054 = vsub.f32 %v289, %v1053
        %v1055 = vand.u32 %v1054, 4294901760
        %1056 = vmatpush1.xpose.msra.mxu0 %v1055
        %1057 = vmatprep.subr.mxu0 0.0
        %v1058 = vand.u32 %v290, 4294901760
        %v1059 = vsub.f32 %v290, %v1058
        %v1060 = vand.u32 %v1059, 4294901760
        %1061 = vmatpush1.xpose.msra.mxu0 %v1060
        %1062 = vmatprep.subr.mxu0 0.0
        %v1063 = vand.u32 %v291, 4294901760
        %v1064 = vsub.f32 %v291, %v1063
        %v1065 = vand.u32 %v1064, 4294901760
        %1066 = vmatpush1.xpose.msra.mxu0 %v1065
        %1067 = vmatprep.subr.mxu0 0.0
        %v1068 = vand.u32 %v292, 4294901760
        %v1069 = vsub.f32 %v292, %v1068
        %v1070 = vand.u32 %v1069, 4294901760
        %1071 = vmatpush1.xpose.msra.mxu0 %v1070
        %1072 = vmatprep.subr.mxu0 0.0
        %v1073 = vand.u32 %v293, 4294901760
        %v1074 = vsub.f32 %v293, %v1073
        %v1075 = vand.u32 %v1074, 4294901760
        %1076 = vmatpush1.xpose.msra.mxu0 %v1075
        %1077 = vmatprep.subr.mxu0 0.0
        %v1078 = vand.u32 %v294, 4294901760
        %v1079 = vsub.f32 %v294, %v1078
        %v1080 = vand.u32 %v1079, 4294901760
        %1081 = vmatpush1.xpose.msra.mxu0 %v1080
        %1082 = vmatprep.subr.mxu0 0.0
        %v1083 = vand.u32 %v295, 4294901760
        %v1084 = vsub.f32 %v295, %v1083
        %v1085 = vand.u32 %v1084, 4294901760
        %1086 = vmatpush1.xpose.msra.mxu0 %v1085
        %1087 = vmatprep.subr.mxu0 0.0
        %v1088 = vand.u32 %v296, 4294901760
        %v1089 = vsub.f32 %v296, %v1088
        %v1090 = vand.u32 %v1089, 4294901760
        %1091 = vmatpush1.xpose.msra.mxu0 %v1090
        %1092 = vmatprep.subr.mxu0 0.0
        %v1093 = vand.u32 %v297, 4294901760
        %v1094 = vsub.f32 %v297, %v1093
        %v1095 = vand.u32 %v1094, 4294901760
        %1096 = vmatpush1.xpose.msra.mxu0 %v1095
        %1097 = vmatprep.subr.mxu0 0.0
        %v1098 = vand.u32 %v298, 4294901760
        %v1099 = vsub.f32 %v298, %v1098
        %v1100 = vand.u32 %v1099, 4294901760
        %1101 = vmatpush1.xpose.msra.mxu0 %v1100
        %1102 = vmatprep.subr.mxu0 0.0
        %v1103 = vand.u32 %v299, 4294901760
        %v1104 = vsub.f32 %v299, %v1103
        %v1105 = vand.u32 %v1104, 4294901760
        %1106 = vmatpush1.xpose.msra.mxu0 %v1105
        %1107 = vmatprep.subr.mxu0 0.0
        %v1108 = vand.u32 %v300, 4294901760
        %v1109 = vsub.f32 %v300, %v1108
        %v1110 = vand.u32 %v1109, 4294901760
        %1111 = vmatpush1.xpose.msra.mxu0 %v1110
        %1112 = vmatprep.subr.mxu0 0.0
        %v1113 = vand.u32 %v301, 4294901760
        %v1114 = vsub.f32 %v301, %v1113
        %v1115 = vand.u32 %v1114, 4294901760
        %1116 = vmatpush1.xpose.msra.mxu0 %v1115
        %1117 = vmatprep.subr.mxu0 0.0
        %v1118 = vand.u32 %v302, 4294901760
        %v1119 = vsub.f32 %v302, %v1118
        %v1120 = vand.u32 %v1119, 4294901760
        %1121 = vmatpush1.xpose.msra.mxu0 %v1120
        %1122 = vmatprep.subr.mxu0 0.0
        %v1123 = vand.u32 %v303, 4294901760
        %v1124 = vsub.f32 %v303, %v1123
        %v1125 = vand.u32 %v1124, 4294901760
        %1126 = vmatpush1.xpose.msra.mxu0 %v1125
        %1127 = vmatprep.subr.mxu0 0.0
        %v1128 = vand.u32 %v304, 4294901760
        %v1129 = vsub.f32 %v304, %v1128
        %v1130 = vand.u32 %v1129, 4294901760
        %1131 = vmatpush1.xpose.msra.mxu0 %v1130
        %1132 = vmatprep.subr.mxu0 0.0
        %v1133 = vand.u32 %v305, 4294901760
        %v1134 = vsub.f32 %v305, %v1133
        %v1135 = vand.u32 %v1134, 4294901760
        %1136 = vmatpush1.xpose.msra.mxu0 %v1135
        %1137 = vmatprep.subr.mxu0 0.0
        %v1138 = vand.u32 %v306, 4294901760
        %v1139 = vsub.f32 %v306, %v1138
        %v1140 = vand.u32 %v1139, 4294901760
        %1141 = vmatpush1.xpose.msra.mxu0 %v1140
        %1142 = vmatprep.subr.mxu0 0.0
        %v1143 = vand.u32 %v307, 4294901760
        %v1144 = vsub.f32 %v307, %v1143
        %v1145 = vand.u32 %v1144, 4294901760
        %1146 = vmatpush1.xpose.msra.mxu0 %v1145
        %1147 = vmatprep.subr.mxu0 0.0
        %v1148 = vand.u32 %v308, 4294901760
        %v1149 = vsub.f32 %v308, %v1148
        %v1150 = vand.u32 %v1149, 4294901760
        %1151 = vmatpush1.xpose.msra.mxu0 %v1150
        %1152 = vmatprep.subr.mxu0 0.0
        %v1153 = vand.u32 %v309, 4294901760
        %v1154 = vsub.f32 %v309, %v1153
        %v1155 = vand.u32 %v1154, 4294901760
        %1156 = vmatpush1.xpose.msra.mxu0 %v1155
        %1157 = vmatprep.subr.mxu0 0.0
        %v1158 = vand.u32 %v310, 4294901760
        %v1159 = vsub.f32 %v310, %v1158
        %v1160 = vand.u32 %v1159, 4294901760
        %1161 = vmatpush1.xpose.msra.mxu0 %v1160
        %1162 = vmatprep.mubr.f32.mxu0 0.0
        %v1163 = vand.u32 %v418, 4294901760
        %1164 = vmatmul.mubr.f32.gmra.mrb[0].mxu0 %v1163
        %v1165 = vpop.f32.mrb[0].mxu0
        %v1166 = vadd.f32 %v998, %v1165
        %v1167 = vpop.f32.mrb[0].mxu0
        %v1168 = vadd.f32 %v1000, %v1167
        %1169 = vdwg.mxu0
        %1170 = vmatprep.subr.mxu0 0.0
        %v1171 = vand.u32 %v279, 4294901760
        %1172 = vmatpush1.xpose.msra.mxu0 %v1171
        %1173 = vmatprep.subr.mxu0 0.0
        %v1174 = vand.u32 %v280, 4294901760
        %1175 = vmatpush1.xpose.msra.mxu0 %v1174
        %1176 = vmatprep.subr.mxu0 0.0
        %v1177 = vand.u32 %v281, 4294901760
        %1178 = vmatpush1.xpose.msra.mxu0 %v1177
        %1179 = vmatprep.subr.mxu0 0.0
        %v1180 = vand.u32 %v282, 4294901760
        %1181 = vmatpush1.xpose.msra.mxu0 %v1180
        %1182 = vmatprep.subr.mxu0 0.0
        %v1183 = vand.u32 %v283, 4294901760
        %1184 = vmatpush1.xpose.msra.mxu0 %v1183
        %1185 = vmatprep.subr.mxu0 0.0
        %v1186 = vand.u32 %v284, 4294901760
        %1187 = vmatpush1.xpose.msra.mxu0 %v1186
        %1188 = vmatprep.subr.mxu0 0.0
        %v1189 = vand.u32 %v285, 4294901760
        %1190 = vmatpush1.xpose.msra.mxu0 %v1189
        %1191 = vmatprep.subr.mxu0 0.0
        %v1192 = vand.u32 %v286, 4294901760
        %1193 = vmatpush1.xpose.msra.mxu0 %v1192
        %1194 = vmatprep.subr.mxu0 0.0
        %v1195 = vand.u32 %v287, 4294901760
        %1196 = vmatpush1.xpose.msra.mxu0 %v1195
        %1197 = vmatprep.subr.mxu0 0.0
        %v1198 = vand.u32 %v288, 4294901760
        %1199 = vmatpush1.xpose.msra.mxu0 %v1198
        %1200 = vmatprep.subr.mxu0 0.0
        %v1201 = vand.u32 %v289, 4294901760
        %1202 = vmatpush1.xpose.msra.mxu0 %v1201
        %1203 = vmatprep.subr.mxu0 0.0
        %v1204 = vand.u32 %v290, 4294901760
        %1205 = vmatpush1.xpose.msra.mxu0 %v1204
        %1206 = vmatprep.subr.mxu0 0.0
        %v1207 = vand.u32 %v291, 4294901760
        %1208 = vmatpush1.xpose.msra.mxu0 %v1207
        %1209 = vmatprep.subr.mxu0 0.0
        %v1210 = vand.u32 %v292, 4294901760
        %1211 = vmatpush1.xpose.msra.mxu0 %v1210
        %1212 = vmatprep.subr.mxu0 0.0
        %v1213 = vand.u32 %v293, 4294901760
        %1214 = vmatpush1.xpose.msra.mxu0 %v1213
        %1215 = vmatprep.subr.mxu0 0.0
        %v1216 = vand.u32 %v294, 4294901760
        %1217 = vmatpush1.xpose.msra.mxu0 %v1216
        %1218 = vmatprep.subr.mxu0 0.0
        %v1219 = vand.u32 %v295, 4294901760
        %1220 = vmatpush1.xpose.msra.mxu0 %v1219
        %1221 = vmatprep.subr.mxu0 0.0
        %v1222 = vand.u32 %v296, 4294901760
        %1223 = vmatpush1.xpose.msra.mxu0 %v1222
        %1224 = vmatprep.subr.mxu0 0.0
        %v1225 = vand.u32 %v297, 4294901760
        %1226 = vmatpush1.xpose.msra.mxu0 %v1225
        %1227 = vmatprep.subr.mxu0 0.0
        %v1228 = vand.u32 %v298, 4294901760
        %1229 = vmatpush1.xpose.msra.mxu0 %v1228
        %1230 = vmatprep.subr.mxu0 0.0
        %v1231 = vand.u32 %v299, 4294901760
        %1232 = vmatpush1.xpose.msra.mxu0 %v1231
        %1233 = vmatprep.subr.mxu0 0.0
        %v1234 = vand.u32 %v300, 4294901760
        %1235 = vmatpush1.xpose.msra.mxu0 %v1234
        %1236 = vmatprep.subr.mxu0 0.0
        %v1237 = vand.u32 %v301, 4294901760
        %1238 = vmatpush1.xpose.msra.mxu0 %v1237
        %1239 = vmatprep.subr.mxu0 0.0
        %v1240 = vand.u32 %v302, 4294901760
        %1241 = vmatpush1.xpose.msra.mxu0 %v1240
        %1242 = vmatprep.subr.mxu0 0.0
        %v1243 = vand.u32 %v303, 4294901760
        %1244 = vmatpush1.xpose.msra.mxu0 %v1243
        %1245 = vmatprep.subr.mxu0 0.0
        %v1246 = vand.u32 %v304, 4294901760
        %1247 = vmatpush1.xpose.msra.mxu0 %v1246
        %1248 = vmatprep.subr.mxu0 0.0
        %v1249 = vand.u32 %v305, 4294901760
        %1250 = vmatpush1.xpose.msra.mxu0 %v1249
        %1251 = vmatprep.subr.mxu0 0.0
        %v1252 = vand.u32 %v306, 4294901760
        %1253 = vmatpush1.xpose.msra.mxu0 %v1252
        %1254 = vmatprep.subr.mxu0 0.0
        %v1255 = vand.u32 %v307, 4294901760
        %1256 = vmatpush1.xpose.msra.mxu0 %v1255
        %1257 = vmatprep.subr.mxu0 0.0
        %v1258 = vand.u32 %v308, 4294901760
        %1259 = vmatpush1.xpose.msra.mxu0 %v1258
        %1260 = vmatprep.subr.mxu0 0.0
        %v1261 = vand.u32 %v309, 4294901760
        %1262 = vmatpush1.xpose.msra.mxu0 %v1261
        %1263 = vmatprep.subr.mxu0 0.0
        %v1264 = vand.u32 %v310, 4294901760
        %1265 = vmatpush1.xpose.msra.mxu0 %v1264
        %1266 = vmatprep.mubr.f32.mxu0 0.0
        %v1267 = vand.u32 %v418, 4294901760
        %1268 = vmatmul.mubr.f32.gmra.mrb[0].mxu0 %v1267
        %v1269 = vpop.f32.mrb[0].mxu0
        %v1270 = vadd.f32 %v1166, %v1269
        %v1271 = vpop.f32.mrb[0].mxu0
        %v1272 = vadd.f32 %v1168, %v1271
        %1273 = vdwg.mxu0
        %1274 = vmatprep.subr.mxu0 0.0
        %v1275 = vand.u32 %v311, 4294901760
        %1276 = vmatpush1.xpose.msra.mxu0 %v1275
        %1277 = vmatprep.subr.mxu0 0.0
        %v1278 = vand.u32 %v312, 4294901760
        %1279 = vmatpush1.xpose.msra.mxu0 %v1278
        %1280 = vmatprep.subr.mxu0 0.0
        %v1281 = vand.u32 %v313, 4294901760
        %1282 = vmatpush1.xpose.msra.mxu0 %v1281
        %1283 = vmatprep.subr.mxu0 0.0
        %v1284 = vand.u32 %v314, 4294901760
        %1285 = vmatpush1.xpose.msra.mxu0 %v1284
        %1286 = vmatprep.subr.mxu0 0.0
        %v1287 = vand.u32 %v315, 4294901760
        %1288 = vmatpush1.xpose.msra.mxu0 %v1287
        %1289 = vmatprep.subr.mxu0 0.0
        %v1290 = vand.u32 %v316, 4294901760
        %1291 = vmatpush1.xpose.msra.mxu0 %v1290
        %1292 = vmatprep.subr.mxu0 0.0
        %v1293 = vand.u32 %v317, 4294901760
        %1294 = vmatpush1.xpose.msra.mxu0 %v1293
        %1295 = vmatprep.subr.mxu0 0.0
        %v1296 = vand.u32 %v318, 4294901760
        %1297 = vmatpush1.xpose.msra.mxu0 %v1296
        %1298 = vmatprep.subr.mxu0 0.0
        %v1299 = vand.u32 %v319, 4294901760
        %1300 = vmatpush1.xpose.msra.mxu0 %v1299
        %1301 = vmatprep.subr.mxu0 0.0
        %v1302 = vand.u32 %v320, 4294901760
        %1303 = vmatpush1.xpose.msra.mxu0 %v1302
        %1304 = vmatprep.subr.mxu0 0.0
        %v1305 = vand.u32 %v321, 4294901760
        %1306 = vmatpush1.xpose.msra.mxu0 %v1305
        %1307 = vmatprep.subr.mxu0 0.0
        %v1308 = vand.u32 %v322, 4294901760
        %1309 = vmatpush1.xpose.msra.mxu0 %v1308
        %1310 = vmatprep.subr.mxu0 0.0
        %v1311 = vand.u32 %v323, 4294901760
        %1312 = vmatpush1.xpose.msra.mxu0 %v1311
        %1313 = vmatprep.subr.mxu0 0.0
        %v1314 = vand.u32 %v324, 4294901760
        %1315 = vmatpush1.xpose.msra.mxu0 %v1314
        %1316 = vmatprep.subr.mxu0 0.0
        %v1317 = vand.u32 %v325, 4294901760
        %1318 = vmatpush1.xpose.msra.mxu0 %v1317
        %1319 = vmatprep.subr.mxu0 0.0
        %v1320 = vand.u32 %v326, 4294901760
        %1321 = vmatpush1.xpose.msra.mxu0 %v1320
        %1322 = vmatprep.subr.mxu0 0.0
        %v1323 = vand.u32 %v327, 4294901760
        %1324 = vmatpush1.xpose.msra.mxu0 %v1323
        %1325 = vmatprep.subr.mxu0 0.0
        %v1326 = vand.u32 %v328, 4294901760
        %1327 = vmatpush1.xpose.msra.mxu0 %v1326
        %1328 = vmatprep.subr.mxu0 0.0
        %v1329 = vand.u32 %v329, 4294901760
        %1330 = vmatpush1.xpose.msra.mxu0 %v1329
        %1331 = vmatprep.subr.mxu0 0.0
        %v1332 = vand.u32 %v330, 4294901760
        %1333 = vmatpush1.xpose.msra.mxu0 %v1332
        %1334 = vmatprep.subr.mxu0 0.0
        %v1335 = vand.u32 %v331, 4294901760
        %1336 = vmatpush1.xpose.msra.mxu0 %v1335
        %1337 = vmatprep.subr.mxu0 0.0
        %v1338 = vand.u32 %v332, 4294901760
        %1339 = vmatpush1.xpose.msra.mxu0 %v1338
        %1340 = vmatprep.subr.mxu0 0.0
        %v1341 = vand.u32 %v333, 4294901760
        %1342 = vmatpush1.xpose.msra.mxu0 %v1341
        %1343 = vmatprep.subr.mxu0 0.0
        %v1344 = vand.u32 %v334, 4294901760
        %1345 = vmatpush1.xpose.msra.mxu0 %v1344
        %1346 = vmatprep.subr.mxu0 0.0
        %v1347 = vand.u32 %v335, 4294901760
        %1348 = vmatpush1.xpose.msra.mxu0 %v1347
        %1349 = vmatprep.subr.mxu0 0.0
        %v1350 = vand.u32 %v336, 4294901760
        %1351 = vmatpush1.xpose.msra.mxu0 %v1350
        %1352 = vmatprep.subr.mxu0 0.0
        %v1353 = vand.u32 %v337, 4294901760
        %1354 = vmatpush1.xpose.msra.mxu0 %v1353
        %1355 = vmatprep.subr.mxu0 0.0
        %v1356 = vand.u32 %v338, 4294901760
        %1357 = vmatpush1.xpose.msra.mxu0 %v1356
        %1358 = vmatprep.subr.mxu0 0.0
        %v1359 = vand.u32 %v339, 4294901760
        %1360 = vmatpush1.xpose.msra.mxu0 %v1359
        %1361 = vmatprep.subr.mxu0 0.0
        %v1362 = vand.u32 %v340, 4294901760
        %1363 = vmatpush1.xpose.msra.mxu0 %v1362
        %1364 = vmatprep.subr.mxu0 0.0
        %v1365 = vand.u32 %v341, 4294901760
        %1366 = vmatpush1.xpose.msra.mxu0 %v1365
        %1367 = vmatprep.subr.mxu0 0.0
        %v1368 = vand.u32 %v342, 4294901760
        %1369 = vmatpush1.xpose.msra.mxu0 %v1368
        %1370 = vmatprep.mubr.f32.mxu0 0.0
        %v1371 = vand.u32 %v418, 4294901760
        %v1372 = vsub.f32 %v418, %v1371
        %v1373 = vand.u32 %v1372, 4294901760
        %v1374 = vsub.f32 %v1372, %v1373
        %v1375 = vand.u32 %v1374, 4294901760
        %1376 = vmatmul.mubr.f32.gmra.mrb[0].mxu0 %v1375
        %v1377 = vpop.f32.mrb[0].mxu0
        %v1378 = vadd.f32 0.0, %v1377
        %v1379 = vpop.f32.mrb[0].mxu0
        %v1380 = vadd.f32 0.0, %v1379
        %1381 = vdwg.mxu0
        %1382 = vmatprep.subr.mxu0 0.0
        %v1383 = vand.u32 %v311, 4294901760
        %v1384 = vsub.f32 %v311, %v1383
        %v1385 = vand.u32 %v1384, 4294901760
        %v1386 = vsub.f32 %v1384, %v1385
        %v1387 = vand.u32 %v1386, 4294901760
        %1388 = vmatpush1.xpose.msra.mxu0 %v1387
        %1389 = vmatprep.subr.mxu0 0.0
        %v1390 = vand.u32 %v312, 4294901760
        %v1391 = vsub.f32 %v312, %v1390
        %v1392 = vand.u32 %v1391, 4294901760
        %v1393 = vsub.f32 %v1391, %v1392
        %v1394 = vand.u32 %v1393, 4294901760
        %1395 = vmatpush1.xpose.msra.mxu0 %v1394
        %1396 = vmatprep.subr.mxu0 0.0
        %v1397 = vand.u32 %v313, 4294901760
        %v1398 = vsub.f32 %v313, %v1397
        %v1399 = vand.u32 %v1398, 4294901760
        %v1400 = vsub.f32 %v1398, %v1399
        %v1401 = vand.u32 %v1400, 4294901760
        %1402 = vmatpush1.xpose.msra.mxu0 %v1401
        %1403 = vmatprep.subr.mxu0 0.0
        %v1404 = vand.u32 %v314, 4294901760
        %v1405 = vsub.f32 %v314, %v1404
        %v1406 = vand.u32 %v1405, 4294901760
        %v1407 = vsub.f32 %v1405, %v1406
        %v1408 = vand.u32 %v1407, 4294901760
        %1409 = vmatpush1.xpose.msra.mxu0 %v1408
        %1410 = vmatprep.subr.mxu0 0.0
        %v1411 = vand.u32 %v315, 4294901760
        %v1412 = vsub.f32 %v315, %v1411
        %v1413 = vand.u32 %v1412, 4294901760
        %v1414 = vsub.f32 %v1412, %v1413
        %v1415 = vand.u32 %v1414, 4294901760
        %1416 = vmatpush1.xpose.msra.mxu0 %v1415
        %1417 = vmatprep.subr.mxu0 0.0
        %v1418 = vand.u32 %v316, 4294901760
        %v1419 = vsub.f32 %v316, %v1418
        %v1420 = vand.u32 %v1419, 4294901760
        %v1421 = vsub.f32 %v1419, %v1420
        %v1422 = vand.u32 %v1421, 4294901760
        %1423 = vmatpush1.xpose.msra.mxu0 %v1422
        %1424 = vmatprep.subr.mxu0 0.0
        %v1425 = vand.u32 %v317, 4294901760
        %v1426 = vsub.f32 %v317, %v1425
        %v1427 = vand.u32 %v1426, 4294901760
        %v1428 = vsub.f32 %v1426, %v1427
        %v1429 = vand.u32 %v1428, 4294901760
        %1430 = vmatpush1.xpose.msra.mxu0 %v1429
        %1431 = vmatprep.subr.mxu0 0.0
        %v1432 = vand.u32 %v318, 4294901760
        %v1433 = vsub.f32 %v318, %v1432
        %v1434 = vand.u32 %v1433, 4294901760
        %v1435 = vsub.f32 %v1433, %v1434
        %v1436 = vand.u32 %v1435, 4294901760
        %1437 = vmatpush1.xpose.msra.mxu0 %v1436
        %1438 = vmatprep.subr.mxu0 0.0
        %v1439 = vand.u32 %v319, 4294901760
        %v1440 = vsub.f32 %v319, %v1439
        %v1441 = vand.u32 %v1440, 4294901760
        %v1442 = vsub.f32 %v1440, %v1441
        %v1443 = vand.u32 %v1442, 4294901760
        %1444 = vmatpush1.xpose.msra.mxu0 %v1443
        %1445 = vmatprep.subr.mxu0 0.0
        %v1446 = vand.u32 %v320, 4294901760
        %v1447 = vsub.f32 %v320, %v1446
        %v1448 = vand.u32 %v1447, 4294901760
        %v1449 = vsub.f32 %v1447, %v1448
        %v1450 = vand.u32 %v1449, 4294901760
        %1451 = vmatpush1.xpose.msra.mxu0 %v1450
        %1452 = vmatprep.subr.mxu0 0.0
        %v1453 = vand.u32 %v321, 4294901760
        %v1454 = vsub.f32 %v321, %v1453
        %v1455 = vand.u32 %v1454, 4294901760
        %v1456 = vsub.f32 %v1454, %v1455
        %v1457 = vand.u32 %v1456, 4294901760
        %1458 = vmatpush1.xpose.msra.mxu0 %v1457
        %1459 = vmatprep.subr.mxu0 0.0
        %v1460 = vand.u32 %v322, 4294901760
        %v1461 = vsub.f32 %v322, %v1460
        %v1462 = vand.u32 %v1461, 4294901760
        %v1463 = vsub.f32 %v1461, %v1462
        %v1464 = vand.u32 %v1463, 4294901760
        %1465 = vmatpush1.xpose.msra.mxu0 %v1464
        %1466 = vmatprep.subr.mxu0 0.0
        %v1467 = vand.u32 %v323, 4294901760
        %v1468 = vsub.f32 %v323, %v1467
        %v1469 = vand.u32 %v1468, 4294901760
        %v1470 = vsub.f32 %v1468, %v1469
        %v1471 = vand.u32 %v1470, 4294901760
        %1472 = vmatpush1.xpose.msra.mxu0 %v1471
        %1473 = vmatprep.subr.mxu0 0.0
        %v1474 = vand.u32 %v324, 4294901760
        %v1475 = vsub.f32 %v324, %v1474
        %v1476 = vand.u32 %v1475, 4294901760
        %v1477 = vsub.f32 %v1475, %v1476
        %v1478 = vand.u32 %v1477, 4294901760
        %1479 = vmatpush1.xpose.msra.mxu0 %v1478
        %1480 = vmatprep.subr.mxu0 0.0
        %v1481 = vand.u32 %v325, 4294901760
        %v1482 = vsub.f32 %v325, %v1481
        %v1483 = vand.u32 %v1482, 4294901760
        %v1484 = vsub.f32 %v1482, %v1483
        %v1485 = vand.u32 %v1484, 4294901760
        %1486 = vmatpush1.xpose.msra.mxu0 %v1485
        %1487 = vmatprep.subr.mxu0 0.0
        %v1488 = vand.u32 %v326, 4294901760
        %v1489 = vsub.f32 %v326, %v1488
        %v1490 = vand.u32 %v1489, 4294901760
        %v1491 = vsub.f32 %v1489, %v1490
        %v1492 = vand.u32 %v1491, 4294901760
        %1493 = vmatpush1.xpose.msra.mxu0 %v1492
        %1494 = vmatprep.subr.mxu0 0.0
        %v1495 = vand.u32 %v327, 4294901760
        %v1496 = vsub.f32 %v327, %v1495
        %v1497 = vand.u32 %v1496, 4294901760
        %v1498 = vsub.f32 %v1496, %v1497
        %v1499 = vand.u32 %v1498, 4294901760
        %1500 = vmatpush1.xpose.msra.mxu0 %v1499
        %1501 = vmatprep.subr.mxu0 0.0
        %v1502 = vand.u32 %v328, 4294901760
        %v1503 = vsub.f32 %v328, %v1502
        %v1504 = vand.u32 %v1503, 4294901760
        %v1505 = vsub.f32 %v1503, %v1504
        %v1506 = vand.u32 %v1505, 4294901760
        %1507 = vmatpush1.xpose.msra.mxu0 %v1506
        %1508 = vmatprep.subr.mxu0 0.0
        %v1509 = vand.u32 %v329, 4294901760
        %v1510 = vsub.f32 %v329, %v1509
        %v1511 = vand.u32 %v1510, 4294901760
        %v1512 = vsub.f32 %v1510, %v1511
        %v1513 = vand.u32 %v1512, 4294901760
        %1514 = vmatpush1.xpose.msra.mxu0 %v1513
        %1515 = vmatprep.subr.mxu0 0.0
        %v1516 = vand.u32 %v330, 4294901760
        %v1517 = vsub.f32 %v330, %v1516
        %v1518 = vand.u32 %v1517, 4294901760
        %v1519 = vsub.f32 %v1517, %v1518
        %v1520 = vand.u32 %v1519, 4294901760
        %1521 = vmatpush1.xpose.msra.mxu0 %v1520
        %1522 = vmatprep.subr.mxu0 0.0
        %v1523 = vand.u32 %v331, 4294901760
        %v1524 = vsub.f32 %v331, %v1523
        %v1525 = vand.u32 %v1524, 4294901760
        %v1526 = vsub.f32 %v1524, %v1525
        %v1527 = vand.u32 %v1526, 4294901760
        %1528 = vmatpush1.xpose.msra.mxu0 %v1527
        %1529 = vmatprep.subr.mxu0 0.0
        %v1530 = vand.u32 %v332, 4294901760
        %v1531 = vsub.f32 %v332, %v1530
        %v1532 = vand.u32 %v1531, 4294901760
        %v1533 = vsub.f32 %v1531, %v1532
        %v1534 = vand.u32 %v1533, 4294901760
        %1535 = vmatpush1.xpose.msra.mxu0 %v1534
        %1536 = vmatprep.subr.mxu0 0.0
        %v1537 = vand.u32 %v333, 4294901760
        %v1538 = vsub.f32 %v333, %v1537
        %v1539 = vand.u32 %v1538, 4294901760
        %v1540 = vsub.f32 %v1538, %v1539
        %v1541 = vand.u32 %v1540, 4294901760
        %1542 = vmatpush1.xpose.msra.mxu0 %v1541
        %1543 = vmatprep.subr.mxu0 0.0
        %v1544 = vand.u32 %v334, 4294901760
        %v1545 = vsub.f32 %v334, %v1544
        %v1546 = vand.u32 %v1545, 4294901760
        %v1547 = vsub.f32 %v1545, %v1546
        %v1548 = vand.u32 %v1547, 4294901760
        %1549 = vmatpush1.xpose.msra.mxu0 %v1548
        %1550 = vmatprep.subr.mxu0 0.0
        %v1551 = vand.u32 %v335, 4294901760
        %v1552 = vsub.f32 %v335, %v1551
        %v1553 = vand.u32 %v1552, 4294901760
        %v1554 = vsub.f32 %v1552, %v1553
        %v1555 = vand.u32 %v1554, 4294901760
        %1556 = vmatpush1.xpose.msra.mxu0 %v1555
        %1557 = vmatprep.subr.mxu0 0.0
        %v1558 = vand.u32 %v336, 4294901760
        %v1559 = vsub.f32 %v336, %v1558
        %v1560 = vand.u32 %v1559, 4294901760
        %v1561 = vsub.f32 %v1559, %v1560
        %v1562 = vand.u32 %v1561, 4294901760
        %1563 = vmatpush1.xpose.msra.mxu0 %v1562
        %1564 = vmatprep.subr.mxu0 0.0
        %v1565 = vand.u32 %v337, 4294901760
        %v1566 = vsub.f32 %v337, %v1565
        %v1567 = vand.u32 %v1566, 4294901760
        %v1568 = vsub.f32 %v1566, %v1567
        %v1569 = vand.u32 %v1568, 4294901760
        %1570 = vmatpush1.xpose.msra.mxu0 %v1569
        %1571 = vmatprep.subr.mxu0 0.0
        %v1572 = vand.u32 %v338, 4294901760
        %v1573 = vsub.f32 %v338, %v1572
        %v1574 = vand.u32 %v1573, 4294901760
        %v1575 = vsub.f32 %v1573, %v1574
        %v1576 = vand.u32 %v1575, 4294901760
        %1577 = vmatpush1.xpose.msra.mxu0 %v1576
        %1578 = vmatprep.subr.mxu0 0.0
        %v1579 = vand.u32 %v339, 4294901760
        %v1580 = vsub.f32 %v339, %v1579
        %v1581 = vand.u32 %v1580, 4294901760
        %v1582 = vsub.f32 %v1580, %v1581
        %v1583 = vand.u32 %v1582, 4294901760
        %1584 = vmatpush1.xpose.msra.mxu0 %v1583
        %1585 = vmatprep.subr.mxu0 0.0
        %v1586 = vand.u32 %v340, 4294901760
        %v1587 = vsub.f32 %v340, %v1586
        %v1588 = vand.u32 %v1587, 4294901760
        %v1589 = vsub.f32 %v1587, %v1588
        %v1590 = vand.u32 %v1589, 4294901760
        %1591 = vmatpush1.xpose.msra.mxu0 %v1590
        %1592 = vmatprep.subr.mxu0 0.0
        %v1593 = vand.u32 %v341, 4294901760
        %v1594 = vsub.f32 %v341, %v1593
        %v1595 = vand.u32 %v1594, 4294901760
        %v1596 = vsub.f32 %v1594, %v1595
        %v1597 = vand.u32 %v1596, 4294901760
        %1598 = vmatpush1.xpose.msra.mxu0 %v1597
        %1599 = vmatprep.subr.mxu0 0.0
        %v1600 = vand.u32 %v342, 4294901760
        %v1601 = vsub.f32 %v342, %v1600
        %v1602 = vand.u32 %v1601, 4294901760
        %v1603 = vsub.f32 %v1601, %v1602
        %v1604 = vand.u32 %v1603, 4294901760
        %1605 = vmatpush1.xpose.msra.mxu0 %v1604
        %1606 = vmatprep.mubr.f32.mxu0 0.0
        %v1607 = vand.u32 %v418, 4294901760
        %1608 = vmatmul.mubr.f32.gmra.mrb[0].mxu0 %v1607
        %v1609 = vpop.f32.mrb[0].mxu0
        %v1610 = vadd.f32 %v1378, %v1609
        %v1611 = vpop.f32.mrb[0].mxu0
        %v1612 = vadd.f32 %v1380, %v1611
        %1613 = vdwg.mxu0
        %1614 = vmatprep.subr.mxu0 0.0
        %v1615 = vand.u32 %v311, 4294901760
        %v1616 = vsub.f32 %v311, %v1615
        %1617 = vmatpush1.xpose.msra.mxu0 %v1616
        %1618 = vmatprep.subr.mxu0 0.0
        %v1619 = vand.u32 %v312, 4294901760
        %v1620 = vsub.f32 %v312, %v1619
        %1621 = vmatpush1.xpose.msra.mxu0 %v1620
        %1622 = vmatprep.subr.mxu0 0.0
        %v1623 = vand.u32 %v313, 4294901760
        %v1624 = vsub.f32 %v313, %v1623
        %1625 = vmatpush1.xpose.msra.mxu0 %v1624
        %1626 = vmatprep.subr.mxu0 0.0
        %v1627 = vand.u32 %v314, 4294901760
        %v1628 = vsub.f32 %v314, %v1627
        %1629 = vmatpush1.xpose.msra.mxu0 %v1628
        %1630 = vmatprep.subr.mxu0 0.0
        %v1631 = vand.u32 %v315, 4294901760
        %v1632 = vsub.f32 %v315, %v1631
        %1633 = vmatpush1.xpose.msra.mxu0 %v1632
        %1634 = vmatprep.subr.mxu0 0.0
        %v1635 = vand.u32 %v316, 4294901760
        %v1636 = vsub.f32 %v316, %v1635
        %1637 = vmatpush1.xpose.msra.mxu0 %v1636
        %1638 = vmatprep.subr.mxu0 0.0
        %v1639 = vand.u32 %v317, 4294901760
        %v1640 = vsub.f32 %v317, %v1639
        %1641 = vmatpush1.xpose.msra.mxu0 %v1640
        %1642 = vmatprep.subr.mxu0 0.0
        %v1643 = vand.u32 %v318, 4294901760
        %v1644 = vsub.f32 %v318, %v1643
        %1645 = vmatpush1.xpose.msra.mxu0 %v1644
        %1646 = vmatprep.subr.mxu0 0.0
        %v1647 = vand.u32 %v319, 4294901760
        %v1648 = vsub.f32 %v319, %v1647
        %1649 = vmatpush1.xpose.msra.mxu0 %v1648
        %1650 = vmatprep.subr.mxu0 0.0
        %v1651 = vand.u32 %v320, 4294901760
        %v1652 = vsub.f32 %v320, %v1651
        %1653 = vmatpush1.xpose.msra.mxu0 %v1652
        %1654 = vmatprep.subr.mxu0 0.0
        %v1655 = vand.u32 %v321, 4294901760
        %v1656 = vsub.f32 %v321, %v1655
        %1657 = vmatpush1.xpose.msra.mxu0 %v1656
        %1658 = vmatprep.subr.mxu0 0.0
        %v1659 = vand.u32 %v322, 4294901760
        %v1660 = vsub.f32 %v322, %v1659
        %1661 = vmatpush1.xpose.msra.mxu0 %v1660
        %1662 = vmatprep.subr.mxu0 0.0
        %v1663 = vand.u32 %v323, 4294901760
        %v1664 = vsub.f32 %v323, %v1663
        %1665 = vmatpush1.xpose.msra.mxu0 %v1664
        %1666 = vmatprep.subr.mxu0 0.0
        %v1667 = vand.u32 %v324, 4294901760
        %v1668 = vsub.f32 %v324, %v1667
        %1669 = vmatpush1.xpose.msra.mxu0 %v1668
        %1670 = vmatprep.subr.mxu0 0.0
        %v1671 = vand.u32 %v325, 4294901760
        %v1672 = vsub.f32 %v325, %v1671
        %1673 = vmatpush1.xpose.msra.mxu0 %v1672
        %1674 = vmatprep.subr.mxu0 0.0
        %v1675 = vand.u32 %v326, 4294901760
        %v1676 = vsub.f32 %v326, %v1675
        %1677 = vmatpush1.xpose.msra.mxu0 %v1676
        %1678 = vmatprep.subr.mxu0 0.0
        %v1679 = vand.u32 %v327, 4294901760
        %v1680 = vsub.f32 %v327, %v1679
        %1681 = vmatpush1.xpose.msra.mxu0 %v1680
        %1682 = vmatprep.subr.mxu0 0.0
        %v1683 = vand.u32 %v328, 4294901760
        %v1684 = vsub.f32 %v328, %v1683
        %1685 = vmatpush1.xpose.msra.mxu0 %v1684
        %1686 = vmatprep.subr.mxu0 0.0
        %v1687 = vand.u32 %v329, 4294901760
        %v1688 = vsub.f32 %v329, %v1687
        %1689 = vmatpush1.xpose.msra.mxu0 %v1688
        %1690 = vmatprep.subr.mxu0 0.0
        %v1691 = vand.u32 %v330, 4294901760
        %v1692 = vsub.f32 %v330, %v1691
        %1693 = vmatpush1.xpose.msra.mxu0 %v1692
        %1694 = vmatprep.subr.mxu0 0.0
        %v1695 = vand.u32 %v331, 4294901760
        %v1696 = vsub.f32 %v331, %v1695
        %1697 = vmatpush1.xpose.msra.mxu0 %v1696
        %1698 = vmatprep.subr.mxu0 0.0
        %v1699 = vand.u32 %v332, 4294901760
        %v1700 = vsub.f32 %v332, %v1699
        %1701 = vmatpush1.xpose.msra.mxu0 %v1700
        %1702 = vmatprep.subr.mxu0 0.0
        %v1703 = vand.u32 %v333, 4294901760
        %v1704 = vsub.f32 %v333, %v1703
        %1705 = vmatpush1.xpose.msra.mxu0 %v1704
        %1706 = vmatprep.subr.mxu0 0.0
        %v1707 = vand.u32 %v334, 4294901760
        %v1708 = vsub.f32 %v334, %v1707
        %1709 = vmatpush1.xpose.msra.mxu0 %v1708
        %1710 = vmatprep.subr.mxu0 0.0
        %v1711 = vand.u32 %v335, 4294901760
        %v1712 = vsub.f32 %v335, %v1711
        %1713 = vmatpush1.xpose.msra.mxu0 %v1712
        %1714 = vmatprep.subr.mxu0 0.0
        %v1715 = vand.u32 %v336, 4294901760
        %v1716 = vsub.f32 %v336, %v1715
        %1717 = vmatpush1.xpose.msra.mxu0 %v1716
        %1718 = vmatprep.subr.mxu0 0.0
        %v1719 = vand.u32 %v337, 4294901760
        %v1720 = vsub.f32 %v337, %v1719
        %1721 = vmatpush1.xpose.msra.mxu0 %v1720
        %1722 = vmatprep.subr.mxu0 0.0
        %v1723 = vand.u32 %v338, 4294901760
        %v1724 = vsub.f32 %v338, %v1723
        %1725 = vmatpush1.xpose.msra.mxu0 %v1724
        %1726 = vmatprep.subr.mxu0 0.0
        %v1727 = vand.u32 %v339, 4294901760
        %v1728 = vsub.f32 %v339, %v1727
        %1729 = vmatpush1.xpose.msra.mxu0 %v1728
        %1730 = vmatprep.subr.mxu0 0.0
        %v1731 = vand.u32 %v340, 4294901760
        %v1732 = vsub.f32 %v340, %v1731
        %1733 = vmatpush1.xpose.msra.mxu0 %v1732
        %1734 = vmatprep.subr.mxu0 0.0
        %v1735 = vand.u32 %v341, 4294901760
        %v1736 = vsub.f32 %v341, %v1735
        %1737 = vmatpush1.xpose.msra.mxu0 %v1736
        %1738 = vmatprep.subr.mxu0 0.0
        %v1739 = vand.u32 %v342, 4294901760
        %v1740 = vsub.f32 %v342, %v1739
        %1741 = vmatpush1.xpose.msra.mxu0 %v1740
        %1742 = vmatprep.mubr.f32.mxu0 0.0
        %v1743 = vand.u32 %v418, 4294901760
        %v1744 = vsub.f32 %v418, %v1743
        %1745 = vmatmul.mubr.f32.gmra.mrb[0].mxu0 %v1744
        %v1746 = vpop.f32.mrb[0].mxu0
        %v1747 = vadd.f32 %v1610, %v1746
        %v1748 = vpop.f32.mrb[0].mxu0
        %v1749 = vadd.f32 %v1612, %v1748
        %1750 = vdwg.mxu0
        %1751 = vmatprep.subr.mxu0 0.0
        %v1752 = vand.u32 %v311, 4294901760
        %1753 = vmatpush1.xpose.msra.mxu0 %v1752
        %1754 = vmatprep.subr.mxu0 0.0
        %v1755 = vand.u32 %v312, 4294901760
        %1756 = vmatpush1.xpose.msra.mxu0 %v1755
        %1757 = vmatprep.subr.mxu0 0.0
        %v1758 = vand.u32 %v313, 4294901760
        %1759 = vmatpush1.xpose.msra.mxu0 %v1758
        %1760 = vmatprep.subr.mxu0 0.0
        %v1761 = vand.u32 %v314, 4294901760
        %1762 = vmatpush1.xpose.msra.mxu0 %v1761
        %1763 = vmatprep.subr.mxu0 0.0
        %v1764 = vand.u32 %v315, 4294901760
        %1765 = vmatpush1.xpose.msra.mxu0 %v1764
        %1766 = vmatprep.subr.mxu0 0.0
        %v1767 = vand.u32 %v316, 4294901760
        %1768 = vmatpush1.xpose.msra.mxu0 %v1767
        %1769 = vmatprep.subr.mxu0 0.0
        %v1770 = vand.u32 %v317, 4294901760
        %1771 = vmatpush1.xpose.msra.mxu0 %v1770
        %1772 = vmatprep.subr.mxu0 0.0
        %v1773 = vand.u32 %v318, 4294901760
        %1774 = vmatpush1.xpose.msra.mxu0 %v1773
        %1775 = vmatprep.subr.mxu0 0.0
        %v1776 = vand.u32 %v319, 4294901760
        %1777 = vmatpush1.xpose.msra.mxu0 %v1776
        %1778 = vmatprep.subr.mxu0 0.0
        %v1779 = vand.u32 %v320, 4294901760
        %1780 = vmatpush1.xpose.msra.mxu0 %v1779
        %1781 = vmatprep.subr.mxu0 0.0
        %v1782 = vand.u32 %v321, 4294901760
        %1783 = vmatpush1.xpose.msra.mxu0 %v1782
        %1784 = vmatprep.subr.mxu0 0.0
        %v1785 = vand.u32 %v322, 4294901760
        %1786 = vmatpush1.xpose.msra.mxu0 %v1785
        %1787 = vmatprep.subr.mxu0 0.0
        %v1788 = vand.u32 %v323, 4294901760
        %1789 = vmatpush1.xpose.msra.mxu0 %v1788
        %1790 = vmatprep.subr.mxu0 0.0
        %v1791 = vand.u32 %v324, 4294901760
        %1792 = vmatpush1.xpose.msra.mxu0 %v1791
        %1793 = vmatprep.subr.mxu0 0.0
        %v1794 = vand.u32 %v325, 4294901760
        %1795 = vmatpush1.xpose.msra.mxu0 %v1794
        %1796 = vmatprep.subr.mxu0 0.0
        %v1797 = vand.u32 %v326, 4294901760
        %1798 = vmatpush1.xpose.msra.mxu0 %v1797
        %1799 = vmatprep.subr.mxu0 0.0
        %v1800 = vand.u32 %v327, 4294901760
        %1801 = vmatpush1.xpose.msra.mxu0 %v1800
        %1802 = vmatprep.subr.mxu0 0.0
        %v1803 = vand.u32 %v328, 4294901760
        %1804 = vmatpush1.xpose.msra.mxu0 %v1803
        %1805 = vmatprep.subr.mxu0 0.0
        %v1806 = vand.u32 %v329, 4294901760
        %1807 = vmatpush1.xpose.msra.mxu0 %v1806
        %1808 = vmatprep.subr.mxu0 0.0
        %v1809 = vand.u32 %v330, 4294901760
        %1810 = vmatpush1.xpose.msra.mxu0 %v1809
        %1811 = vmatprep.subr.mxu0 0.0
        %v1812 = vand.u32 %v331, 4294901760
        %1813 = vmatpush1.xpose.msra.mxu0 %v1812
        %1814 = vmatprep.subr.mxu0 0.0
        %v1815 = vand.u32 %v332, 4294901760
        %1816 = vmatpush1.xpose.msra.mxu0 %v1815
        %1817 = vmatprep.subr.mxu0 0.0
        %v1818 = vand.u32 %v333, 4294901760
        %1819 = vmatpush1.xpose.msra.mxu0 %v1818
        %1820 = vmatprep.subr.mxu0 0.0
        %v1821 = vand.u32 %v334, 4294901760
        %1822 = vmatpush1.xpose.msra.mxu0 %v1821
        %1823 = vmatprep.subr.mxu0 0.0
        %v1824 = vand.u32 %v335, 4294901760
        %1825 = vmatpush1.xpose.msra.mxu0 %v1824
        %1826 = vmatprep.subr.mxu0 0.0
        %v1827 = vand.u32 %v336, 4294901760
        %1828 = vmatpush1.xpose.msra.mxu0 %v1827
        %1829 = vmatprep.subr.mxu0 0.0
        %v1830 = vand.u32 %v337, 4294901760
        %1831 = vmatpush1.xpose.msra.mxu0 %v1830
        %1832 = vmatprep.subr.mxu0 0.0
        %v1833 = vand.u32 %v338, 4294901760
        %1834 = vmatpush1.xpose.msra.mxu0 %v1833
        %1835 = vmatprep.subr.mxu0 0.0
        %v1836 = vand.u32 %v339, 4294901760
        %1837 = vmatpush1.xpose.msra.mxu0 %v1836
        %1838 = vmatprep.subr.mxu0 0.0
        %v1839 = vand.u32 %v340, 4294901760
        %1840 = vmatpush1.xpose.msra.mxu0 %v1839
        %1841 = vmatprep.subr.mxu0 0.0
        %v1842 = vand.u32 %v341, 4294901760
        %1843 = vmatpush1.xpose.msra.mxu0 %v1842
        %1844 = vmatprep.subr.mxu0 0.0
        %v1845 = vand.u32 %v342, 4294901760
        %1846 = vmatpush1.xpose.msra.mxu0 %v1845
        %1847 = vmatprep.mubr.f32.mxu0 0.0
        %v1848 = vand.u32 %v418, 4294901760
        %v1849 = vsub.f32 %v418, %v1848
        %v1850 = vand.u32 %v1849, 4294901760
        %1851 = vmatmul.mubr.f32.gmra.mrb[0].mxu0 %v1850
        %v1852 = vpop.f32.mrb[0].mxu0
        %v1853 = vadd.f32 %v1747, %v1852
        %v1854 = vpop.f32.mrb[0].mxu0
        %v1855 = vadd.f32 %v1749, %v1854
        %1856 = vdwg.mxu0
        %1857 = vmatprep.subr.mxu0 0.0
        %v1858 = vand.u32 %v311, 4294901760
        %v1859 = vsub.f32 %v311, %v1858
        %v1860 = vand.u32 %v1859, 4294901760
        %1861 = vmatpush1.xpose.msra.mxu0 %v1860
        %1862 = vmatprep.subr.mxu0 0.0
        %v1863 = vand.u32 %v312, 4294901760
        %v1864 = vsub.f32 %v312, %v1863
        %v1865 = vand.u32 %v1864, 4294901760
        %1866 = vmatpush1.xpose.msra.mxu0 %v1865
        %1867 = vmatprep.subr.mxu0 0.0
        %v1868 = vand.u32 %v313, 4294901760
        %v1869 = vsub.f32 %v313, %v1868
        %v1870 = vand.u32 %v1869, 4294901760
        %1871 = vmatpush1.xpose.msra.mxu0 %v1870
        %1872 = vmatprep.subr.mxu0 0.0
        %v1873 = vand.u32 %v314, 4294901760
        %v1874 = vsub.f32 %v314, %v1873
        %v1875 = vand.u32 %v1874, 4294901760
        %1876 = vmatpush1.xpose.msra.mxu0 %v1875
        %1877 = vmatprep.subr.mxu0 0.0
        %v1878 = vand.u32 %v315, 4294901760
        %v1879 = vsub.f32 %v315, %v1878
        %v1880 = vand.u32 %v1879, 4294901760
        %1881 = vmatpush1.xpose.msra.mxu0 %v1880
        %1882 = vmatprep.subr.mxu0 0.0
        %v1883 = vand.u32 %v316, 4294901760
        %v1884 = vsub.f32 %v316, %v1883
        %v1885 = vand.u32 %v1884, 4294901760
        %1886 = vmatpush1.xpose.msra.mxu0 %v1885
        %1887 = vmatprep.subr.mxu0 0.0
        %v1888 = vand.u32 %v317, 4294901760
        %v1889 = vsub.f32 %v317, %v1888
        %v1890 = vand.u32 %v1889, 4294901760
        %1891 = vmatpush1.xpose.msra.mxu0 %v1890
        %1892 = vmatprep.subr.mxu0 0.0
        %v1893 = vand.u32 %v318, 4294901760
        %v1894 = vsub.f32 %v318, %v1893
        %v1895 = vand.u32 %v1894, 4294901760
        %1896 = vmatpush1.xpose.msra.mxu0 %v1895
        %1897 = vmatprep.subr.mxu0 0.0
        %v1898 = vand.u32 %v319, 4294901760
        %v1899 = vsub.f32 %v319, %v1898
        %v1900 = vand.u32 %v1899, 4294901760
        %1901 = vmatpush1.xpose.msra.mxu0 %v1900
        %1902 = vmatprep.subr.mxu0 0.0
        %v1903 = vand.u32 %v320, 4294901760
        %v1904 = vsub.f32 %v320, %v1903
        %v1905 = vand.u32 %v1904, 4294901760
        %1906 = vmatpush1.xpose.msra.mxu0 %v1905
        %1907 = vmatprep.subr.mxu0 0.0
        %v1908 = vand.u32 %v321, 4294901760
        %v1909 = vsub.f32 %v321, %v1908
        %v1910 = vand.u32 %v1909, 4294901760
        %1911 = vmatpush1.xpose.msra.mxu0 %v1910
        %1912 = vmatprep.subr.mxu0 0.0
        %v1913 = vand.u32 %v322, 4294901760
        %v1914 = vsub.f32 %v322, %v1913
        %v1915 = vand.u32 %v1914, 4294901760
        %1916 = vmatpush1.xpose.msra.mxu0 %v1915
        %1917 = vmatprep.subr.mxu0 0.0
        %v1918 = vand.u32 %v323, 4294901760
        %v1919 = vsub.f32 %v323, %v1918
        %v1920 = vand.u32 %v1919, 4294901760
        %1921 = vmatpush1.xpose.msra.mxu0 %v1920
        %1922 = vmatprep.subr.mxu0 0.0
        %v1923 = vand.u32 %v324, 4294901760
        %v1924 = vsub.f32 %v324, %v1923
        %v1925 = vand.u32 %v1924, 4294901760
        %1926 = vmatpush1.xpose.msra.mxu0 %v1925
        %1927 = vmatprep.subr.mxu0 0.0
        %v1928 = vand.u32 %v325, 4294901760
        %v1929 = vsub.f32 %v325, %v1928
        %v1930 = vand.u32 %v1929, 4294901760
        %1931 = vmatpush1.xpose.msra.mxu0 %v1930
        %1932 = vmatprep.subr.mxu0 0.0
        %v1933 = vand.u32 %v326, 4294901760
        %v1934 = vsub.f32 %v326, %v1933
        %v1935 = vand.u32 %v1934, 4294901760
        %1936 = vmatpush1.xpose.msra.mxu0 %v1935
        %1937 = vmatprep.subr.mxu0 0.0
        %v1938 = vand.u32 %v327, 4294901760
        %v1939 = vsub.f32 %v327, %v1938
        %v1940 = vand.u32 %v1939, 4294901760
        %1941 = vmatpush1.xpose.msra.mxu0 %v1940
        %1942 = vmatprep.subr.mxu0 0.0
        %v1943 = vand.u32 %v328, 4294901760
        %v1944 = vsub.f32 %v328, %v1943
        %v1945 = vand.u32 %v1944, 4294901760
        %1946 = vmatpush1.xpose.msra.mxu0 %v1945
        %1947 = vmatprep.subr.mxu0 0.0
        %v1948 = vand.u32 %v329, 4294901760
        %v1949 = vsub.f32 %v329, %v1948
        %v1950 = vand.u32 %v1949, 4294901760
        %1951 = vmatpush1.xpose.msra.mxu0 %v1950
        %1952 = vmatprep.subr.mxu0 0.0
        %v1953 = vand.u32 %v330, 4294901760
        %v1954 = vsub.f32 %v330, %v1953
        %v1955 = vand.u32 %v1954, 4294901760
        %1956 = vmatpush1.xpose.msra.mxu0 %v1955
        %1957 = vmatprep.subr.mxu0 0.0
        %v1958 = vand.u32 %v331, 4294901760
        %v1959 = vsub.f32 %v331, %v1958
        %v1960 = vand.u32 %v1959, 4294901760
        %1961 = vmatpush1.xpose.msra.mxu0 %v1960
        %1962 = vmatprep.subr.mxu0 0.0
        %v1963 = vand.u32 %v332, 4294901760
        %v1964 = vsub.f32 %v332, %v1963
        %v1965 = vand.u32 %v1964, 4294901760
        %1966 = vmatpush1.xpose.msra.mxu0 %v1965
        %1967 = vmatprep.subr.mxu0 0.0
        %v1968 = vand.u32 %v333, 4294901760
        %v1969 = vsub.f32 %v333, %v1968
        %v1970 = vand.u32 %v1969, 4294901760
        %1971 = vmatpush1.xpose.msra.mxu0 %v1970
        %1972 = vmatprep.subr.mxu0 0.0
        %v1973 = vand.u32 %v334, 4294901760
        %v1974 = vsub.f32 %v334, %v1973
        %v1975 = vand.u32 %v1974, 4294901760
        %1976 = vmatpush1.xpose.msra.mxu0 %v1975
        %1977 = vmatprep.subr.mxu0 0.0
        %v1978 = vand.u32 %v335, 4294901760
        %v1979 = vsub.f32 %v335, %v1978
        %v1980 = vand.u32 %v1979, 4294901760
        %1981 = vmatpush1.xpose.msra.mxu0 %v1980
        %1982 = vmatprep.subr.mxu0 0.0
        %v1983 = vand.u32 %v336, 4294901760
        %v1984 = vsub.f32 %v336, %v1983
        %v1985 = vand.u32 %v1984, 4294901760
        %1986 = vmatpush1.xpose.msra.mxu0 %v1985
        %1987 = vmatprep.subr.mxu0 0.0
        %v1988 = vand.u32 %v337, 4294901760
        %v1989 = vsub.f32 %v337, %v1988
        %v1990 = vand.u32 %v1989, 4294901760
        %1991 = vmatpush1.xpose.msra.mxu0 %v1990
        %1992 = vmatprep.subr.mxu0 0.0
        %v1993 = vand.u32 %v338, 4294901760
        %v1994 = vsub.f32 %v338, %v1993
        %v1995 = vand.u32 %v1994, 4294901760
        %1996 = vmatpush1.xpose.msra.mxu0 %v1995
        %1997 = vmatprep.subr.mxu0 0.0
        %v1998 = vand.u32 %v339, 4294901760
        %v1999 = vsub.f32 %v339, %v1998
        %v2000 = vand.u32 %v1999, 4294901760
        %2001 = vmatpush1.xpose.msra.mxu0 %v2000
        %2002 = vmatprep.subr.mxu0 0.0
        %v2003 = vand.u32 %v340, 4294901760
        %v2004 = vsub.f32 %v340, %v2003
        %v2005 = vand.u32 %v2004, 4294901760
        %2006 = vmatpush1.xpose.msra.mxu0 %v2005
        %2007 = vmatprep.subr.mxu0 0.0
        %v2008 = vand.u32 %v341, 4294901760
        %v2009 = vsub.f32 %v341, %v2008
        %v2010 = vand.u32 %v2009, 4294901760
        %2011 = vmatpush1.xpose.msra.mxu0 %v2010
        %2012 = vmatprep.subr.mxu0 0.0
        %v2013 = vand.u32 %v342, 4294901760
        %v2014 = vsub.f32 %v342, %v2013
        %v2015 = vand.u32 %v2014, 4294901760
        %2016 = vmatpush1.xpose.msra.mxu0 %v2015
        %2017 = vmatprep.mubr.f32.mxu0 0.0
        %v2018 = vand.u32 %v418, 4294901760
        %2019 = vmatmul.mubr.f32.gmra.mrb[0].mxu0 %v2018
        %v2020 = vpop.f32.mrb[0].mxu0
        %v2021 = vadd.f32 %v1853, %v2020
        %v2022 = vpop.f32.mrb[0].mxu0
        %v2023 = vadd.f32 %v1855, %v2022
        %2024 = vdwg.mxu0
        %2025 = vmatprep.subr.mxu0 0.0
        %v2026 = vand.u32 %v311, 4294901760
        %2027 = vmatpush1.xpose.msra.mxu0 %v2026
        %2028 = vmatprep.subr.mxu0 0.0
        %v2029 = vand.u32 %v312, 4294901760
        %2030 = vmatpush1.xpose.msra.mxu0 %v2029
        %2031 = vmatprep.subr.mxu0 0.0
        %v2032 = vand.u32 %v313, 4294901760
        %2033 = vmatpush1.xpose.msra.mxu0 %v2032
        %2034 = vmatprep.subr.mxu0 0.0
        %v2035 = vand.u32 %v314, 4294901760
        %2036 = vmatpush1.xpose.msra.mxu0 %v2035
        %2037 = vmatprep.subr.mxu0 0.0
        %v2038 = vand.u32 %v315, 4294901760
        %2039 = vmatpush1.xpose.msra.mxu0 %v2038
        %2040 = vmatprep.subr.mxu0 0.0
        %v2041 = vand.u32 %v316, 4294901760
        %2042 = vmatpush1.xpose.msra.mxu0 %v2041
        %2043 = vmatprep.subr.mxu0 0.0
        %v2044 = vand.u32 %v317, 4294901760
        %2045 = vmatpush1.xpose.msra.mxu0 %v2044
        %2046 = vmatprep.subr.mxu0 0.0
        %v2047 = vand.u32 %v318, 4294901760
        %2048 = vmatpush1.xpose.msra.mxu0 %v2047
        %2049 = vmatprep.subr.mxu0 0.0
        %v2050 = vand.u32 %v319, 4294901760
        %2051 = vmatpush1.xpose.msra.mxu0 %v2050
        %2052 = vmatprep.subr.mxu0 0.0
        %v2053 = vand.u32 %v320, 4294901760
        %2054 = vmatpush1.xpose.msra.mxu0 %v2053
        %2055 = vmatprep.subr.mxu0 0.0
        %v2056 = vand.u32 %v321, 4294901760
        %2057 = vmatpush1.xpose.msra.mxu0 %v2056
        %2058 = vmatprep.subr.mxu0 0.0
        %v2059 = vand.u32 %v322, 4294901760
        %2060 = vmatpush1.xpose.msra.mxu0 %v2059
        %2061 = vmatprep.subr.mxu0 0.0
        %v2062 = vand.u32 %v323, 4294901760
        %2063 = vmatpush1.xpose.msra.mxu0 %v2062
        %2064 = vmatprep.subr.mxu0 0.0
        %v2065 = vand.u32 %v324, 4294901760
        %2066 = vmatpush1.xpose.msra.mxu0 %v2065
        %2067 = vmatprep.subr.mxu0 0.0
        %v2068 = vand.u32 %v325, 4294901760
        %2069 = vmatpush1.xpose.msra.mxu0 %v2068
        %2070 = vmatprep.subr.mxu0 0.0
        %v2071 = vand.u32 %v326, 4294901760
        %2072 = vmatpush1.xpose.msra.mxu0 %v2071
        %2073 = vmatprep.subr.mxu0 0.0
        %v2074 = vand.u32 %v327, 4294901760
        %2075 = vmatpush1.xpose.msra.mxu0 %v2074
        %2076 = vmatprep.subr.mxu0 0.0
        %v2077 = vand.u32 %v328, 4294901760
        %2078 = vmatpush1.xpose.msra.mxu0 %v2077
        %2079 = vmatprep.subr.mxu0 0.0
        %v2080 = vand.u32 %v329, 4294901760
        %2081 = vmatpush1.xpose.msra.mxu0 %v2080
        %2082 = vmatprep.subr.mxu0 0.0
        %v2083 = vand.u32 %v330, 4294901760
        %2084 = vmatpush1.xpose.msra.mxu0 %v2083
        %2085 = vmatprep.subr.mxu0 0.0
        %v2086 = vand.u32 %v331, 4294901760
        %2087 = vmatpush1.xpose.msra.mxu0 %v2086
        %2088 = vmatprep.subr.mxu0 0.0
        %v2089 = vand.u32 %v332, 4294901760
        %2090 = vmatpush1.xpose.msra.mxu0 %v2089
        %2091 = vmatprep.subr.mxu0 0.0
        %v2092 = vand.u32 %v333, 4294901760
        %2093 = vmatpush1.xpose.msra.mxu0 %v2092
        %2094 = vmatprep.subr.mxu0 0.0
        %v2095 = vand.u32 %v334, 4294901760
        %2096 = vmatpush1.xpose.msra.mxu0 %v2095
        %2097 = vmatprep.subr.mxu0 0.0
        %v2098 = vand.u32 %v335, 4294901760
        %2099 = vmatpush1.xpose.msra.mxu0 %v2098
        %2100 = vmatprep.subr.mxu0 0.0
        %v2101 = vand.u32 %v336, 4294901760
        %2102 = vmatpush1.xpose.msra.mxu0 %v2101
        %2103 = vmatprep.subr.mxu0 0.0
        %v2104 = vand.u32 %v337, 4294901760
        %2105 = vmatpush1.xpose.msra.mxu0 %v2104
        %2106 = vmatprep.subr.mxu0 0.0
        %v2107 = vand.u32 %v338, 4294901760
        %2108 = vmatpush1.xpose.msra.mxu0 %v2107
        %2109 = vmatprep.subr.mxu0 0.0
        %v2110 = vand.u32 %v339, 4294901760
        %2111 = vmatpush1.xpose.msra.mxu0 %v2110
        %2112 = vmatprep.subr.mxu0 0.0
        %v2113 = vand.u32 %v340, 4294901760
        %2114 = vmatpush1.xpose.msra.mxu0 %v2113
        %2115 = vmatprep.subr.mxu0 0.0
        %v2116 = vand.u32 %v341, 4294901760
        %2117 = vmatpush1.xpose.msra.mxu0 %v2116
        %2118 = vmatprep.subr.mxu0 0.0
        %v2119 = vand.u32 %v342, 4294901760
        %2120 = vmatpush1.xpose.msra.mxu0 %v2119
        %2121 = vmatprep.mubr.f32.mxu0 0.0
        %v2122 = vand.u32 %v418, 4294901760
        %2123 = vmatmul.mubr.f32.gmra.mrb[0].mxu0 %v2122
        %v2124 = vpop.f32.mrb[0].mxu0
        %v2125 = vadd.f32 %v2021, %v2124
        %v2126 = vpop.f32.mrb[0].mxu0
        %v2127 = vadd.f32 %v2023, %v2126
        %2128 = vdwg.mxu0
        %2129 = vmatprep.subr.mxu0 0.0
        %v2130 = vand.u32 %v343, 4294901760
        %2131 = vmatpush1.xpose.msra.mxu0 %v2130
        %2132 = vmatprep.subr.mxu0 0.0
        %v2133 = vand.u32 %v344, 4294901760
        %2134 = vmatpush1.xpose.msra.mxu0 %v2133
        %2135 = vmatprep.subr.mxu0 0.0
        %v2136 = vand.u32 %v345, 4294901760
        %2137 = vmatpush1.xpose.msra.mxu0 %v2136
        %2138 = vmatprep.subr.mxu0 0.0
        %v2139 = vand.u32 %v346, 4294901760
        %2140 = vmatpush1.xpose.msra.mxu0 %v2139
        %2141 = vmatprep.subr.mxu0 0.0
        %v2142 = vand.u32 %v347, 4294901760
        %2143 = vmatpush1.xpose.msra.mxu0 %v2142
        %2144 = vmatprep.subr.mxu0 0.0
        %v2145 = vand.u32 %v348, 4294901760
        %2146 = vmatpush1.xpose.msra.mxu0 %v2145
        %2147 = vmatprep.subr.mxu0 0.0
        %v2148 = vand.u32 %v349, 4294901760
        %2149 = vmatpush1.xpose.msra.mxu0 %v2148
        %2150 = vmatprep.subr.mxu0 0.0
        %v2151 = vand.u32 %v350, 4294901760
        %2152 = vmatpush1.xpose.msra.mxu0 %v2151
        %2153 = vmatprep.subr.mxu0 0.0
        %v2154 = vand.u32 %v351, 4294901760
        %2155 = vmatpush1.xpose.msra.mxu0 %v2154
        %2156 = vmatprep.subr.mxu0 0.0
        %v2157 = vand.u32 %v352, 4294901760
        %2158 = vmatpush1.xpose.msra.mxu0 %v2157
        %2159 = vmatprep.subr.mxu0 0.0
        %v2160 = vand.u32 %v353, 4294901760
        %2161 = vmatpush1.xpose.msra.mxu0 %v2160
        %2162 = vmatprep.subr.mxu0 0.0
        %v2163 = vand.u32 %v354, 4294901760
        %2164 = vmatpush1.xpose.msra.mxu0 %v2163
        %2165 = vmatprep.subr.mxu0 0.0
        %v2166 = vand.u32 %v355, 4294901760
        %2167 = vmatpush1.xpose.msra.mxu0 %v2166
        %2168 = vmatprep.subr.mxu0 0.0
        %v2169 = vand.u32 %v356, 4294901760
        %2170 = vmatpush1.xpose.msra.mxu0 %v2169
        %2171 = vmatprep.subr.mxu0 0.0
        %v2172 = vand.u32 %v357, 4294901760
        %2173 = vmatpush1.xpose.msra.mxu0 %v2172
        %2174 = vmatprep.subr.mxu0 0.0
        %v2175 = vand.u32 %v358, 4294901760
        %2176 = vmatpush1.xpose.msra.mxu0 %v2175
        %2177 = vmatprep.subr.mxu0 0.0
        %v2178 = vand.u32 %v359, 4294901760
        %2179 = vmatpush1.xpose.msra.mxu0 %v2178
        %2180 = vmatprep.subr.mxu0 0.0
        %v2181 = vand.u32 %v360, 4294901760
        %2182 = vmatpush1.xpose.msra.mxu0 %v2181
        %2183 = vmatprep.subr.mxu0 0.0
        %v2184 = vand.u32 %v361, 4294901760
        %2185 = vmatpush1.xpose.msra.mxu0 %v2184
        %2186 = vmatprep.subr.mxu0 0.0
        %v2187 = vand.u32 %v362, 4294901760
        %2188 = vmatpush1.xpose.msra.mxu0 %v2187
        %2189 = vmatprep.subr.mxu0 0.0
        %v2190 = vand.u32 %v363, 4294901760
        %2191 = vmatpush1.xpose.msra.mxu0 %v2190
        %2192 = vmatprep.subr.mxu0 0.0
        %v2193 = vand.u32 %v364, 4294901760
        %2194 = vmatpush1.xpose.msra.mxu0 %v2193
        %2195 = vmatprep.subr.mxu0 0.0
        %v2196 = vand.u32 %v365, 4294901760
        %2197 = vmatpush1.xpose.msra.mxu0 %v2196
        %2198 = vmatprep.subr.mxu0 0.0
        %v2199 = vand.u32 %v366, 4294901760
        %2200 = vmatpush1.xpose.msra.mxu0 %v2199
        %2201 = vmatprep.subr.mxu0 0.0
        %v2202 = vand.u32 %v367, 4294901760
        %2203 = vmatpush1.xpose.msra.mxu0 %v2202
        %2204 = vmatprep.subr.mxu0 0.0
        %v2205 = vand.u32 %v368, 4294901760
        %2206 = vmatpush1.xpose.msra.mxu0 %v2205
        %2207 = vmatprep.subr.mxu0 0.0
        %v2208 = vand.u32 %v369, 4294901760
        %2209 = vmatpush1.xpose.msra.mxu0 %v2208
        %2210 = vmatprep.subr.mxu0 0.0
        %v2211 = vand.u32 %v370, 4294901760
        %2212 = vmatpush1.xpose.msra.mxu0 %v2211
        %2213 = vmatprep.subr.mxu0 0.0
        %v2214 = vand.u32 %v371, 4294901760
        %2215 = vmatpush1.xpose.msra.mxu0 %v2214
        %2216 = vmatprep.subr.mxu0 0.0
        %v2217 = vand.u32 %v372, 4294901760
        %2218 = vmatpush1.xpose.msra.mxu0 %v2217
        %2219 = vmatprep.subr.mxu0 0.0
        %v2220 = vand.u32 %v373, 4294901760
        %2221 = vmatpush1.xpose.msra.mxu0 %v2220
        %2222 = vmatprep.subr.mxu0 0.0
        %v2223 = vand.u32 %v374, 4294901760
        %2224 = vmatpush1.xpose.msra.mxu0 %v2223
        %2225 = vmatprep.mubr.f32.mxu0 0.0
        %v2226 = vand.u32 %v418, 4294901760
        %v2227 = vsub.f32 %v418, %v2226
        %v2228 = vand.u32 %v2227, 4294901760
        %v2229 = vsub.f32 %v2227, %v2228
        %v2230 = vand.u32 %v2229, 4294901760
        %2231 = vmatmul.mubr.f32.gmra.mrb[0].mxu0 %v2230
        %v2232 = vpop.f32.mrb[0].mxu0
        %v2233 = vadd.f32 0.0, %v2232
        %v2234 = vpop.f32.mrb[0].mxu0
        %v2235 = vadd.f32 0.0, %v2234
        %2236 = vdwg.mxu0
        %2237 = vmatprep.subr.mxu0 0.0
        %v2238 = vand.u32 %v343, 4294901760
        %v2239 = vsub.f32 %v343, %v2238
        %v2240 = vand.u32 %v2239, 4294901760
        %v2241 = vsub.f32 %v2239, %v2240
        %v2242 = vand.u32 %v2241, 4294901760
        %2243 = vmatpush1.xpose.msra.mxu0 %v2242
        %2244 = vmatprep.subr.mxu0 0.0
        %v2245 = vand.u32 %v344, 4294901760
        %v2246 = vsub.f32 %v344, %v2245
        %v2247 = vand.u32 %v2246, 4294901760
        %v2248 = vsub.f32 %v2246, %v2247
        %v2249 = vand.u32 %v2248, 4294901760
        %2250 = vmatpush1.xpose.msra.mxu0 %v2249
        %2251 = vmatprep.subr.mxu0 0.0
        %v2252 = vand.u32 %v345, 4294901760
        %v2253 = vsub.f32 %v345, %v2252
        %v2254 = vand.u32 %v2253, 4294901760
        %v2255 = vsub.f32 %v2253, %v2254
        %v2256 = vand.u32 %v2255, 4294901760
        %2257 = vmatpush1.xpose.msra.mxu0 %v2256
        %2258 = vmatprep.subr.mxu0 0.0
        %v2259 = vand.u32 %v346, 4294901760
        %v2260 = vsub.f32 %v346, %v2259
        %v2261 = vand.u32 %v2260, 4294901760
        %v2262 = vsub.f32 %v2260, %v2261
        %v2263 = vand.u32 %v2262, 4294901760
        %2264 = vmatpush1.xpose.msra.mxu0 %v2263
        %2265 = vmatprep.subr.mxu0 0.0
        %v2266 = vand.u32 %v347, 4294901760
        %v2267 = vsub.f32 %v347, %v2266
        %v2268 = vand.u32 %v2267, 4294901760
        %v2269 = vsub.f32 %v2267, %v2268
        %v2270 = vand.u32 %v2269, 4294901760
        %2271 = vmatpush1.xpose.msra.mxu0 %v2270
        %2272 = vmatprep.subr.mxu0 0.0
        %v2273 = vand.u32 %v348, 4294901760
        %v2274 = vsub.f32 %v348, %v2273
        %v2275 = vand.u32 %v2274, 4294901760
        %v2276 = vsub.f32 %v2274, %v2275
        %v2277 = vand.u32 %v2276, 4294901760
        %2278 = vmatpush1.xpose.msra.mxu0 %v2277
        %2279 = vmatprep.subr.mxu0 0.0
        %v2280 = vand.u32 %v349, 4294901760
        %v2281 = vsub.f32 %v349, %v2280
        %v2282 = vand.u32 %v2281, 4294901760
        %v2283 = vsub.f32 %v2281, %v2282
        %v2284 = vand.u32 %v2283, 4294901760
        %2285 = vmatpush1.xpose.msra.mxu0 %v2284
        %2286 = vmatprep.subr.mxu0 0.0
        %v2287 = vand.u32 %v350, 4294901760
        %v2288 = vsub.f32 %v350, %v2287
        %v2289 = vand.u32 %v2288, 4294901760
        %v2290 = vsub.f32 %v2288, %v2289
        %v2291 = vand.u32 %v2290, 4294901760
        %2292 = vmatpush1.xpose.msra.mxu0 %v2291
        %2293 = vmatprep.subr.mxu0 0.0
        %v2294 = vand.u32 %v351, 4294901760
        %v2295 = vsub.f32 %v351, %v2294
        %v2296 = vand.u32 %v2295, 4294901760
        %v2297 = vsub.f32 %v2295, %v2296
        %v2298 = vand.u32 %v2297, 4294901760
        %2299 = vmatpush1.xpose.msra.mxu0 %v2298
        %2300 = vmatprep.subr.mxu0 0.0
        %v2301 = vand.u32 %v352, 4294901760
        %v2302 = vsub.f32 %v352, %v2301
        %v2303 = vand.u32 %v2302, 4294901760
        %v2304 = vsub.f32 %v2302, %v2303
        %v2305 = vand.u32 %v2304, 4294901760
        %2306 = vmatpush1.xpose.msra.mxu0 %v2305
        %2307 = vmatprep.subr.mxu0 0.0
        %v2308 = vand.u32 %v353, 4294901760
        %v2309 = vsub.f32 %v353, %v2308
        %v2310 = vand.u32 %v2309, 4294901760
        %v2311 = vsub.f32 %v2309, %v2310
        %v2312 = vand.u32 %v2311, 4294901760
        %2313 = vmatpush1.xpose.msra.mxu0 %v2312
        %2314 = vmatprep.subr.mxu0 0.0
        %v2315 = vand.u32 %v354, 4294901760
        %v2316 = vsub.f32 %v354, %v2315
        %v2317 = vand.u32 %v2316, 4294901760
        %v2318 = vsub.f32 %v2316, %v2317
        %v2319 = vand.u32 %v2318, 4294901760
        %2320 = vmatpush1.xpose.msra.mxu0 %v2319
        %2321 = vmatprep.subr.mxu0 0.0
        %v2322 = vand.u32 %v355, 4294901760
        %v2323 = vsub.f32 %v355, %v2322
        %v2324 = vand.u32 %v2323, 4294901760
        %v2325 = vsub.f32 %v2323, %v2324
        %v2326 = vand.u32 %v2325, 4294901760
        %2327 = vmatpush1.xpose.msra.mxu0 %v2326
        %2328 = vmatprep.subr.mxu0 0.0
        %v2329 = vand.u32 %v356, 4294901760
        %v2330 = vsub.f32 %v356, %v2329
        %v2331 = vand.u32 %v2330, 4294901760
        %v2332 = vsub.f32 %v2330, %v2331
        %v2333 = vand.u32 %v2332, 4294901760
        %2334 = vmatpush1.xpose.msra.mxu0 %v2333
        %2335 = vmatprep.subr.mxu0 0.0
        %v2336 = vand.u32 %v357, 4294901760
        %v2337 = vsub.f32 %v357, %v2336
        %v2338 = vand.u32 %v2337, 4294901760
        %v2339 = vsub.f32 %v2337, %v2338
        %v2340 = vand.u32 %v2339, 4294901760
        %2341 = vmatpush1.xpose.msra.mxu0 %v2340
        %2342 = vmatprep.subr.mxu0 0.0
        %v2343 = vand.u32 %v358, 4294901760
        %v2344 = vsub.f32 %v358, %v2343
        %v2345 = vand.u32 %v2344, 4294901760
        %v2346 = vsub.f32 %v2344, %v2345
        %v2347 = vand.u32 %v2346, 4294901760
        %2348 = vmatpush1.xpose.msra.mxu0 %v2347
        %2349 = vmatprep.subr.mxu0 0.0
        %v2350 = vand.u32 %v359, 4294901760
        %v2351 = vsub.f32 %v359, %v2350
        %v2352 = vand.u32 %v2351, 4294901760
        %v2353 = vsub.f32 %v2351, %v2352
        %v2354 = vand.u32 %v2353, 4294901760
        %2355 = vmatpush1.xpose.msra.mxu0 %v2354
        %2356 = vmatprep.subr.mxu0 0.0
        %v2357 = vand.u32 %v360, 4294901760
        %v2358 = vsub.f32 %v360, %v2357
        %v2359 = vand.u32 %v2358, 4294901760
        %v2360 = vsub.f32 %v2358, %v2359
        %v2361 = vand.u32 %v2360, 4294901760
        %2362 = vmatpush1.xpose.msra.mxu0 %v2361
        %2363 = vmatprep.subr.mxu0 0.0
        %v2364 = vand.u32 %v361, 4294901760
        %v2365 = vsub.f32 %v361, %v2364
        %v2366 = vand.u32 %v2365, 4294901760
        %v2367 = vsub.f32 %v2365, %v2366
        %v2368 = vand.u32 %v2367, 4294901760
        %2369 = vmatpush1.xpose.msra.mxu0 %v2368
        %2370 = vmatprep.subr.mxu0 0.0
        %v2371 = vand.u32 %v362, 4294901760
        %v2372 = vsub.f32 %v362, %v2371
        %v2373 = vand.u32 %v2372, 4294901760
        %v2374 = vsub.f32 %v2372, %v2373
        %v2375 = vand.u32 %v2374, 4294901760
        %2376 = vmatpush1.xpose.msra.mxu0 %v2375
        %2377 = vmatprep.subr.mxu0 0.0
        %v2378 = vand.u32 %v363, 4294901760
        %v2379 = vsub.f32 %v363, %v2378
        %v2380 = vand.u32 %v2379, 4294901760
        %v2381 = vsub.f32 %v2379, %v2380
        %v2382 = vand.u32 %v2381, 4294901760
        %2383 = vmatpush1.xpose.msra.mxu0 %v2382
        %2384 = vmatprep.subr.mxu0 0.0
        %v2385 = vand.u32 %v364, 4294901760
        %v2386 = vsub.f32 %v364, %v2385
        %v2387 = vand.u32 %v2386, 4294901760
        %v2388 = vsub.f32 %v2386, %v2387
        %v2389 = vand.u32 %v2388, 4294901760
        %2390 = vmatpush1.xpose.msra.mxu0 %v2389
        %2391 = vmatprep.subr.mxu0 0.0
        %v2392 = vand.u32 %v365, 4294901760
        %v2393 = vsub.f32 %v365, %v2392
        %v2394 = vand.u32 %v2393, 4294901760
        %v2395 = vsub.f32 %v2393, %v2394
        %v2396 = vand.u32 %v2395, 4294901760
        %2397 = vmatpush1.xpose.msra.mxu0 %v2396
        %2398 = vmatprep.subr.mxu0 0.0
        %v2399 = vand.u32 %v366, 4294901760
        %v2400 = vsub.f32 %v366, %v2399
        %v2401 = vand.u32 %v2400, 4294901760
        %v2402 = vsub.f32 %v2400, %v2401
        %v2403 = vand.u32 %v2402, 4294901760
        %2404 = vmatpush1.xpose.msra.mxu0 %v2403
        %2405 = vmatprep.subr.mxu0 0.0
        %v2406 = vand.u32 %v367, 4294901760
        %v2407 = vsub.f32 %v367, %v2406
        %v2408 = vand.u32 %v2407, 4294901760
        %v2409 = vsub.f32 %v2407, %v2408
        %v2410 = vand.u32 %v2409, 4294901760
        %2411 = vmatpush1.xpose.msra.mxu0 %v2410
        %2412 = vmatprep.subr.mxu0 0.0
        %v2413 = vand.u32 %v368, 4294901760
        %v2414 = vsub.f32 %v368, %v2413
        %v2415 = vand.u32 %v2414, 4294901760
        %v2416 = vsub.f32 %v2414, %v2415
        %v2417 = vand.u32 %v2416, 4294901760
        %2418 = vmatpush1.xpose.msra.mxu0 %v2417
        %2419 = vmatprep.subr.mxu0 0.0
        %v2420 = vand.u32 %v369, 4294901760
        %v2421 = vsub.f32 %v369, %v2420
        %v2422 = vand.u32 %v2421, 4294901760
        %v2423 = vsub.f32 %v2421, %v2422
        %v2424 = vand.u32 %v2423, 4294901760
        %2425 = vmatpush1.xpose.msra.mxu0 %v2424
        %2426 = vmatprep.subr.mxu0 0.0
        %v2427 = vand.u32 %v370, 4294901760
        %v2428 = vsub.f32 %v370, %v2427
        %v2429 = vand.u32 %v2428, 4294901760
        %v2430 = vsub.f32 %v2428, %v2429
        %v2431 = vand.u32 %v2430, 4294901760
        %2432 = vmatpush1.xpose.msra.mxu0 %v2431
        %2433 = vmatprep.subr.mxu0 0.0
        %v2434 = vand.u32 %v371, 4294901760
        %v2435 = vsub.f32 %v371, %v2434
        %v2436 = vand.u32 %v2435, 4294901760
        %v2437 = vsub.f32 %v2435, %v2436
        %v2438 = vand.u32 %v2437, 4294901760
        %2439 = vmatpush1.xpose.msra.mxu0 %v2438
        %2440 = vmatprep.subr.mxu0 0.0
        %v2441 = vand.u32 %v372, 4294901760
        %v2442 = vsub.f32 %v372, %v2441
        %v2443 = vand.u32 %v2442, 4294901760
        %v2444 = vsub.f32 %v2442, %v2443
        %v2445 = vand.u32 %v2444, 4294901760
        %2446 = vmatpush1.xpose.msra.mxu0 %v2445
        %2447 = vmatprep.subr.mxu0 0.0
        %v2448 = vand.u32 %v373, 4294901760
        %v2449 = vsub.f32 %v373, %v2448
        %v2450 = vand.u32 %v2449, 4294901760
        %v2451 = vsub.f32 %v2449, %v2450
        %v2452 = vand.u32 %v2451, 4294901760
        %2453 = vmatpush1.xpose.msra.mxu0 %v2452
        %2454 = vmatprep.subr.mxu0 0.0
        %v2455 = vand.u32 %v374, 4294901760
        %v2456 = vsub.f32 %v374, %v2455
        %v2457 = vand.u32 %v2456, 4294901760
        %v2458 = vsub.f32 %v2456, %v2457
        %v2459 = vand.u32 %v2458, 4294901760
        %2460 = vmatpush1.xpose.msra.mxu0 %v2459
        %2461 = vmatprep.mubr.f32.mxu0 0.0
        %v2462 = vand.u32 %v418, 4294901760
        %2463 = vmatmul.mubr.f32.gmra.mrb[0].mxu0 %v2462
        %v2464 = vpop.f32.mrb[0].mxu0
        %v2465 = vadd.f32 %v2233, %v2464
        %v2466 = vpop.f32.mrb[0].mxu0
        %v2467 = vadd.f32 %v2235, %v2466
        %2468 = vdwg.mxu0
        %2469 = vmatprep.subr.mxu0 0.0
        %v2470 = vand.u32 %v343, 4294901760
        %v2471 = vsub.f32 %v343, %v2470
        %2472 = vmatpush1.xpose.msra.mxu0 %v2471
        %2473 = vmatprep.subr.mxu0 0.0
        %v2474 = vand.u32 %v344, 4294901760
        %v2475 = vsub.f32 %v344, %v2474
        %2476 = vmatpush1.xpose.msra.mxu0 %v2475
        %2477 = vmatprep.subr.mxu0 0.0
        %v2478 = vand.u32 %v345, 4294901760
        %v2479 = vsub.f32 %v345, %v2478
        %2480 = vmatpush1.xpose.msra.mxu0 %v2479
        %2481 = vmatprep.subr.mxu0 0.0
        %v2482 = vand.u32 %v346, 4294901760
        %v2483 = vsub.f32 %v346, %v2482
        %2484 = vmatpush1.xpose.msra.mxu0 %v2483
        %2485 = vmatprep.subr.mxu0 0.0
        %v2486 = vand.u32 %v347, 4294901760
        %v2487 = vsub.f32 %v347, %v2486
        %2488 = vmatpush1.xpose.msra.mxu0 %v2487
        %2489 = vmatprep.subr.mxu0 0.0
        %v2490 = vand.u32 %v348, 4294901760
        %v2491 = vsub.f32 %v348, %v2490
        %2492 = vmatpush1.xpose.msra.mxu0 %v2491
        %2493 = vmatprep.subr.mxu0 0.0
        %v2494 = vand.u32 %v349, 4294901760
        %v2495 = vsub.f32 %v349, %v2494
        %2496 = vmatpush1.xpose.msra.mxu0 %v2495
        %2497 = vmatprep.subr.mxu0 0.0
        %v2498 = vand.u32 %v350, 4294901760
        %v2499 = vsub.f32 %v350, %v2498
        %2500 = vmatpush1.xpose.msra.mxu0 %v2499
        %2501 = vmatprep.subr.mxu0 0.0
        %v2502 = vand.u32 %v351, 4294901760
        %v2503 = vsub.f32 %v351, %v2502
        %2504 = vmatpush1.xpose.msra.mxu0 %v2503
        %2505 = vmatprep.subr.mxu0 0.0
        %v2506 = vand.u32 %v352, 4294901760
        %v2507 = vsub.f32 %v352, %v2506
        %2508 = vmatpush1.xpose.msra.mxu0 %v2507
        %2509 = vmatprep.subr.mxu0 0.0
        %v2510 = vand.u32 %v353, 4294901760
        %v2511 = vsub.f32 %v353, %v2510
        %2512 = vmatpush1.xpose.msra.mxu0 %v2511
        %2513 = vmatprep.subr.mxu0 0.0
        %v2514 = vand.u32 %v354, 4294901760
        %v2515 = vsub.f32 %v354, %v2514
        %2516 = vmatpush1.xpose.msra.mxu0 %v2515
        %2517 = vmatprep.subr.mxu0 0.0
        %v2518 = vand.u32 %v355, 4294901760
        %v2519 = vsub.f32 %v355, %v2518
        %2520 = vmatpush1.xpose.msra.mxu0 %v2519
        %2521 = vmatprep.subr.mxu0 0.0
        %v2522 = vand.u32 %v356, 4294901760
        %v2523 = vsub.f32 %v356, %v2522
        %2524 = vmatpush1.xpose.msra.mxu0 %v2523
        %2525 = vmatprep.subr.mxu0 0.0
        %v2526 = vand.u32 %v357, 4294901760
        %v2527 = vsub.f32 %v357, %v2526
        %2528 = vmatpush1.xpose.msra.mxu0 %v2527
        %2529 = vmatprep.subr.mxu0 0.0
        %v2530 = vand.u32 %v358, 4294901760
        %v2531 = vsub.f32 %v358, %v2530
        %2532 = vmatpush1.xpose.msra.mxu0 %v2531
        %2533 = vmatprep.subr.mxu0 0.0
        %v2534 = vand.u32 %v359, 4294901760
        %v2535 = vsub.f32 %v359, %v2534
        %2536 = vmatpush1.xpose.msra.mxu0 %v2535
        %2537 = vmatprep.subr.mxu0 0.0
        %v2538 = vand.u32 %v360, 4294901760
        %v2539 = vsub.f32 %v360, %v2538
        %2540 = vmatpush1.xpose.msra.mxu0 %v2539
        %2541 = vmatprep.subr.mxu0 0.0
        %v2542 = vand.u32 %v361, 4294901760
        %v2543 = vsub.f32 %v361, %v2542
        %2544 = vmatpush1.xpose.msra.mxu0 %v2543
        %2545 = vmatprep.subr.mxu0 0.0
        %v2546 = vand.u32 %v362, 4294901760
        %v2547 = vsub.f32 %v362, %v2546
        %2548 = vmatpush1.xpose.msra.mxu0 %v2547
        %2549 = vmatprep.subr.mxu0 0.0
        %v2550 = vand.u32 %v363, 4294901760
        %v2551 = vsub.f32 %v363, %v2550
        %2552 = vmatpush1.xpose.msra.mxu0 %v2551
        %2553 = vmatprep.subr.mxu0 0.0
        %v2554 = vand.u32 %v364, 4294901760
        %v2555 = vsub.f32 %v364, %v2554
        %2556 = vmatpush1.xpose.msra.mxu0 %v2555
        %2557 = vmatprep.subr.mxu0 0.0
        %v2558 = vand.u32 %v365, 4294901760
        %v2559 = vsub.f32 %v365, %v2558
        %2560 = vmatpush1.xpose.msra.mxu0 %v2559
        %2561 = vmatprep.subr.mxu0 0.0
        %v2562 = vand.u32 %v366, 4294901760
        %v2563 = vsub.f32 %v366, %v2562
        %2564 = vmatpush1.xpose.msra.mxu0 %v2563
        %2565 = vmatprep.subr.mxu0 0.0
        %v2566 = vand.u32 %v367, 4294901760
        %v2567 = vsub.f32 %v367, %v2566
        %2568 = vmatpush1.xpose.msra.mxu0 %v2567
        %2569 = vmatprep.subr.mxu0 0.0
        %v2570 = vand.u32 %v368, 4294901760
        %v2571 = vsub.f32 %v368, %v2570
        %2572 = vmatpush1.xpose.msra.mxu0 %v2571
        %2573 = vmatprep.subr.mxu0 0.0
        %v2574 = vand.u32 %v369, 4294901760
        %v2575 = vsub.f32 %v369, %v2574
        %2576 = vmatpush1.xpose.msra.mxu0 %v2575
        %2577 = vmatprep.subr.mxu0 0.0
        %v2578 = vand.u32 %v370, 4294901760
        %v2579 = vsub.f32 %v370, %v2578
        %2580 = vmatpush1.xpose.msra.mxu0 %v2579
        %2581 = vmatprep.subr.mxu0 0.0
        %v2582 = vand.u32 %v371, 4294901760
        %v2583 = vsub.f32 %v371, %v2582
        %2584 = vmatpush1.xpose.msra.mxu0 %v2583
        %2585 = vmatprep.subr.mxu0 0.0
        %v2586 = vand.u32 %v372, 4294901760
        %v2587 = vsub.f32 %v372, %v2586
        %2588 = vmatpush1.xpose.msra.mxu0 %v2587
        %2589 = vmatprep.subr.mxu0 0.0
        %v2590 = vand.u32 %v373, 4294901760
        %v2591 = vsub.f32 %v373, %v2590
        %2592 = vmatpush1.xpose.msra.mxu0 %v2591
        %2593 = vmatprep.subr.mxu0 0.0
        %v2594 = vand.u32 %v374, 4294901760
        %v2595 = vsub.f32 %v374, %v2594
        %2596 = vmatpush1.xpose.msra.mxu0 %v2595
        %2597 = vmatprep.mubr.f32.mxu0 0.0
        %v2598 = vand.u32 %v418, 4294901760
        %v2599 = vsub.f32 %v418, %v2598
        %2600 = vmatmul.mubr.f32.gmra.mrb[0].mxu0 %v2599
        %v2601 = vpop.f32.mrb[0].mxu0
        %v2602 = vadd.f32 %v2465, %v2601
        %v2603 = vpop.f32.mrb[0].mxu0
        %v2604 = vadd.f32 %v2467, %v2603
        %2605 = vdwg.mxu0
        %2606 = vmatprep.subr.mxu0 0.0
        %v2607 = vand.u32 %v343, 4294901760
        %2608 = vmatpush1.xpose.msra.mxu0 %v2607
        %2609 = vmatprep.subr.mxu0 0.0
        %v2610 = vand.u32 %v344, 4294901760
        %2611 = vmatpush1.xpose.msra.mxu0 %v2610
        %2612 = vmatprep.subr.mxu0 0.0
        %v2613 = vand.u32 %v345, 4294901760
        %2614 = vmatpush1.xpose.msra.mxu0 %v2613
        %2615 = vmatprep.subr.mxu0 0.0
        %v2616 = vand.u32 %v346, 4294901760
        %2617 = vmatpush1.xpose.msra.mxu0 %v2616
        %2618 = vmatprep.subr.mxu0 0.0
        %v2619 = vand.u32 %v347, 4294901760
        %2620 = vmatpush1.xpose.msra.mxu0 %v2619
        %2621 = vmatprep.subr.mxu0 0.0
        %v2622 = vand.u32 %v348, 4294901760
        %2623 = vmatpush1.xpose.msra.mxu0 %v2622
        %2624 = vmatprep.subr.mxu0 0.0
        %v2625 = vand.u32 %v349, 4294901760
        %2626 = vmatpush1.xpose.msra.mxu0 %v2625
        %2627 = vmatprep.subr.mxu0 0.0
        %v2628 = vand.u32 %v350, 4294901760
        %2629 = vmatpush1.xpose.msra.mxu0 %v2628
        %2630 = vmatprep.subr.mxu0 0.0
        %v2631 = vand.u32 %v351, 4294901760
        %2632 = vmatpush1.xpose.msra.mxu0 %v2631
        %2633 = vmatprep.subr.mxu0 0.0
        %v2634 = vand.u32 %v352, 4294901760
        %2635 = vmatpush1.xpose.msra.mxu0 %v2634
        %2636 = vmatprep.subr.mxu0 0.0
        %v2637 = vand.u32 %v353, 4294901760
        %2638 = vmatpush1.xpose.msra.mxu0 %v2637
        %2639 = vmatprep.subr.mxu0 0.0
        %v2640 = vand.u32 %v354, 4294901760
        %2641 = vmatpush1.xpose.msra.mxu0 %v2640
        %2642 = vmatprep.subr.mxu0 0.0
        %v2643 = vand.u32 %v355, 4294901760
        %2644 = vmatpush1.xpose.msra.mxu0 %v2643
        %2645 = vmatprep.subr.mxu0 0.0
        %v2646 = vand.u32 %v356, 4294901760
        %2647 = vmatpush1.xpose.msra.mxu0 %v2646
        %2648 = vmatprep.subr.mxu0 0.0
        %v2649 = vand.u32 %v357, 4294901760
        %2650 = vmatpush1.xpose.msra.mxu0 %v2649
        %2651 = vmatprep.subr.mxu0 0.0
        %v2652 = vand.u32 %v358, 4294901760
        %2653 = vmatpush1.xpose.msra.mxu0 %v2652
        %2654 = vmatprep.subr.mxu0 0.0
        %v2655 = vand.u32 %v359, 4294901760
        %2656 = vmatpush1.xpose.msra.mxu0 %v2655
        %2657 = vmatprep.subr.mxu0 0.0
        %v2658 = vand.u32 %v360, 4294901760
        %2659 = vmatpush1.xpose.msra.mxu0 %v2658
        %2660 = vmatprep.subr.mxu0 0.0
        %v2661 = vand.u32 %v361, 4294901760
        %2662 = vmatpush1.xpose.msra.mxu0 %v2661
        %2663 = vmatprep.subr.mxu0 0.0
        %v2664 = vand.u32 %v362, 4294901760
        %2665 = vmatpush1.xpose.msra.mxu0 %v2664
        %2666 = vmatprep.subr.mxu0 0.0
        %v2667 = vand.u32 %v363, 4294901760
        %2668 = vmatpush1.xpose.msra.mxu0 %v2667
        %2669 = vmatprep.subr.mxu0 0.0
        %v2670 = vand.u32 %v364, 4294901760
        %2671 = vmatpush1.xpose.msra.mxu0 %v2670
        %2672 = vmatprep.subr.mxu0 0.0
        %v2673 = vand.u32 %v365, 4294901760
        %2674 = vmatpush1.xpose.msra.mxu0 %v2673
        %2675 = vmatprep.subr.mxu0 0.0
        %v2676 = vand.u32 %v366, 4294901760
        %2677 = vmatpush1.xpose.msra.mxu0 %v2676
        %2678 = vmatprep.subr.mxu0 0.0
        %v2679 = vand.u32 %v367, 4294901760
        %2680 = vmatpush1.xpose.msra.mxu0 %v2679
        %2681 = vmatprep.subr.mxu0 0.0
        %v2682 = vand.u32 %v368, 4294901760
        %2683 = vmatpush1.xpose.msra.mxu0 %v2682
        %2684 = vmatprep.subr.mxu0 0.0
        %v2685 = vand.u32 %v369, 4294901760
        %2686 = vmatpush1.xpose.msra.mxu0 %v2685
        %2687 = vmatprep.subr.mxu0 0.0
        %v2688 = vand.u32 %v370, 4294901760
        %2689 = vmatpush1.xpose.msra.mxu0 %v2688
        %2690 = vmatprep.subr.mxu0 0.0
        %v2691 = vand.u32 %v371, 4294901760
        %2692 = vmatpush1.xpose.msra.mxu0 %v2691
        %2693 = vmatprep.subr.mxu0 0.0
        %v2694 = vand.u32 %v372, 4294901760
        %2695 = vmatpush1.xpose.msra.mxu0 %v2694
        %2696 = vmatprep.subr.mxu0 0.0
        %v2697 = vand.u32 %v373, 4294901760
        %2698 = vmatpush1.xpose.msra.mxu0 %v2697
        %2699 = vmatprep.subr.mxu0 0.0
        %v2700 = vand.u32 %v374, 4294901760
        %2701 = vmatpush1.xpose.msra.mxu0 %v2700
        %2702 = vmatprep.mubr.f32.mxu0 0.0
        %v2703 = vand.u32 %v418, 4294901760
        %v2704 = vsub.f32 %v418, %v2703
        %v2705 = vand.u32 %v2704, 4294901760
        %2706 = vmatmul.mubr.f32.gmra.mrb[0].mxu0 %v2705
        %v2707 = vpop.f32.mrb[0].mxu0
        %v2708 = vadd.f32 %v2602, %v2707
        %v2709 = vpop.f32.mrb[0].mxu0
        %v2710 = vadd.f32 %v2604, %v2709
        %2711 = vdwg.mxu0
        %2712 = vmatprep.subr.mxu0 0.0
        %v2713 = vand.u32 %v343, 4294901760
        %v2714 = vsub.f32 %v343, %v2713
        %v2715 = vand.u32 %v2714, 4294901760
        %2716 = vmatpush1.xpose.msra.mxu0 %v2715
        %2717 = vmatprep.subr.mxu0 0.0
        %v2718 = vand.u32 %v344, 4294901760
        %v2719 = vsub.f32 %v344, %v2718
        %v2720 = vand.u32 %v2719, 4294901760
        %2721 = vmatpush1.xpose.msra.mxu0 %v2720
        %2722 = vmatprep.subr.mxu0 0.0
        %v2723 = vand.u32 %v345, 4294901760
        %v2724 = vsub.f32 %v345, %v2723
        %v2725 = vand.u32 %v2724, 4294901760
        %2726 = vmatpush1.xpose.msra.mxu0 %v2725
        %2727 = vmatprep.subr.mxu0 0.0
        %v2728 = vand.u32 %v346, 4294901760
        %v2729 = vsub.f32 %v346, %v2728
        %v2730 = vand.u32 %v2729, 4294901760
        %2731 = vmatpush1.xpose.msra.mxu0 %v2730
        %2732 = vmatprep.subr.mxu0 0.0
        %v2733 = vand.u32 %v347, 4294901760
        %v2734 = vsub.f32 %v347, %v2733
        %v2735 = vand.u32 %v2734, 4294901760
        %2736 = vmatpush1.xpose.msra.mxu0 %v2735
        %2737 = vmatprep.subr.mxu0 0.0
        %v2738 = vand.u32 %v348, 4294901760
        %v2739 = vsub.f32 %v348, %v2738
        %v2740 = vand.u32 %v2739, 4294901760
        %2741 = vmatpush1.xpose.msra.mxu0 %v2740
        %2742 = vmatprep.subr.mxu0 0.0
        %v2743 = vand.u32 %v349, 4294901760
        %v2744 = vsub.f32 %v349, %v2743
        %v2745 = vand.u32 %v2744, 4294901760
        %2746 = vmatpush1.xpose.msra.mxu0 %v2745
        %2747 = vmatprep.subr.mxu0 0.0
        %v2748 = vand.u32 %v350, 4294901760
        %v2749 = vsub.f32 %v350, %v2748
        %v2750 = vand.u32 %v2749, 4294901760
        %2751 = vmatpush1.xpose.msra.mxu0 %v2750
        %2752 = vmatprep.subr.mxu0 0.0
        %v2753 = vand.u32 %v351, 4294901760
        %v2754 = vsub.f32 %v351, %v2753
        %v2755 = vand.u32 %v2754, 4294901760
        %2756 = vmatpush1.xpose.msra.mxu0 %v2755
        %2757 = vmatprep.subr.mxu0 0.0
        %v2758 = vand.u32 %v352, 4294901760
        %v2759 = vsub.f32 %v352, %v2758
        %v2760 = vand.u32 %v2759, 4294901760
        %2761 = vmatpush1.xpose.msra.mxu0 %v2760
        %2762 = vmatprep.subr.mxu0 0.0
        %v2763 = vand.u32 %v353, 4294901760
        %v2764 = vsub.f32 %v353, %v2763
        %v2765 = vand.u32 %v2764, 4294901760
        %2766 = vmatpush1.xpose.msra.mxu0 %v2765
        %2767 = vmatprep.subr.mxu0 0.0
        %v2768 = vand.u32 %v354, 4294901760
        %v2769 = vsub.f32 %v354, %v2768
        %v2770 = vand.u32 %v2769, 4294901760
        %2771 = vmatpush1.xpose.msra.mxu0 %v2770
        %2772 = vmatprep.subr.mxu0 0.0
        %v2773 = vand.u32 %v355, 4294901760
        %v2774 = vsub.f32 %v355, %v2773
        %v2775 = vand.u32 %v2774, 4294901760
        %2776 = vmatpush1.xpose.msra.mxu0 %v2775
        %2777 = vmatprep.subr.mxu0 0.0
        %v2778 = vand.u32 %v356, 4294901760
        %v2779 = vsub.f32 %v356, %v2778
        %v2780 = vand.u32 %v2779, 4294901760
        %2781 = vmatpush1.xpose.msra.mxu0 %v2780
        %2782 = vmatprep.subr.mxu0 0.0
        %v2783 = vand.u32 %v357, 4294901760
        %v2784 = vsub.f32 %v357, %v2783
        %v2785 = vand.u32 %v2784, 4294901760
        %2786 = vmatpush1.xpose.msra.mxu0 %v2785
        %2787 = vmatprep.subr.mxu0 0.0
        %v2788 = vand.u32 %v358, 4294901760
        %v2789 = vsub.f32 %v358, %v2788
        %v2790 = vand.u32 %v2789, 4294901760
        %2791 = vmatpush1.xpose.msra.mxu0 %v2790
        %2792 = vmatprep.subr.mxu0 0.0
        %v2793 = vand.u32 %v359, 4294901760
        %v2794 = vsub.f32 %v359, %v2793
        %v2795 = vand.u32 %v2794, 4294901760
        %2796 = vmatpush1.xpose.msra.mxu0 %v2795
        %2797 = vmatprep.subr.mxu0 0.0
        %v2798 = vand.u32 %v360, 4294901760
        %v2799 = vsub.f32 %v360, %v2798
        %v2800 = vand.u32 %v2799, 4294901760
        %2801 = vmatpush1.xpose.msra.mxu0 %v2800
        %2802 = vmatprep.subr.mxu0 0.0
        %v2803 = vand.u32 %v361, 4294901760
        %v2804 = vsub.f32 %v361, %v2803
        %v2805 = vand.u32 %v2804, 4294901760
        %2806 = vmatpush1.xpose.msra.mxu0 %v2805
        %2807 = vmatprep.subr.mxu0 0.0
        %v2808 = vand.u32 %v362, 4294901760
        %v2809 = vsub.f32 %v362, %v2808
        %v2810 = vand.u32 %v2809, 4294901760
        %2811 = vmatpush1.xpose.msra.mxu0 %v2810
        %2812 = vmatprep.subr.mxu0 0.0
        %v2813 = vand.u32 %v363, 4294901760
        %v2814 = vsub.f32 %v363, %v2813
        %v2815 = vand.u32 %v2814, 4294901760
        %2816 = vmatpush1.xpose.msra.mxu0 %v2815
        %2817 = vmatprep.subr.mxu0 0.0
        %v2818 = vand.u32 %v364, 4294901760
        %v2819 = vsub.f32 %v364, %v2818
        %v2820 = vand.u32 %v2819, 4294901760
        %2821 = vmatpush1.xpose.msra.mxu0 %v2820
        %2822 = vmatprep.subr.mxu0 0.0
        %v2823 = vand.u32 %v365, 4294901760
        %v2824 = vsub.f32 %v365, %v2823
        %v2825 = vand.u32 %v2824, 4294901760
        %2826 = vmatpush1.xpose.msra.mxu0 %v2825
        %2827 = vmatprep.subr.mxu0 0.0
        %v2828 = vand.u32 %v366, 4294901760
        %v2829 = vsub.f32 %v366, %v2828
        %v2830 = vand.u32 %v2829, 4294901760
        %2831 = vmatpush1.xpose.msra.mxu0 %v2830
        %2832 = vmatprep.subr.mxu0 0.0
        %v2833 = vand.u32 %v367, 4294901760
        %v2834 = vsub.f32 %v367, %v2833
        %v2835 = vand.u32 %v2834, 4294901760
        %2836 = vmatpush1.xpose.msra.mxu0 %v2835
        %2837 = vmatprep.subr.mxu0 0.0
        %v2838 = vand.u32 %v368, 4294901760
        %v2839 = vsub.f32 %v368, %v2838
        %v2840 = vand.u32 %v2839, 4294901760
        %2841 = vmatpush1.xpose.msra.mxu0 %v2840
        %2842 = vmatprep.subr.mxu0 0.0
        %v2843 = vand.u32 %v369, 4294901760
        %v2844 = vsub.f32 %v369, %v2843
        %v2845 = vand.u32 %v2844, 4294901760
        %2846 = vmatpush1.xpose.msra.mxu0 %v2845
        %2847 = vmatprep.subr.mxu0 0.0
        %v2848 = vand.u32 %v370, 4294901760
        %v2849 = vsub.f32 %v370, %v2848
        %v2850 = vand.u32 %v2849, 4294901760
        %2851 = vmatpush1.xpose.msra.mxu0 %v2850
        %2852 = vmatprep.subr.mxu0 0.0
        %v2853 = vand.u32 %v371, 4294901760
        %v2854 = vsub.f32 %v371, %v2853
        %v2855 = vand.u32 %v2854, 4294901760
        %2856 = vmatpush1.xpose.msra.mxu0 %v2855
        %2857 = vmatprep.subr.mxu0 0.0
        %v2858 = vand.u32 %v372, 4294901760
        %v2859 = vsub.f32 %v372, %v2858
        %v2860 = vand.u32 %v2859, 4294901760
        %2861 = vmatpush1.xpose.msra.mxu0 %v2860
        %2862 = vmatprep.subr.mxu0 0.0
        %v2863 = vand.u32 %v373, 4294901760
        %v2864 = vsub.f32 %v373, %v2863
        %v2865 = vand.u32 %v2864, 4294901760
        %2866 = vmatpush1.xpose.msra.mxu0 %v2865
        %2867 = vmatprep.subr.mxu0 0.0
        %v2868 = vand.u32 %v374, 4294901760
        %v2869 = vsub.f32 %v374, %v2868
        %v2870 = vand.u32 %v2869, 4294901760
        %2871 = vmatpush1.xpose.msra.mxu0 %v2870
        %2872 = vmatprep.mubr.f32.mxu0 0.0
        %v2873 = vand.u32 %v418, 4294901760
        %2874 = vmatmul.mubr.f32.gmra.mrb[0].mxu0 %v2873
        %v2875 = vpop.f32.mrb[0].mxu0
        %v2876 = vadd.f32 %v2708, %v2875
        %v2877 = vpop.f32.mrb[0].mxu0
        %v2878 = vadd.f32 %v2710, %v2877
        %2879 = vdwg.mxu0
        %2880 = vmatprep.subr.mxu0 0.0
        %v2881 = vand.u32 %v343, 4294901760
        %2882 = vmatpush1.xpose.msra.mxu0 %v2881
        %2883 = vmatprep.subr.mxu0 0.0
        %v2884 = vand.u32 %v344, 4294901760
        %2885 = vmatpush1.xpose.msra.mxu0 %v2884
        %2886 = vmatprep.subr.mxu0 0.0
        %v2887 = vand.u32 %v345, 4294901760
        %2888 = vmatpush1.xpose.msra.mxu0 %v2887
        %2889 = vmatprep.subr.mxu0 0.0
        %v2890 = vand.u32 %v346, 4294901760
        %2891 = vmatpush1.xpose.msra.mxu0 %v2890
        %2892 = vmatprep.subr.mxu0 0.0
        %v2893 = vand.u32 %v347, 4294901760
        %2894 = vmatpush1.xpose.msra.mxu0 %v2893
        %2895 = vmatprep.subr.mxu0 0.0
        %v2896 = vand.u32 %v348, 4294901760
        %2897 = vmatpush1.xpose.msra.mxu0 %v2896
        %2898 = vmatprep.subr.mxu0 0.0
        %v2899 = vand.u32 %v349, 4294901760
        %2900 = vmatpush1.xpose.msra.mxu0 %v2899
        %2901 = vmatprep.subr.mxu0 0.0
        %v2902 = vand.u32 %v350, 4294901760
        %2903 = vmatpush1.xpose.msra.mxu0 %v2902
        %2904 = vmatprep.subr.mxu0 0.0
        %v2905 = vand.u32 %v351, 4294901760
        %2906 = vmatpush1.xpose.msra.mxu0 %v2905
        %2907 = vmatprep.subr.mxu0 0.0
        %v2908 = vand.u32 %v352, 4294901760
        %2909 = vmatpush1.xpose.msra.mxu0 %v2908
        %2910 = vmatprep.subr.mxu0 0.0
        %v2911 = vand.u32 %v353, 4294901760
        %2912 = vmatpush1.xpose.msra.mxu0 %v2911
        %2913 = vmatprep.subr.mxu0 0.0
        %v2914 = vand.u32 %v354, 4294901760
        %2915 = vmatpush1.xpose.msra.mxu0 %v2914
        %2916 = vmatprep.subr.mxu0 0.0
        %v2917 = vand.u32 %v355, 4294901760
        %2918 = vmatpush1.xpose.msra.mxu0 %v2917
        %2919 = vmatprep.subr.mxu0 0.0
        %v2920 = vand.u32 %v356, 4294901760
        %2921 = vmatpush1.xpose.msra.mxu0 %v2920
        %2922 = vmatprep.subr.mxu0 0.0
        %v2923 = vand.u32 %v357, 4294901760
        %2924 = vmatpush1.xpose.msra.mxu0 %v2923
        %2925 = vmatprep.subr.mxu0 0.0
        %v2926 = vand.u32 %v358, 4294901760
        %2927 = vmatpush1.xpose.msra.mxu0 %v2926
        %2928 = vmatprep.subr.mxu0 0.0
        %v2929 = vand.u32 %v359, 4294901760
        %2930 = vmatpush1.xpose.msra.mxu0 %v2929
        %2931 = vmatprep.subr.mxu0 0.0
        %v2932 = vand.u32 %v360, 4294901760
        %2933 = vmatpush1.xpose.msra.mxu0 %v2932
        %2934 = vmatprep.subr.mxu0 0.0
        %v2935 = vand.u32 %v361, 4294901760
        %2936 = vmatpush1.xpose.msra.mxu0 %v2935
        %2937 = vmatprep.subr.mxu0 0.0
        %v2938 = vand.u32 %v362, 4294901760
        %2939 = vmatpush1.xpose.msra.mxu0 %v2938
        %2940 = vmatprep.subr.mxu0 0.0
        %v2941 = vand.u32 %v363, 4294901760
        %2942 = vmatpush1.xpose.msra.mxu0 %v2941
        %2943 = vmatprep.subr.mxu0 0.0
        %v2944 = vand.u32 %v364, 4294901760
        %2945 = vmatpush1.xpose.msra.mxu0 %v2944
        %2946 = vmatprep.subr.mxu0 0.0
        %v2947 = vand.u32 %v365, 4294901760
        %2948 = vmatpush1.xpose.msra.mxu0 %v2947
        %2949 = vmatprep.subr.mxu0 0.0
        %v2950 = vand.u32 %v366, 4294901760
        %2951 = vmatpush1.xpose.msra.mxu0 %v2950
        %2952 = vmatprep.subr.mxu0 0.0
        %v2953 = vand.u32 %v367, 4294901760
        %2954 = vmatpush1.xpose.msra.mxu0 %v2953
        %2955 = vmatprep.subr.mxu0 0.0
        %v2956 = vand.u32 %v368, 4294901760
        %2957 = vmatpush1.xpose.msra.mxu0 %v2956
        %2958 = vmatprep.subr.mxu0 0.0
        %v2959 = vand.u32 %v369, 4294901760
        %2960 = vmatpush1.xpose.msra.mxu0 %v2959
        %2961 = vmatprep.subr.mxu0 0.0
        %v2962 = vand.u32 %v370, 4294901760
        %2963 = vmatpush1.xpose.msra.mxu0 %v2962
        %2964 = vmatprep.subr.mxu0 0.0
        %v2965 = vand.u32 %v371, 4294901760
        %2966 = vmatpush1.xpose.msra.mxu0 %v2965
        %2967 = vmatprep.subr.mxu0 0.0
        %v2968 = vand.u32 %v372, 4294901760
        %2969 = vmatpush1.xpose.msra.mxu0 %v2968
        %2970 = vmatprep.subr.mxu0 0.0
        %v2971 = vand.u32 %v373, 4294901760
        %2972 = vmatpush1.xpose.msra.mxu0 %v2971
        %2973 = vmatprep.subr.mxu0 0.0
        %v2974 = vand.u32 %v374, 4294901760
        %2975 = vmatpush1.xpose.msra.mxu0 %v2974
        %2976 = vmatprep.mubr.f32.mxu0 0.0
        %v2977 = vand.u32 %v418, 4294901760
        %2978 = vmatmul.mubr.f32.gmra.mrb[0].mxu0 %v2977
        %v2979 = vpop.f32.mrb[0].mxu0
        %v2980 = vadd.f32 %v2876, %v2979
        %v2981 = vpop.f32.mrb[0].mxu0
        %v2982 = vadd.f32 %v2878, %v2981
        %2983 = vdwg.mxu0
        %2984 = vmatprep.subr.mxu0 0.0
        %v2985 = vand.u32 %v375, 4294901760
        %2986 = vmatpush1.xpose.msra.mxu0 %v2985
        %2987 = vmatprep.subr.mxu0 0.0
        %v2988 = vand.u32 %v376, 4294901760
        %2989 = vmatpush1.xpose.msra.mxu0 %v2988
        %2990 = vmatprep.subr.mxu0 0.0
        %v2991 = vand.u32 %v377, 4294901760
        %2992 = vmatpush1.xpose.msra.mxu0 %v2991
        %2993 = vmatprep.subr.mxu0 0.0
        %v2994 = vand.u32 %v378, 4294901760
        %2995 = vmatpush1.xpose.msra.mxu0 %v2994
        %2996 = vmatprep.subr.mxu0 0.0
        %v2997 = vand.u32 %v379, 4294901760
        %2998 = vmatpush1.xpose.msra.mxu0 %v2997
        %2999 = vmatprep.subr.mxu0 0.0
        %v3000 = vand.u32 %v380, 4294901760
        %3001 = vmatpush1.xpose.msra.mxu0 %v3000
        %3002 = vmatprep.subr.mxu0 0.0
        %v3003 = vand.u32 %v381, 4294901760
        %3004 = vmatpush1.xpose.msra.mxu0 %v3003
        %3005 = vmatprep.subr.mxu0 0.0
        %v3006 = vand.u32 %v382, 4294901760
        %3007 = vmatpush1.xpose.msra.mxu0 %v3006
        %3008 = vmatprep.subr.mxu0 0.0
        %v3009 = vand.u32 %v383, 4294901760
        %3010 = vmatpush1.xpose.msra.mxu0 %v3009
        %3011 = vmatprep.subr.mxu0 0.0
        %v3012 = vand.u32 %v384, 4294901760
        %3013 = vmatpush1.xpose.msra.mxu0 %v3012
        %3014 = vmatprep.subr.mxu0 0.0
        %v3015 = vand.u32 %v385, 4294901760
        %3016 = vmatpush1.xpose.msra.mxu0 %v3015
        %3017 = vmatprep.subr.mxu0 0.0
        %v3018 = vand.u32 %v386, 4294901760
        %3019 = vmatpush1.xpose.msra.mxu0 %v3018
        %3020 = vmatprep.subr.mxu0 0.0
        %v3021 = vand.u32 %v387, 4294901760
        %3022 = vmatpush1.xpose.msra.mxu0 %v3021
        %3023 = vmatprep.subr.mxu0 0.0
        %v3024 = vand.u32 %v388, 4294901760
        %3025 = vmatpush1.xpose.msra.mxu0 %v3024
        %3026 = vmatprep.subr.mxu0 0.0
        %v3027 = vand.u32 %v389, 4294901760
        %3028 = vmatpush1.xpose.msra.mxu0 %v3027
        %3029 = vmatprep.subr.mxu0 0.0
        %v3030 = vand.u32 %v390, 4294901760
        %3031 = vmatpush1.xpose.msra.mxu0 %v3030
        %3032 = vmatprep.subr.mxu0 0.0
        %v3033 = vand.u32 %v391, 4294901760
        %3034 = vmatpush1.xpose.msra.mxu0 %v3033
        %3035 = vmatprep.subr.mxu0 0.0
        %v3036 = vand.u32 %v392, 4294901760
        %3037 = vmatpush1.xpose.msra.mxu0 %v3036
        %3038 = vmatprep.subr.mxu0 0.0
        %v3039 = vand.u32 %v393, 4294901760
        %3040 = vmatpush1.xpose.msra.mxu0 %v3039
        %3041 = vmatprep.subr.mxu0 0.0
        %v3042 = vand.u32 %v394, 4294901760
        %3043 = vmatpush1.xpose.msra.mxu0 %v3042
        %3044 = vmatprep.subr.mxu0 0.0
        %v3045 = vand.u32 %v395, 4294901760
        %3046 = vmatpush1.xpose.msra.mxu0 %v3045
        %3047 = vmatprep.subr.mxu0 0.0
        %v3048 = vand.u32 %v396, 4294901760
        %3049 = vmatpush1.xpose.msra.mxu0 %v3048
        %3050 = vmatprep.subr.mxu0 0.0
        %v3051 = vand.u32 %v397, 4294901760
        %3052 = vmatpush1.xpose.msra.mxu0 %v3051
        %3053 = vmatprep.subr.mxu0 0.0
        %v3054 = vand.u32 %v398, 4294901760
        %3055 = vmatpush1.xpose.msra.mxu0 %v3054
        %3056 = vmatprep.subr.mxu0 0.0
        %v3057 = vand.u32 %v399, 4294901760
        %3058 = vmatpush1.xpose.msra.mxu0 %v3057
        %3059 = vmatprep.subr.mxu0 0.0
        %v3060 = vand.u32 %v400, 4294901760
        %3061 = vmatpush1.xpose.msra.mxu0 %v3060
        %3062 = vmatprep.subr.mxu0 0.0
        %v3063 = vand.u32 %v401, 4294901760
        %3064 = vmatpush1.xpose.msra.mxu0 %v3063
        %3065 = vmatprep.subr.mxu0 0.0
        %v3066 = vand.u32 %v402, 4294901760
        %3067 = vmatpush1.xpose.msra.mxu0 %v3066
        %3068 = vmatprep.subr.mxu0 0.0
        %v3069 = vand.u32 %v403, 4294901760
        %3070 = vmatpush1.xpose.msra.mxu0 %v3069
        %3071 = vmatprep.subr.mxu0 0.0
        %v3072 = vand.u32 %v404, 4294901760
        %3073 = vmatpush1.xpose.msra.mxu0 %v3072
        %3074 = vmatprep.subr.mxu0 0.0
        %v3075 = vand.u32 %v405, 4294901760
        %3076 = vmatpush1.xpose.msra.mxu0 %v3075
        %3077 = vmatprep.subr.mxu0 0.0
        %v3078 = vand.u32 %v406, 4294901760
        %3079 = vmatpush1.xpose.msra.mxu0 %v3078
        %3080 = vmatprep.mubr.f32.mxu0 0.0
        %v3081 = vand.u32 %v418, 4294901760
        %v3082 = vsub.f32 %v418, %v3081
        %v3083 = vand.u32 %v3082, 4294901760
        %v3084 = vsub.f32 %v3082, %v3083
        %v3085 = vand.u32 %v3084, 4294901760
        %3086 = vmatmul.mubr.f32.gmra.mrb[0].mxu0 %v3085
        %v3087 = vpop.f32.mrb[0].mxu0
        %v3088 = vadd.f32 0.0, %v3087
        %v3089 = vpop.f32.mrb[0].mxu0
        %v3090 = vadd.f32 0.0, %v3089
        %3091 = vdwg.mxu0
        %3092 = vmatprep.subr.mxu0 0.0
        %v3093 = vand.u32 %v375, 4294901760
        %v3094 = vsub.f32 %v375, %v3093
        %v3095 = vand.u32 %v3094, 4294901760
        %v3096 = vsub.f32 %v3094, %v3095
        %v3097 = vand.u32 %v3096, 4294901760
        %3098 = vmatpush1.xpose.msra.mxu0 %v3097
        %3099 = vmatprep.subr.mxu0 0.0
        %v3100 = vand.u32 %v376, 4294901760
        %v3101 = vsub.f32 %v376, %v3100
        %v3102 = vand.u32 %v3101, 4294901760
        %v3103 = vsub.f32 %v3101, %v3102
        %v3104 = vand.u32 %v3103, 4294901760
        %3105 = vmatpush1.xpose.msra.mxu0 %v3104
        %3106 = vmatprep.subr.mxu0 0.0
        %v3107 = vand.u32 %v377, 4294901760
        %v3108 = vsub.f32 %v377, %v3107
        %v3109 = vand.u32 %v3108, 4294901760
        %v3110 = vsub.f32 %v3108, %v3109
        %v3111 = vand.u32 %v3110, 4294901760
        %3112 = vmatpush1.xpose.msra.mxu0 %v3111
        %3113 = vmatprep.subr.mxu0 0.0
        %v3114 = vand.u32 %v378, 4294901760
        %v3115 = vsub.f32 %v378, %v3114
        %v3116 = vand.u32 %v3115, 4294901760
        %v3117 = vsub.f32 %v3115, %v3116
        %v3118 = vand.u32 %v3117, 4294901760
        %3119 = vmatpush1.xpose.msra.mxu0 %v3118
        %3120 = vmatprep.subr.mxu0 0.0
        %v3121 = vand.u32 %v379, 4294901760
        %v3122 = vsub.f32 %v379, %v3121
        %v3123 = vand.u32 %v3122, 4294901760
        %v3124 = vsub.f32 %v3122, %v3123
        %v3125 = vand.u32 %v3124, 4294901760
        %3126 = vmatpush1.xpose.msra.mxu0 %v3125
        %3127 = vmatprep.subr.mxu0 0.0
        %v3128 = vand.u32 %v380, 4294901760
        %v3129 = vsub.f32 %v380, %v3128
        %v3130 = vand.u32 %v3129, 4294901760
        %v3131 = vsub.f32 %v3129, %v3130
        %v3132 = vand.u32 %v3131, 4294901760
        %3133 = vmatpush1.xpose.msra.mxu0 %v3132
        %3134 = vmatprep.subr.mxu0 0.0
        %v3135 = vand.u32 %v381, 4294901760
        %v3136 = vsub.f32 %v381, %v3135
        %v3137 = vand.u32 %v3136, 4294901760
        %v3138 = vsub.f32 %v3136, %v3137
        %v3139 = vand.u32 %v3138, 4294901760
        %3140 = vmatpush1.xpose.msra.mxu0 %v3139
        %3141 = vmatprep.subr.mxu0 0.0
        %v3142 = vand.u32 %v382, 4294901760
        %v3143 = vsub.f32 %v382, %v3142
        %v3144 = vand.u32 %v3143, 4294901760
        %v3145 = vsub.f32 %v3143, %v3144
        %v3146 = vand.u32 %v3145, 4294901760
        %3147 = vmatpush1.xpose.msra.mxu0 %v3146
        %3148 = vmatprep.subr.mxu0 0.0
        %v3149 = vand.u32 %v383, 4294901760
        %v3150 = vsub.f32 %v383, %v3149
        %v3151 = vand.u32 %v3150, 4294901760
        %v3152 = vsub.f32 %v3150, %v3151
        %v3153 = vand.u32 %v3152, 4294901760
        %3154 = vmatpush1.xpose.msra.mxu0 %v3153
        %3155 = vmatprep.subr.mxu0 0.0
        %v3156 = vand.u32 %v384, 4294901760
        %v3157 = vsub.f32 %v384, %v3156
        %v3158 = vand.u32 %v3157, 4294901760
        %v3159 = vsub.f32 %v3157, %v3158
        %v3160 = vand.u32 %v3159, 4294901760
        %3161 = vmatpush1.xpose.msra.mxu0 %v3160
        %3162 = vmatprep.subr.mxu0 0.0
        %v3163 = vand.u32 %v385, 4294901760
        %v3164 = vsub.f32 %v385, %v3163
        %v3165 = vand.u32 %v3164, 4294901760
        %v3166 = vsub.f32 %v3164, %v3165
        %v3167 = vand.u32 %v3166, 4294901760
        %3168 = vmatpush1.xpose.msra.mxu0 %v3167
        %3169 = vmatprep.subr.mxu0 0.0
        %v3170 = vand.u32 %v386, 4294901760
        %v3171 = vsub.f32 %v386, %v3170
        %v3172 = vand.u32 %v3171, 4294901760
        %v3173 = vsub.f32 %v3171, %v3172
        %v3174 = vand.u32 %v3173, 4294901760
        %3175 = vmatpush1.xpose.msra.mxu0 %v3174
        %3176 = vmatprep.subr.mxu0 0.0
        %v3177 = vand.u32 %v387, 4294901760
        %v3178 = vsub.f32 %v387, %v3177
        %v3179 = vand.u32 %v3178, 4294901760
        %v3180 = vsub.f32 %v3178, %v3179
        %v3181 = vand.u32 %v3180, 4294901760
        %3182 = vmatpush1.xpose.msra.mxu0 %v3181
        %3183 = vmatprep.subr.mxu0 0.0
        %v3184 = vand.u32 %v388, 4294901760
        %v3185 = vsub.f32 %v388, %v3184
        %v3186 = vand.u32 %v3185, 4294901760
        %v3187 = vsub.f32 %v3185, %v3186
        %v3188 = vand.u32 %v3187, 4294901760
        %3189 = vmatpush1.xpose.msra.mxu0 %v3188
        %3190 = vmatprep.subr.mxu0 0.0
        %v3191 = vand.u32 %v389, 4294901760
        %v3192 = vsub.f32 %v389, %v3191
        %v3193 = vand.u32 %v3192, 4294901760
        %v3194 = vsub.f32 %v3192, %v3193
        %v3195 = vand.u32 %v3194, 4294901760
        %3196 = vmatpush1.xpose.msra.mxu0 %v3195
        %3197 = vmatprep.subr.mxu0 0.0
        %v3198 = vand.u32 %v390, 4294901760
        %v3199 = vsub.f32 %v390, %v3198
        %v3200 = vand.u32 %v3199, 4294901760
        %v3201 = vsub.f32 %v3199, %v3200
        %v3202 = vand.u32 %v3201, 4294901760
        %3203 = vmatpush1.xpose.msra.mxu0 %v3202
        %3204 = vmatprep.subr.mxu0 0.0
        %v3205 = vand.u32 %v391, 4294901760
        %v3206 = vsub.f32 %v391, %v3205
        %v3207 = vand.u32 %v3206, 4294901760
        %v3208 = vsub.f32 %v3206, %v3207
        %v3209 = vand.u32 %v3208, 4294901760
        %3210 = vmatpush1.xpose.msra.mxu0 %v3209
        %3211 = vmatprep.subr.mxu0 0.0
        %v3212 = vand.u32 %v392, 4294901760
        %v3213 = vsub.f32 %v392, %v3212
        %v3214 = vand.u32 %v3213, 4294901760
        %v3215 = vsub.f32 %v3213, %v3214
        %v3216 = vand.u32 %v3215, 4294901760
        %3217 = vmatpush1.xpose.msra.mxu0 %v3216
        %3218 = vmatprep.subr.mxu0 0.0
        %v3219 = vand.u32 %v393, 4294901760
        %v3220 = vsub.f32 %v393, %v3219
        %v3221 = vand.u32 %v3220, 4294901760
        %v3222 = vsub.f32 %v3220, %v3221
        %v3223 = vand.u32 %v3222, 4294901760
        %3224 = vmatpush1.xpose.msra.mxu0 %v3223
        %3225 = vmatprep.subr.mxu0 0.0
        %v3226 = vand.u32 %v394, 4294901760
        %v3227 = vsub.f32 %v394, %v3226
        %v3228 = vand.u32 %v3227, 4294901760
        %v3229 = vsub.f32 %v3227, %v3228
        %v3230 = vand.u32 %v3229, 4294901760
        %3231 = vmatpush1.xpose.msra.mxu0 %v3230
        %3232 = vmatprep.subr.mxu0 0.0
        %v3233 = vand.u32 %v395, 4294901760
        %v3234 = vsub.f32 %v395, %v3233
        %v3235 = vand.u32 %v3234, 4294901760
        %v3236 = vsub.f32 %v3234, %v3235
        %v3237 = vand.u32 %v3236, 4294901760
        %3238 = vmatpush1.xpose.msra.mxu0 %v3237
        %3239 = vmatprep.subr.mxu0 0.0
        %v3240 = vand.u32 %v396, 4294901760
        %v3241 = vsub.f32 %v396, %v3240
        %v3242 = vand.u32 %v3241, 4294901760
        %v3243 = vsub.f32 %v3241, %v3242
        %v3244 = vand.u32 %v3243, 4294901760
        %3245 = vmatpush1.xpose.msra.mxu0 %v3244
        %3246 = vmatprep.subr.mxu0 0.0
        %v3247 = vand.u32 %v397, 4294901760
        %v3248 = vsub.f32 %v397, %v3247
        %v3249 = vand.u32 %v3248, 4294901760
        %v3250 = vsub.f32 %v3248, %v3249
        %v3251 = vand.u32 %v3250, 4294901760
        %3252 = vmatpush1.xpose.msra.mxu0 %v3251
        %3253 = vmatprep.subr.mxu0 0.0
        %v3254 = vand.u32 %v398, 4294901760
        %v3255 = vsub.f32 %v398, %v3254
        %v3256 = vand.u32 %v3255, 4294901760
        %v3257 = vsub.f32 %v3255, %v3256
        %v3258 = vand.u32 %v3257, 4294901760
        %3259 = vmatpush1.xpose.msra.mxu0 %v3258
        %3260 = vmatprep.subr.mxu0 0.0
        %v3261 = vand.u32 %v399, 4294901760
        %v3262 = vsub.f32 %v399, %v3261
        %v3263 = vand.u32 %v3262, 4294901760
        %v3264 = vsub.f32 %v3262, %v3263
        %v3265 = vand.u32 %v3264, 4294901760
        %3266 = vmatpush1.xpose.msra.mxu0 %v3265
        %3267 = vmatprep.subr.mxu0 0.0
        %v3268 = vand.u32 %v400, 4294901760
        %v3269 = vsub.f32 %v400, %v3268
        %v3270 = vand.u32 %v3269, 4294901760
        %v3271 = vsub.f32 %v3269, %v3270
        %v3272 = vand.u32 %v3271, 4294901760
        %3273 = vmatpush1.xpose.msra.mxu0 %v3272
        %3274 = vmatprep.subr.mxu0 0.0
        %v3275 = vand.u32 %v401, 4294901760
        %v3276 = vsub.f32 %v401, %v3275
        %v3277 = vand.u32 %v3276, 4294901760
        %v3278 = vsub.f32 %v3276, %v3277
        %v3279 = vand.u32 %v3278, 4294901760
        %3280 = vmatpush1.xpose.msra.mxu0 %v3279
        %3281 = vmatprep.subr.mxu0 0.0
        %v3282 = vand.u32 %v402, 4294901760
        %v3283 = vsub.f32 %v402, %v3282
        %v3284 = vand.u32 %v3283, 4294901760
        %v3285 = vsub.f32 %v3283, %v3284
        %v3286 = vand.u32 %v3285, 4294901760
        %3287 = vmatpush1.xpose.msra.mxu0 %v3286
        %3288 = vmatprep.subr.mxu0 0.0
        %v3289 = vand.u32 %v403, 4294901760
        %v3290 = vsub.f32 %v403, %v3289
        %v3291 = vand.u32 %v3290, 4294901760
        %v3292 = vsub.f32 %v3290, %v3291
        %v3293 = vand.u32 %v3292, 4294901760
        %3294 = vmatpush1.xpose.msra.mxu0 %v3293
        %3295 = vmatprep.subr.mxu0 0.0
        %v3296 = vand.u32 %v404, 4294901760
        %v3297 = vsub.f32 %v404, %v3296
        %v3298 = vand.u32 %v3297, 4294901760
        %v3299 = vsub.f32 %v3297, %v3298
        %v3300 = vand.u32 %v3299, 4294901760
        %3301 = vmatpush1.xpose.msra.mxu0 %v3300
        %3302 = vmatprep.subr.mxu0 0.0
        %v3303 = vand.u32 %v405, 4294901760
        %v3304 = vsub.f32 %v405, %v3303
        %v3305 = vand.u32 %v3304, 4294901760
        %v3306 = vsub.f32 %v3304, %v3305
        %v3307 = vand.u32 %v3306, 4294901760
        %3308 = vmatpush1.xpose.msra.mxu0 %v3307
        %3309 = vmatprep.subr.mxu0 0.0
        %v3310 = vand.u32 %v406, 4294901760
        %v3311 = vsub.f32 %v406, %v3310
        %v3312 = vand.u32 %v3311, 4294901760
        %v3313 = vsub.f32 %v3311, %v3312
        %v3314 = vand.u32 %v3313, 4294901760
        %3315 = vmatpush1.xpose.msra.mxu0 %v3314
        %3316 = vmatprep.mubr.f32.mxu0 0.0
        %v3317 = vand.u32 %v418, 4294901760
        %3318 = vmatmul.mubr.f32.gmra.mrb[0].mxu0 %v3317
        %v3319 = vpop.f32.mrb[0].mxu0
        %v3320 = vadd.f32 %v3088, %v3319
        %v3321 = vpop.f32.mrb[0].mxu0
        %v3322 = vadd.f32 %v3090, %v3321
        %3323 = vdwg.mxu0
        %3324 = vmatprep.subr.mxu0 0.0
        %v3325 = vand.u32 %v375, 4294901760
        %v3326 = vsub.f32 %v375, %v3325
        %3327 = vmatpush1.xpose.msra.mxu0 %v3326
        %3328 = vmatprep.subr.mxu0 0.0
        %v3329 = vand.u32 %v376, 4294901760
        %v3330 = vsub.f32 %v376, %v3329
        %3331 = vmatpush1.xpose.msra.mxu0 %v3330
        %3332 = vmatprep.subr.mxu0 0.0
        %v3333 = vand.u32 %v377, 4294901760
        %v3334 = vsub.f32 %v377, %v3333
        %3335 = vmatpush1.xpose.msra.mxu0 %v3334
        %3336 = vmatprep.subr.mxu0 0.0
        %v3337 = vand.u32 %v378, 4294901760
        %v3338 = vsub.f32 %v378, %v3337
        %3339 = vmatpush1.xpose.msra.mxu0 %v3338
        %3340 = vmatprep.subr.mxu0 0.0
        %v3341 = vand.u32 %v379, 4294901760
        %v3342 = vsub.f32 %v379, %v3341
        %3343 = vmatpush1.xpose.msra.mxu0 %v3342
        %3344 = vmatprep.subr.mxu0 0.0
        %v3345 = vand.u32 %v380, 4294901760
        %v3346 = vsub.f32 %v380, %v3345
        %3347 = vmatpush1.xpose.msra.mxu0 %v3346
        %3348 = vmatprep.subr.mxu0 0.0
        %v3349 = vand.u32 %v381, 4294901760
        %v3350 = vsub.f32 %v381, %v3349
        %3351 = vmatpush1.xpose.msra.mxu0 %v3350
        %3352 = vmatprep.subr.mxu0 0.0
        %v3353 = vand.u32 %v382, 4294901760
        %v3354 = vsub.f32 %v382, %v3353
        %3355 = vmatpush1.xpose.msra.mxu0 %v3354
        %3356 = vmatprep.subr.mxu0 0.0
        %v3357 = vand.u32 %v383, 4294901760
        %v3358 = vsub.f32 %v383, %v3357
        %3359 = vmatpush1.xpose.msra.mxu0 %v3358
        %3360 = vmatprep.subr.mxu0 0.0
        %v3361 = vand.u32 %v384, 4294901760
        %v3362 = vsub.f32 %v384, %v3361
        %3363 = vmatpush1.xpose.msra.mxu0 %v3362
        %3364 = vmatprep.subr.mxu0 0.0
        %v3365 = vand.u32 %v385, 4294901760
        %v3366 = vsub.f32 %v385, %v3365
        %3367 = vmatpush1.xpose.msra.mxu0 %v3366
        %3368 = vmatprep.subr.mxu0 0.0
        %v3369 = vand.u32 %v386, 4294901760
        %v3370 = vsub.f32 %v386, %v3369
        %3371 = vmatpush1.xpose.msra.mxu0 %v3370
        %3372 = vmatprep.subr.mxu0 0.0
        %v3373 = vand.u32 %v387, 4294901760
        %v3374 = vsub.f32 %v387, %v3373
        %3375 = vmatpush1.xpose.msra.mxu0 %v3374
        %3376 = vmatprep.subr.mxu0 0.0
        %v3377 = vand.u32 %v388, 4294901760
        %v3378 = vsub.f32 %v388, %v3377
        %3379 = vmatpush1.xpose.msra.mxu0 %v3378
        %3380 = vmatprep.subr.mxu0 0.0
        %v3381 = vand.u32 %v389, 4294901760
        %v3382 = vsub.f32 %v389, %v3381
        %3383 = vmatpush1.xpose.msra.mxu0 %v3382
        %3384 = vmatprep.subr.mxu0 0.0
        %v3385 = vand.u32 %v390, 4294901760
        %v3386 = vsub.f32 %v390, %v3385
        %3387 = vmatpush1.xpose.msra.mxu0 %v3386
        %3388 = vmatprep.subr.mxu0 0.0
        %v3389 = vand.u32 %v391, 4294901760
        %v3390 = vsub.f32 %v391, %v3389
        %3391 = vmatpush1.xpose.msra.mxu0 %v3390
        %3392 = vmatprep.subr.mxu0 0.0
        %v3393 = vand.u32 %v392, 4294901760
        %v3394 = vsub.f32 %v392, %v3393
        %3395 = vmatpush1.xpose.msra.mxu0 %v3394
        %3396 = vmatprep.subr.mxu0 0.0
        %v3397 = vand.u32 %v393, 4294901760
        %v3398 = vsub.f32 %v393, %v3397
        %3399 = vmatpush1.xpose.msra.mxu0 %v3398
        %3400 = vmatprep.subr.mxu0 0.0
        %v3401 = vand.u32 %v394, 4294901760
        %v3402 = vsub.f32 %v394, %v3401
        %3403 = vmatpush1.xpose.msra.mxu0 %v3402
        %3404 = vmatprep.subr.mxu0 0.0
        %v3405 = vand.u32 %v395, 4294901760
        %v3406 = vsub.f32 %v395, %v3405
        %3407 = vmatpush1.xpose.msra.mxu0 %v3406
        %3408 = vmatprep.subr.mxu0 0.0
        %v3409 = vand.u32 %v396, 4294901760
        %v3410 = vsub.f32 %v396, %v3409
        %3411 = vmatpush1.xpose.msra.mxu0 %v3410
        %3412 = vmatprep.subr.mxu0 0.0
        %v3413 = vand.u32 %v397, 4294901760
        %v3414 = vsub.f32 %v397, %v3413
        %3415 = vmatpush1.xpose.msra.mxu0 %v3414
        %3416 = vmatprep.subr.mxu0 0.0
        %v3417 = vand.u32 %v398, 4294901760
        %v3418 = vsub.f32 %v398, %v3417
        %3419 = vmatpush1.xpose.msra.mxu0 %v3418
        %3420 = vmatprep.subr.mxu0 0.0
        %v3421 = vand.u32 %v399, 4294901760
        %v3422 = vsub.f32 %v399, %v3421
        %3423 = vmatpush1.xpose.msra.mxu0 %v3422
        %3424 = vmatprep.subr.mxu0 0.0
        %v3425 = vand.u32 %v400, 4294901760
        %v3426 = vsub.f32 %v400, %v3425
        %3427 = vmatpush1.xpose.msra.mxu0 %v3426
        %3428 = vmatprep.subr.mxu0 0.0
        %v3429 = vand.u32 %v401, 4294901760
        %v3430 = vsub.f32 %v401, %v3429
        %3431 = vmatpush1.xpose.msra.mxu0 %v3430
        %3432 = vmatprep.subr.mxu0 0.0
        %v3433 = vand.u32 %v402, 4294901760
        %v3434 = vsub.f32 %v402, %v3433
        %3435 = vmatpush1.xpose.msra.mxu0 %v3434
        %3436 = vmatprep.subr.mxu0 0.0
        %v3437 = vand.u32 %v403, 4294901760
        %v3438 = vsub.f32 %v403, %v3437
        %3439 = vmatpush1.xpose.msra.mxu0 %v3438
        %3440 = vmatprep.subr.mxu0 0.0
        %v3441 = vand.u32 %v404, 4294901760
        %v3442 = vsub.f32 %v404, %v3441
        %3443 = vmatpush1.xpose.msra.mxu0 %v3442
        %3444 = vmatprep.subr.mxu0 0.0
        %v3445 = vand.u32 %v405, 4294901760
        %v3446 = vsub.f32 %v405, %v3445
        %3447 = vmatpush1.xpose.msra.mxu0 %v3446
        %3448 = vmatprep.subr.mxu0 0.0
        %v3449 = vand.u32 %v406, 4294901760
        %v3450 = vsub.f32 %v406, %v3449
        %3451 = vmatpush1.xpose.msra.mxu0 %v3450
        %3452 = vmatprep.mubr.f32.mxu0 0.0
        %v3453 = vand.u32 %v418, 4294901760
        %v3454 = vsub.f32 %v418, %v3453
        %3455 = vmatmul.mubr.f32.gmra.mrb[0].mxu0 %v3454
        %v3456 = vpop.f32.mrb[0].mxu0
        %v3457 = vadd.f32 %v3320, %v3456
        %v3458 = vpop.f32.mrb[0].mxu0
        %v3459 = vadd.f32 %v3322, %v3458
        %3460 = vdwg.mxu0
        %3461 = vmatprep.subr.mxu0 0.0
        %v3462 = vand.u32 %v375, 4294901760
        %3463 = vmatpush1.xpose.msra.mxu0 %v3462
        %3464 = vmatprep.subr.mxu0 0.0
        %v3465 = vand.u32 %v376, 4294901760
        %3466 = vmatpush1.xpose.msra.mxu0 %v3465
        %3467 = vmatprep.subr.mxu0 0.0
        %v3468 = vand.u32 %v377, 4294901760
        %3469 = vmatpush1.xpose.msra.mxu0 %v3468
        %3470 = vmatprep.subr.mxu0 0.0
        %v3471 = vand.u32 %v378, 4294901760
        %3472 = vmatpush1.xpose.msra.mxu0 %v3471
        %3473 = vmatprep.subr.mxu0 0.0
        %v3474 = vand.u32 %v379, 4294901760
        %3475 = vmatpush1.xpose.msra.mxu0 %v3474
        %3476 = vmatprep.subr.mxu0 0.0
        %v3477 = vand.u32 %v380, 4294901760
        %3478 = vmatpush1.xpose.msra.mxu0 %v3477
        %3479 = vmatprep.subr.mxu0 0.0
        %v3480 = vand.u32 %v381, 4294901760
        %3481 = vmatpush1.xpose.msra.mxu0 %v3480
        %3482 = vmatprep.subr.mxu0 0.0
        %v3483 = vand.u32 %v382, 4294901760
        %3484 = vmatpush1.xpose.msra.mxu0 %v3483
        %3485 = vmatprep.subr.mxu0 0.0
        %v3486 = vand.u32 %v383, 4294901760
        %3487 = vmatpush1.xpose.msra.mxu0 %v3486
        %3488 = vmatprep.subr.mxu0 0.0
        %v3489 = vand.u32 %v384, 4294901760
        %3490 = vmatpush1.xpose.msra.mxu0 %v3489
        %3491 = vmatprep.subr.mxu0 0.0
        %v3492 = vand.u32 %v385, 4294901760
        %3493 = vmatpush1.xpose.msra.mxu0 %v3492
        %3494 = vmatprep.subr.mxu0 0.0
        %v3495 = vand.u32 %v386, 4294901760
        %3496 = vmatpush1.xpose.msra.mxu0 %v3495
        %3497 = vmatprep.subr.mxu0 0.0
        %v3498 = vand.u32 %v387, 4294901760
        %3499 = vmatpush1.xpose.msra.mxu0 %v3498
        %3500 = vmatprep.subr.mxu0 0.0
        %v3501 = vand.u32 %v388, 4294901760
        %3502 = vmatpush1.xpose.msra.mxu0 %v3501
        %3503 = vmatprep.subr.mxu0 0.0
        %v3504 = vand.u32 %v389, 4294901760
        %3505 = vmatpush1.xpose.msra.mxu0 %v3504
        %3506 = vmatprep.subr.mxu0 0.0
        %v3507 = vand.u32 %v390, 4294901760
        %3508 = vmatpush1.xpose.msra.mxu0 %v3507
        %3509 = vmatprep.subr.mxu0 0.0
        %v3510 = vand.u32 %v391, 4294901760
        %3511 = vmatpush1.xpose.msra.mxu0 %v3510
        %3512 = vmatprep.subr.mxu0 0.0
        %v3513 = vand.u32 %v392, 4294901760
        %3514 = vmatpush1.xpose.msra.mxu0 %v3513
        %3515 = vmatprep.subr.mxu0 0.0
        %v3516 = vand.u32 %v393, 4294901760
        %3517 = vmatpush1.xpose.msra.mxu0 %v3516
        %3518 = vmatprep.subr.mxu0 0.0
        %v3519 = vand.u32 %v394, 4294901760
        %3520 = vmatpush1.xpose.msra.mxu0 %v3519
        %3521 = vmatprep.subr.mxu0 0.0
        %v3522 = vand.u32 %v395, 4294901760
        %3523 = vmatpush1.xpose.msra.mxu0 %v3522
        %3524 = vmatprep.subr.mxu0 0.0
        %v3525 = vand.u32 %v396, 4294901760
        %3526 = vmatpush1.xpose.msra.mxu0 %v3525
        %3527 = vmatprep.subr.mxu0 0.0
        %v3528 = vand.u32 %v397, 4294901760
        %3529 = vmatpush1.xpose.msra.mxu0 %v3528
        %3530 = vmatprep.subr.mxu0 0.0
        %v3531 = vand.u32 %v398, 4294901760
        %3532 = vmatpush1.xpose.msra.mxu0 %v3531
        %3533 = vmatprep.subr.mxu0 0.0
        %v3534 = vand.u32 %v399, 4294901760
        %3535 = vmatpush1.xpose.msra.mxu0 %v3534
        %3536 = vmatprep.subr.mxu0 0.0
        %v3537 = vand.u32 %v400, 4294901760
        %3538 = vmatpush1.xpose.msra.mxu0 %v3537
        %3539 = vmatprep.subr.mxu0 0.0
        %v3540 = vand.u32 %v401, 4294901760
        %3541 = vmatpush1.xpose.msra.mxu0 %v3540
        %3542 = vmatprep.subr.mxu0 0.0
        %v3543 = vand.u32 %v402, 4294901760
        %3544 = vmatpush1.xpose.msra.mxu0 %v3543
        %3545 = vmatprep.subr.mxu0 0.0
        %v3546 = vand.u32 %v403, 4294901760
        %3547 = vmatpush1.xpose.msra.mxu0 %v3546
        %3548 = vmatprep.subr.mxu0 0.0
        %v3549 = vand.u32 %v404, 4294901760
        %3550 = vmatpush1.xpose.msra.mxu0 %v3549
        %3551 = vmatprep.subr.mxu0 0.0
        %v3552 = vand.u32 %v405, 4294901760
        %3553 = vmatpush1.xpose.msra.mxu0 %v3552
        %3554 = vmatprep.subr.mxu0 0.0
        %v3555 = vand.u32 %v406, 4294901760
        %3556 = vmatpush1.xpose.msra.mxu0 %v3555
        %3557 = vmatprep.mubr.f32.mxu0 0.0
        %v3558 = vand.u32 %v418, 4294901760
        %v3559 = vsub.f32 %v418, %v3558
        %v3560 = vand.u32 %v3559, 4294901760
        %3561 = vmatmul.mubr.f32.gmra.mrb[0].mxu0 %v3560
        %v3562 = vpop.f32.mrb[0].mxu0
        %v3563 = vadd.f32 %v3457, %v3562
        %v3564 = vpop.f32.mrb[0].mxu0
        %v3565 = vadd.f32 %v3459, %v3564
        %3566 = vdwg.mxu0
        %3567 = vmatprep.subr.mxu0 0.0
        %v3568 = vand.u32 %v375, 4294901760
        %v3569 = vsub.f32 %v375, %v3568
        %v3570 = vand.u32 %v3569, 4294901760
        %3571 = vmatpush1.xpose.msra.mxu0 %v3570
        %3572 = vmatprep.subr.mxu0 0.0
        %v3573 = vand.u32 %v376, 4294901760
        %v3574 = vsub.f32 %v376, %v3573
        %v3575 = vand.u32 %v3574, 4294901760
        %3576 = vmatpush1.xpose.msra.mxu0 %v3575
        %3577 = vmatprep.subr.mxu0 0.0
        %v3578 = vand.u32 %v377, 4294901760
        %v3579 = vsub.f32 %v377, %v3578
        %v3580 = vand.u32 %v3579, 4294901760
        %3581 = vmatpush1.xpose.msra.mxu0 %v3580
        %3582 = vmatprep.subr.mxu0 0.0
        %v3583 = vand.u32 %v378, 4294901760
        %v3584 = vsub.f32 %v378, %v3583
        %v3585 = vand.u32 %v3584, 4294901760
        %3586 = vmatpush1.xpose.msra.mxu0 %v3585
        %3587 = vmatprep.subr.mxu0 0.0
        %v3588 = vand.u32 %v379, 4294901760
        %v3589 = vsub.f32 %v379, %v3588
        %v3590 = vand.u32 %v3589, 4294901760
        %3591 = vmatpush1.xpose.msra.mxu0 %v3590
        %3592 = vmatprep.subr.mxu0 0.0
        %v3593 = vand.u32 %v380, 4294901760
        %v3594 = vsub.f32 %v380, %v3593
        %v3595 = vand.u32 %v3594, 4294901760
        %3596 = vmatpush1.xpose.msra.mxu0 %v3595
        %3597 = vmatprep.subr.mxu0 0.0
        %v3598 = vand.u32 %v381, 4294901760
        %v3599 = vsub.f32 %v381, %v3598
        %v3600 = vand.u32 %v3599, 4294901760
        %3601 = vmatpush1.xpose.msra.mxu0 %v3600
        %3602 = vmatprep.subr.mxu0 0.0
        %v3603 = vand.u32 %v382, 4294901760
        %v3604 = vsub.f32 %v382, %v3603
        %v3605 = vand.u32 %v3604, 4294901760
        %3606 = vmatpush1.xpose.msra.mxu0 %v3605
        %3607 = vmatprep.subr.mxu0 0.0
        %v3608 = vand.u32 %v383, 4294901760
        %v3609 = vsub.f32 %v383, %v3608
        %v3610 = vand.u32 %v3609, 4294901760
        %3611 = vmatpush1.xpose.msra.mxu0 %v3610
        %3612 = vmatprep.subr.mxu0 0.0
        %v3613 = vand.u32 %v384, 4294901760
        %v3614 = vsub.f32 %v384, %v3613
        %v3615 = vand.u32 %v3614, 4294901760
        %3616 = vmatpush1.xpose.msra.mxu0 %v3615
        %3617 = vmatprep.subr.mxu0 0.0
        %v3618 = vand.u32 %v385, 4294901760
        %v3619 = vsub.f32 %v385, %v3618
        %v3620 = vand.u32 %v3619, 4294901760
        %3621 = vmatpush1.xpose.msra.mxu0 %v3620
        %3622 = vmatprep.subr.mxu0 0.0
        %v3623 = vand.u32 %v386, 4294901760
        %v3624 = vsub.f32 %v386, %v3623
        %v3625 = vand.u32 %v3624, 4294901760
        %3626 = vmatpush1.xpose.msra.mxu0 %v3625
        %3627 = vmatprep.subr.mxu0 0.0
        %v3628 = vand.u32 %v387, 4294901760
        %v3629 = vsub.f32 %v387, %v3628
        %v3630 = vand.u32 %v3629, 4294901760
        %3631 = vmatpush1.xpose.msra.mxu0 %v3630
        %3632 = vmatprep.subr.mxu0 0.0
        %v3633 = vand.u32 %v388, 4294901760
        %v3634 = vsub.f32 %v388, %v3633
        %v3635 = vand.u32 %v3634, 4294901760
        %3636 = vmatpush1.xpose.msra.mxu0 %v3635
        %3637 = vmatprep.subr.mxu0 0.0
        %v3638 = vand.u32 %v389, 4294901760
        %v3639 = vsub.f32 %v389, %v3638
        %v3640 = vand.u32 %v3639, 4294901760
        %3641 = vmatpush1.xpose.msra.mxu0 %v3640
        %3642 = vmatprep.subr.mxu0 0.0
        %v3643 = vand.u32 %v390, 4294901760
        %v3644 = vsub.f32 %v390, %v3643
        %v3645 = vand.u32 %v3644, 4294901760
        %3646 = vmatpush1.xpose.msra.mxu0 %v3645
        %3647 = vmatprep.subr.mxu0 0.0
        %v3648 = vand.u32 %v391, 4294901760
        %v3649 = vsub.f32 %v391, %v3648
        %v3650 = vand.u32 %v3649, 4294901760
        %3651 = vmatpush1.xpose.msra.mxu0 %v3650
        %3652 = vmatprep.subr.mxu0 0.0
        %v3653 = vand.u32 %v392, 4294901760
        %v3654 = vsub.f32 %v392, %v3653
        %v3655 = vand.u32 %v3654, 4294901760
        %3656 = vmatpush1.xpose.msra.mxu0 %v3655
        %3657 = vmatprep.subr.mxu0 0.0
        %v3658 = vand.u32 %v393, 4294901760
        %v3659 = vsub.f32 %v393, %v3658
        %v3660 = vand.u32 %v3659, 4294901760
        %3661 = vmatpush1.xpose.msra.mxu0 %v3660
        %3662 = vmatprep.subr.mxu0 0.0
        %v3663 = vand.u32 %v394, 4294901760
        %v3664 = vsub.f32 %v394, %v3663
        %v3665 = vand.u32 %v3664, 4294901760
        %3666 = vmatpush1.xpose.msra.mxu0 %v3665
        %3667 = vmatprep.subr.mxu0 0.0
        %v3668 = vand.u32 %v395, 4294901760
        %v3669 = vsub.f32 %v395, %v3668
        %v3670 = vand.u32 %v3669, 4294901760
        %3671 = vmatpush1.xpose.msra.mxu0 %v3670
        %3672 = vmatprep.subr.mxu0 0.0
        %v3673 = vand.u32 %v396, 4294901760
        %v3674 = vsub.f32 %v396, %v3673
        %v3675 = vand.u32 %v3674, 4294901760
        %3676 = vmatpush1.xpose.msra.mxu0 %v3675
        %3677 = vmatprep.subr.mxu0 0.0
        %v3678 = vand.u32 %v397, 4294901760
        %v3679 = vsub.f32 %v397, %v3678
        %v3680 = vand.u32 %v3679, 4294901760
        %3681 = vmatpush1.xpose.msra.mxu0 %v3680
        %3682 = vmatprep.subr.mxu0 0.0
        %v3683 = vand.u32 %v398, 4294901760
        %v3684 = vsub.f32 %v398, %v3683
        %v3685 = vand.u32 %v3684, 4294901760
        %3686 = vmatpush1.xpose.msra.mxu0 %v3685
        %3687 = vmatprep.subr.mxu0 0.0
        %v3688 = vand.u32 %v399, 4294901760
        %v3689 = vsub.f32 %v399, %v3688
        %v3690 = vand.u32 %v3689, 4294901760
        %3691 = vmatpush1.xpose.msra.mxu0 %v3690
        %3692 = vmatprep.subr.mxu0 0.0
        %v3693 = vand.u32 %v400, 4294901760
        %v3694 = vsub.f32 %v400, %v3693
        %v3695 = vand.u32 %v3694, 4294901760
        %3696 = vmatpush1.xpose.msra.mxu0 %v3695
        %3697 = vmatprep.subr.mxu0 0.0
        %v3698 = vand.u32 %v401, 4294901760
        %v3699 = vsub.f32 %v401, %v3698
        %v3700 = vand.u32 %v3699, 4294901760
        %3701 = vmatpush1.xpose.msra.mxu0 %v3700
        %3702 = vmatprep.subr.mxu0 0.0
        %v3703 = vand.u32 %v402, 4294901760
        %v3704 = vsub.f32 %v402, %v3703
        %v3705 = vand.u32 %v3704, 4294901760
        %3706 = vmatpush1.xpose.msra.mxu0 %v3705
        %3707 = vmatprep.subr.mxu0 0.0
        %v3708 = vand.u32 %v403, 4294901760
        %v3709 = vsub.f32 %v403, %v3708
        %v3710 = vand.u32 %v3709, 4294901760
        %3711 = vmatpush1.xpose.msra.mxu0 %v3710
        %3712 = vmatprep.subr.mxu0 0.0
        %v3713 = vand.u32 %v404, 4294901760
        %v3714 = vsub.f32 %v404, %v3713
        %v3715 = vand.u32 %v3714, 4294901760
        %3716 = vmatpush1.xpose.msra.mxu0 %v3715
        %3717 = vmatprep.subr.mxu0 0.0
        %v3718 = vand.u32 %v405, 4294901760
        %v3719 = vsub.f32 %v405, %v3718
        %v3720 = vand.u32 %v3719, 4294901760
        %3721 = vmatpush1.xpose.msra.mxu0 %v3720
        %3722 = vmatprep.subr.mxu0 0.0
        %v3723 = vand.u32 %v406, 4294901760
        %v3724 = vsub.f32 %v406, %v3723
        %v3725 = vand.u32 %v3724, 4294901760
        %3726 = vmatpush1.xpose.msra.mxu0 %v3725
        %3727 = vmatprep.mubr.f32.mxu0 0.0
        %v3728 = vand.u32 %v418, 4294901760
        %3729 = vmatmul.mubr.f32.gmra.mrb[0].mxu0 %v3728
        %v3730 = vpop.f32.mrb[0].mxu0
        %v3731 = vadd.f32 %v3563, %v3730
        %v3732 = vpop.f32.mrb[0].mxu0
        %v3733 = vadd.f32 %v3565, %v3732
        %3734 = vdwg.mxu0
        %3735 = vmatprep.subr.mxu0 0.0
        %v3736 = vand.u32 %v375, 4294901760
        %3737 = vmatpush1.xpose.msra.mxu0 %v3736
        %3738 = vmatprep.subr.mxu0 0.0
        %v3739 = vand.u32 %v376, 4294901760
        %3740 = vmatpush1.xpose.msra.mxu0 %v3739
        %3741 = vmatprep.subr.mxu0 0.0
        %v3742 = vand.u32 %v377, 4294901760
        %3743 = vmatpush1.xpose.msra.mxu0 %v3742
        %3744 = vmatprep.subr.mxu0 0.0
        %v3745 = vand.u32 %v378, 4294901760
        %3746 = vmatpush1.xpose.msra.mxu0 %v3745
        %3747 = vmatprep.subr.mxu0 0.0
        %v3748 = vand.u32 %v379, 4294901760
        %3749 = vmatpush1.xpose.msra.mxu0 %v3748
        %3750 = vmatprep.subr.mxu0 0.0
        %v3751 = vand.u32 %v380, 4294901760
        %3752 = vmatpush1.xpose.msra.mxu0 %v3751
        %3753 = vmatprep.subr.mxu0 0.0
        %v3754 = vand.u32 %v381, 4294901760
        %3755 = vmatpush1.xpose.msra.mxu0 %v3754
        %3756 = vmatprep.subr.mxu0 0.0
        %v3757 = vand.u32 %v382, 4294901760
        %3758 = vmatpush1.xpose.msra.mxu0 %v3757
        %3759 = vmatprep.subr.mxu0 0.0
        %v3760 = vand.u32 %v383, 4294901760
        %3761 = vmatpush1.xpose.msra.mxu0 %v3760
        %3762 = vmatprep.subr.mxu0 0.0
        %v3763 = vand.u32 %v384, 4294901760
        %3764 = vmatpush1.xpose.msra.mxu0 %v3763
        %3765 = vmatprep.subr.mxu0 0.0
        %v3766 = vand.u32 %v385, 4294901760
        %3767 = vmatpush1.xpose.msra.mxu0 %v3766
        %3768 = vmatprep.subr.mxu0 0.0
        %v3769 = vand.u32 %v386, 4294901760
        %3770 = vmatpush1.xpose.msra.mxu0 %v3769
        %3771 = vmatprep.subr.mxu0 0.0
        %v3772 = vand.u32 %v387, 4294901760
        %3773 = vmatpush1.xpose.msra.mxu0 %v3772
        %3774 = vmatprep.subr.mxu0 0.0
        %v3775 = vand.u32 %v388, 4294901760
        %3776 = vmatpush1.xpose.msra.mxu0 %v3775
        %3777 = vmatprep.subr.mxu0 0.0
        %v3778 = vand.u32 %v389, 4294901760
        %3779 = vmatpush1.xpose.msra.mxu0 %v3778
        %3780 = vmatprep.subr.mxu0 0.0
        %v3781 = vand.u32 %v390, 4294901760
        %3782 = vmatpush1.xpose.msra.mxu0 %v3781
        %3783 = vmatprep.subr.mxu0 0.0
        %v3784 = vand.u32 %v391, 4294901760
        %3785 = vmatpush1.xpose.msra.mxu0 %v3784
        %3786 = vmatprep.subr.mxu0 0.0
        %v3787 = vand.u32 %v392, 4294901760
        %3788 = vmatpush1.xpose.msra.mxu0 %v3787
        %3789 = vmatprep.subr.mxu0 0.0
        %v3790 = vand.u32 %v393, 4294901760
        %3791 = vmatpush1.xpose.msra.mxu0 %v3790
        %3792 = vmatprep.subr.mxu0 0.0
        %v3793 = vand.u32 %v394, 4294901760
        %3794 = vmatpush1.xpose.msra.mxu0 %v3793
        %3795 = vmatprep.subr.mxu0 0.0
        %v3796 = vand.u32 %v395, 4294901760
        %3797 = vmatpush1.xpose.msra.mxu0 %v3796
        %3798 = vmatprep.subr.mxu0 0.0
        %v3799 = vand.u32 %v396, 4294901760
        %3800 = vmatpush1.xpose.msra.mxu0 %v3799
        %3801 = vmatprep.subr.mxu0 0.0
        %v3802 = vand.u32 %v397, 4294901760
        %3803 = vmatpush1.xpose.msra.mxu0 %v3802
        %3804 = vmatprep.subr.mxu0 0.0
        %v3805 = vand.u32 %v398, 4294901760
        %3806 = vmatpush1.xpose.msra.mxu0 %v3805
        %3807 = vmatprep.subr.mxu0 0.0
        %v3808 = vand.u32 %v399, 4294901760
        %3809 = vmatpush1.xpose.msra.mxu0 %v3808
        %3810 = vmatprep.subr.mxu0 0.0
        %v3811 = vand.u32 %v400, 4294901760
        %3812 = vmatpush1.xpose.msra.mxu0 %v3811
        %3813 = vmatprep.subr.mxu0 0.0
        %v3814 = vand.u32 %v401, 4294901760
        %3815 = vmatpush1.xpose.msra.mxu0 %v3814
        %3816 = vmatprep.subr.mxu0 0.0
        %v3817 = vand.u32 %v402, 4294901760
        %3818 = vmatpush1.xpose.msra.mxu0 %v3817
        %3819 = vmatprep.subr.mxu0 0.0
        %v3820 = vand.u32 %v403, 4294901760
        %3821 = vmatpush1.xpose.msra.mxu0 %v3820
        %3822 = vmatprep.subr.mxu0 0.0
        %v3823 = vand.u32 %v404, 4294901760
        %3824 = vmatpush1.xpose.msra.mxu0 %v3823
        %3825 = vmatprep.subr.mxu0 0.0
        %v3826 = vand.u32 %v405, 4294901760
        %3827 = vmatpush1.xpose.msra.mxu0 %v3826
        %3828 = vmatprep.subr.mxu0 0.0
        %v3829 = vand.u32 %v406, 4294901760
        %3830 = vmatpush1.xpose.msra.mxu0 %v3829
        %3831 = vmatprep.mubr.f32.mxu0 0.0
        %v3832 = vand.u32 %v418, 4294901760
        %3833 = vmatmul.mubr.f32.gmra.mrb[0].mxu0 %v3832
        %v3834 = vpop.f32.mrb[0].mxu0
        %v3835 = vadd.f32 %v3731, %v3834
        %v3836 = vpop.f32.mrb[0].mxu0
        %v3837 = vadd.f32 %v3733, %v3836
        %3838 = vdwg.mxu0
        %v3839 = vmul.f32 %v1270, -0.5
        %v3840 = vmul.f32 %v1272, -0.5
        %v3841 = vmul.f32 %v2125, -0.5
        %v3842 = vmul.f32 %v2127, -0.5
        %v3843 = vmul.f32 %v2980, -0.5
        %v3844 = vmul.f32 %v2982, -0.5
        %v3845 = vmul.f32 %v3835, -0.5
        %v3846 = vmul.f32 %v3837, -0.5
        %v3847 = vsub.f32 %v3839, 29.406033
        %v3848 = vsub.f32 %v3840, 29.406033
        %v3849 = vsub.f32 %v3841, 29.406033
        %v3850 = vsub.f32 %v3842, 29.406033
        %v3851 = vsub.f32 %v3843, 29.406033
        %v3852 = vsub.f32 %v3844, 29.406033
        %v3853 = vsub.f32 %v3845, 29.406033
        %v3854 = vsub.f32 %v3846, 29.406033
        %v3863 = vcombine.low %v3847, %v3848
        %v3864 = vcombine.low %v3849, %v3850
        %v3865 = vcombine.low %v3851, %v3852
        %v3866 = vcombine.low %v3853, %v3854
        %3871 = vst [vmem:[%s140] sm:$0xff] %v3863
        %3872 = vst [vmem:[%s140 + $0x8] sm:$0xff] %v3864
        %3873 = vst [vmem:[%s140 + $0x10] sm:$0xff] %v3865
        %3874 = vst [vmem:[%s140 + $0x18] sm:$0xff] %v3866
        %s3875 = sand.u32 %s52, 1
        %s3876 = scalar_lea.sflag [#allocation4], %s3875
        %s3877 = sand.u32 %s52, 1
        %s3878 = smul.addr %s3877, 32
        %s3879 = scalar_lea.vmem [#allocation5], %s3878
        // Predicated region
        $region29: #{tpu_custom_call.1} parent=23 // pred_check
          %p3880 = pneg %p62
        $region30: #{tpu_custom_call.1} parent=23 // pred_check_branch
          %3882 = sbr.rel (%p3880) target = $region32
        $region31: #{tpu_custom_call.1} parent=23 // pred_region
          %s3883 = smul.u32 8, %s18
          %s3884 = ssub.s32 9, %s3883
          %p3885 = scmp.lt.s32.totalorder %s3884, 8
          %s3886 = scalar_select %p3885, %s3884, 8
          %s3887 = smul.u32 64, %s3886
          %s3889 = ssub.s32 512, %s3887
          %3890 = vsyncadd %s3876, %s3889
          %p3891 = scmp.ne.s32.totalorder 0, %s3887
          %s3892 = smul.addr %s3883, 64
          %s3893 = scalar_lea.hbm %s1, %s3892
          %s3894 = smul.u32 %s3886, 4
          %s3895 = sshll.u32 %s3894, 4
          %s3896 = sshll.u32 %s3879, 4
          %s3897 = int_to_ptr.vmem [resolvable:$true] %s3896
          %3899 = dma.vmem_to_hbm [thread:$0]  (%p3891), %s3897, %s3895, %s3893, %s3876
        $region32: #{tpu_custom_call.1} parent=23 // pred_fallthru
          _
      $region24: #{tpu_custom_call.1} parent=5 // pred_fallthru
        _
      %p3900 = scmp.le.s32.totalorder 2, %s13
      // Predicated region
      $region33: #{tpu_custom_call.1} parent=5 // pred_check
        %p3901 = pneg %p3900
      $region34: #{tpu_custom_call.1} parent=5 // pred_check_branch
        %3903 = sbr.rel (%p3901) target = $region36
      $region35: #{tpu_custom_call.1} parent=5 // pred_region
        %s3904 = ssub.s32 %s13, 2
        // Predicated region
        $region37: #{tpu_custom_call.1} parent=35 // pred_check
          %p3905 = pneg %p68
        $region38: #{tpu_custom_call.1} parent=35 // pred_check_branch
          %3907 = sbr.rel (%p3905) target = $region40
        $region39: #{tpu_custom_call.1} parent=35 // pred_region
          %s3908 = sand.u32 %s53, 1
          %s3909 = scalar_lea.sflag [#allocation4], %s3908
          %s3910 = sand.u32 %s53, 1
          %s3911 = smul.addr %s3910, 32
          %s3912 = scalar_lea.vmem [#allocation5], %s3911
          %3913 = dma.done %s3909, 512
        $region40: #{tpu_custom_call.1} parent=35 // pred_fallthru
          _
      $region36: #{tpu_custom_call.1} parent=5 // pred_fallthru
        _
    $region6: #{tpu_custom_call.1} parent=1 // loop_footer
      %s17 = sadd.s32 1, %s13
    $region7: #{tpu_custom_call.1} parent=1 // loop_footer_branch
      %12 = sbr.rel target = $region3
    $region8: #{tpu_custom_call.1} parent=1 // loop_exit
      _
    %3914 = vsyncpa [#allocation3], 1
    %s3915 = scalar_lea.sflag [#allocation3], 1
    %3916 = vsyncpa %s3915, 1
    %3917 = vsyncpa [#allocation4], 1
    %s3918 = scalar_lea.sflag [#allocation4], 1
    %3919 = vsyncpa %s3918, 1

</llo_original>
